<compile_context>
chip_gen: v7x
topology: tpu7x:2x2x1
jax: 0.10.0
libtpu: 0.0.40
codegen_flags: <defaults>
</compile_context>

<pallas_src>
import functools

import jax
import jax.numpy as jnp
from jax.experimental import pallas as pl
from jax.experimental.pallas import tpu as pltpu

EPS = 1e-5


# --------------------------- shared helpers -------------------------------- #

def _sigmoid(x):
    # exp lowers to the EUP; the divide stays exact for f32 fidelity.
    return 1.0 / (1.0 + jnp.exp(-x))


def _silu(x):
    return x * _sigmoid(x)


def _layernorm(x, w, b):
    mu = jnp.mean(x, axis=-1, keepdims=True)
    var = jnp.mean((x - mu) ** 2, axis=-1, keepdims=True)
    return (x - mu) * jax.lax.rsqrt(var + EPS) * w + b


# ---------------------------- fused kernel --------------------------------- #

def conformer_kernel(x_ref, wm_ref, vv_ref, o_ref, *,
                     n_heads, dim_head, kernel_size, seq_len, batch_per_step,
                     wslots, vslots, exact_softmax):
    f32 = jnp.float32
    N = seq_len
    Bg = batch_per_step
    inner = n_heads * dim_head
    K = kernel_size
    pad = (K - 1) // 2

    def W(name):                       # static slice of the matrix slab (free view)
        off, r, c = wslots[name]
        return wm_ref[off:off + r, 0:c]

    def V(name):                       # static slice of the vector slab
        row, c = vslots[name]
        return vv_ref[row:row + 1, 0:c]

    x = x_ref[...]                                        # (Bg*N, D)
    D = x.shape[1]
    C = D

    # ---- x = x + 0.5 * FeedForward1(x) ------------------------------------
    xn = _layernorm(x, V('f1_lnw'), V('f1_lnb'))
    h = _silu(jnp.dot(xn, W('f1_w1'), preferred_element_type=f32) + V('f1_b1'))
    x = x + 0.5 * (jnp.dot(h, W('f1_w2'), preferred_element_type=f32) + V('f1_b2'))

    # ---- x = x + MHSA(LN(x)) with in-kernel ALiBi ---------------------------
    xn = _layernorm(x, V('a_lnw'), V('a_lnb'))
    qkv = jnp.dot(xn, W('a_wqkv'), preferred_element_type=f32)   # (Bg*N, 3*inner)
    wo = W('a_wo')                                               # (inner, D)
    row = jax.lax.broadcasted_iota(jnp.int32, (N, N), 0)
    col = jax.lax.broadcasted_iota(jnp.int32, (N, N), 1)
    alibi_base = -jnp.abs(row - col).astype(f32)                 # (N, N)
    scale = 1.0 / (dim_head ** 0.5)
    attn_parts = []
    for b in range(Bg):                                          # static, small
        qkv_b = qkv[b * N:(b + 1) * N, :]                        # (N, 3*inner)
        acc_b = jnp.zeros((N, D), f32)
        for hh in range(n_heads):                                # static, small
            slope = 2.0 ** (-8.0 / (n_heads - hh))               # python float
            lo = hh * dim_head
            q = qkv_b[:, lo:lo + dim_head]
            k = qkv_b[:, inner + lo:inner + lo + dim_head]
            v = qkv_b[:, 2 * inner + lo:2 * inner + lo + dim_head]
            s = jax.lax.dot_general(q, k, (((1,), (1,)), ((), ())),
                                    preferred_element_type=f32)  # (N, N)
            s = s * scale + alibi_base * slope
            s = s - jnp.max(s, axis=-1, keepdims=True)
            p = jnp.exp(s)
            denom = jnp.sum(p, axis=-1, keepdims=True)
            if exact_softmax:
                p = p / denom
            else:
                p = p * pl.reciprocal(denom, approx=True)
            o_h = jnp.dot(p, v, preferred_element_type=f32)      # (N, dh), in vregs
            # fold the per-head output projection immediately (rows of Wo)
            acc_b = acc_b + jnp.dot(o_h, wo[lo:lo + dim_head, :],
                                    preferred_element_type=f32)
        attn_parts.append(acc_b)
    attn = jnp.concatenate(attn_parts, axis=0) if Bg > 1 else attn_parts[0]
    x = x + attn

    # ---- x = x + ConformerConvBlock(x), computed in (N, C) orientation ------
    # literal LayerNorm over the SEQUENCE axis (requires N == D); LN weights
    # are indexed by sequence position -> stored as (N, 2) columns in the slab.
    c_ln = W('c_lncols')                                         # (N, 2)
    ln_w_col = c_ln[:, 0:1]
    ln_b_col = c_ln[:, 1:2]
    xn_parts = []
    for b in range(Bg):
        xb = x[b * N:(b + 1) * N, :]
        mu = jnp.mean(xb, axis=0, keepdims=True)
        var = jnp.mean((xb - mu) ** 2, axis=0, keepdims=True)
        xn_parts.append((xb - mu) * jax.lax.rsqrt(var + EPS) * ln_w_col + ln_b_col)
    xn = jnp.concatenate(xn_parts, axis=0) if Bg > 1 else xn_parts[0]
    # pointwise conv1 + GLU, weights pre-split so no (., 2C) lane slicing
    ya = jnp.dot(xn, W('c_w1a'), preferred_element_type=f32) + V('c_b1a')
    yb = jnp.dot(xn, W('c_w1b'), preferred_element_type=f32) + V('c_b1b')
    z = ya * _sigmoid(yb)                                        # (Bg*N, C)
    # depthwise 'same' conv along the sequence axis: per-batch register-value
    # zero padding + K shifted sublane reads, one FMA each.
    wdw = W('c_wdw')                                             # (K, C)
    zero_rows = jnp.zeros((pad, C), f32)
    conv_parts = []
    for b in range(Bg):
        zb = z[b * N:(b + 1) * N, :]
        zp = jnp.concatenate([zero_rows, zb, zero_rows], axis=0)  # (N+K-1, C)
        acc = jnp.zeros((N, C), f32)
        for j in range(K):
            acc = acc + wdw[j:j + 1, :] * zp[j:j + N, :]
        conv_parts.append(acc)
    dwz = (jnp.concatenate(conv_parts, axis=0) if Bg > 1 else conv_parts[0]) + V('c_bdw')
    # BatchNorm1d (eval mode) folded host-side into scale/shift
    dwz = _silu(dwz * V('c_bn_scale') + V('c_bn_shift'))
    x = x + jnp.dot(dwz, W('c_w2'), preferred_element_type=f32) + V('c_b2')

    # ---- out = LayerNorm(x + 0.5 * FeedForward2(x)) -------------------------
    xn = _layernorm(x, V('f2_lnw'), V('f2_lnb'))
    h = _silu(jnp.dot(xn, W('f2_w1'), preferred_element_type=f32) + V('f2_b1'))
    y = x + 0.5 * (jnp.dot(h, W('f2_w2'), preferred_element_type=f32) + V('f2_b2'))
    o_ref[...] = _layernorm(y, V('f_lnw'), V('f_lnb'))


# ------------------------ host-side weight packing -------------------------- #

def _pack_params(p, *, seq_len):
    """Pack all block weights into one matrix slab and one row-vector slab."""
    f32 = jnp.float32
    ff1, ap, cp, ff2 = p['ff1'], p['attn'], p['conv'], p['ff2']

    wqkv = jnp.concatenate([ap['wq'], ap['wk'], ap['wv']], axis=1)  # (D, 3*inner)
    c_w1t = cp['w1'].T                                              # (C, 2C)
    C = c_w1t.shape[0]
    c_lncols = jnp.concatenate([cp['ln_w'].T, cp['ln_b'].T], axis=1)  # (N, 2)

    mats = [
        ('f1_w1', ff1['w1']), ('f1_w2', ff1['w2']),
        ('f2_w1', ff2['w1']), ('f2_w2', ff2['w2']),
        ('a_wqkv', wqkv), ('a_wo', ap['wo']),
        ('c_w1a', c_w1t[:, :C]), ('c_w1b', c_w1t[:, C:]),
        ('c_w2', cp['w2'].T),
        ('c_wdw', cp['wdw'].T),          # (K, C)
        ('c_lncols', c_lncols),          # (N, 2)
    ]
    slab_w = max(a.shape[1] for _, a in mats)
    wslots, blocks, off = {}, [], 0
    for name, a in mats:
        r, c = a.shape
        rpad = (-r) % 8                  # keep every slice sublane-aligned
        wslots[name] = (off, r, c)
        blocks.append(jnp.pad(a.astype(f32), ((0, rpad), (0, slab_w - c))))
        off += r + rpad
    wm = jnp.concatenate(blocks, axis=0)

    bn_scale = cp['bn_g'] / jnp.sqrt(cp['bn_v'] + EPS)   # (C, 1) eval-mode BN fold
    bn_shift = cp['bn_b'] - cp['bn_m'] * bn_scale
    b1t = cp['b1'].T                                     # (1, 2C)
    vecs = [
        ('f1_lnw', ff1['ln_w']), ('f1_lnb', ff1['ln_b']),
        ('f1_b1', ff1['b1']), ('f1_b2', ff1['b2']),
        ('a_lnw', ap['ln_w']), ('a_lnb', ap['ln_b']),
        ('c_b1a', b1t[:, :C]), ('c_b1b', b1t[:, C:]),
        ('c_bdw', cp['bdw'].T),
        ('c_bn_scale', bn_scale.T), ('c_bn_shift', bn_shift.T),
        ('c_b2', cp['b2'].T),
        ('f2_lnw', ff2['ln_w']), ('f2_lnb', ff2['ln_b']),
        ('f2_b1', ff2['b1']), ('f2_b2', ff2['b2']),
        ('f_lnw', p['ln_w']), ('f_lnb', p['ln_b']),
    ]
    vslab_w = max(a.shape[1] for _, a in vecs)
    vslots, vrows = {}, []
    for i, (name, a) in enumerate(vecs):
        c = a.shape[1]
        vslots[name] = (i, c)
        vrows.append(jnp.pad(a.astype(f32).reshape(1, c), ((0, 0), (0, vslab_w - c))))
    vv = jnp.concatenate(vrows, axis=0)
    vv = jnp.pad(vv, ((0, (-vv.shape[0]) % 8), (0, 0)))
    return wm, vv, wslots, vslots


# ------------------------------- wrapper ------------------------------------ #

def conformer_block(x, p, *, n_heads, kernel_size, batch_groups=1,
                    exact_softmax=False):
    B, N, D = x.shape
    assert D % n_heads == 0
    assert N == D, "literal conv-block LayerNorm requires seq_len == dim"
    assert B % batch_groups == 0
    Bg = B // batch_groups
    dim_head = D // n_heads
    f32 = jnp.float32

    wm, vv, wslots, vslots = _pack_params(p, seq_len=N)
    x2 = x.reshape(B * N, D).astype(f32)         # fold batch into the matmul M dim

    kernel = functools.partial(
        conformer_kernel, n_heads=n_heads, dim_head=dim_head,
        kernel_size=kernel_size, seq_len=N, batch_per_step=Bg,
        wslots=wslots, vslots=vslots, exact_softmax=exact_softmax)

    out = pl.pallas_call(
        kernel,
        out_shape=jax.ShapeDtypeStruct((B * N, D), f32),
        grid_spec=pltpu.PrefetchScalarGridSpec(
            num_scalar_prefetch=0,
            grid=(batch_groups,),
            in_specs=[
                pl.BlockSpec((Bg * N, D), lambda g: (g, 0)),        # activations
                pl.BlockSpec(wm.shape, lambda g: (0, 0)),           # matrix slab
                pl.BlockSpec(vv.shape, lambda g: (0, 0)),           # vector slab
            ],
            out_specs=pl.BlockSpec((Bg * N, D), lambda g: (g, 0)),
        ),
        compiler_params=pltpu.CompilerParams(
            dimension_semantics=("parallel",),
            vmem_limit_bytes=32 * 1024 * 1024),
    )(x2, wm, vv)
    return out.reshape(B, N, D)


# -------------------------- params / reference ------------------------------ #

def make_alibi(n_heads, context, crop_n):
    idx = jnp.arange(context, dtype=jnp.float32)
    base = -jnp.abs(idx[:, None] - idx[None, :])                 # (ctx, ctx)
    n_seq = jnp.arange(n_heads, 0, -1, dtype=jnp.float32)        # [H, ..., 1]
    scal = 2.0 ** (-8.0 / n_seq)
    M = base[None, :, :] * scal[:, None, None]                   # (H, ctx, ctx)
    return M[:, :crop_n, :crop_n]


def init_params(key, dim, hidden_dim, n_heads, seq_len, kernel_size=17):
    ks = iter(jax.random.split(key, 32))
    f32 = jnp.float32

    def u(shape, fan_in):
        bound = 1.0 / (fan_in ** 0.5)
        return jax.random.uniform(next(ks), shape, f32, -bound, bound)

    def ff_params():
        return dict(ln_w=jnp.ones((1, dim), f32), ln_b=jnp.zeros((1, dim), f32),
                    w1=u((dim, hidden_dim), dim), b1=u((1, hidden_dim), dim),
                    w2=u((hidden_dim, dim), hidden_dim), b2=u((1, dim), hidden_dim))

    inner = dim                                                  # dim_head * heads
    attn = dict(ln_w=jnp.ones((1, dim), f32), ln_b=jnp.zeros((1, dim), f32),
                wq=u((dim, inner), dim), wk=u((dim, inner), dim),
                wv=u((dim, inner), dim), wo=u((inner, dim), inner))

    C = dim
    conv = dict(ln_w=jnp.ones((1, seq_len), f32), ln_b=jnp.zeros((1, seq_len), f32),
                w1=u((2 * C, C), C), b1=u((2 * C, 1), C),
                wdw=u((C, kernel_size), kernel_size), bdw=u((C, 1), kernel_size),
                bn_g=jnp.ones((C, 1), f32), bn_b=jnp.zeros((C, 1), f32),
                bn_m=jnp.zeros((C, 1), f32), bn_v=jnp.ones((C, 1), f32),
                w2=u((C, C), C), b2=u((C, 1), C))

    return dict(ff1=ff_params(), attn=attn, conv=conv, ff2=ff_params(),
                ln_w=jnp.ones((1, dim), f32), ln_b=jnp.zeros((1, dim), f32))


def reference(x, p, *, n_heads, kernel_size, context=32):
    """Pure-JAX mirror of the PyTorch forward (eval mode), for verification."""
    B, N, D = x.shape
    dh = D // n_heads

    def ln(v, w, b):
        mu = v.mean(-1, keepdims=True)
        var = ((v - mu) ** 2).mean(-1, keepdims=True)
        return (v - mu) / jnp.sqrt(var + EPS) * w + b

    def ff(v, fp):
        h = _silu(ln(v, fp['ln_w'], fp['ln_b']) @ fp['w1'] + fp['b1'])
        return h @ fp['w2'] + fp['b2']

    x = x + 0.5 * ff(x, p['ff1'])

    ap = p['attn']
    alibi = make_alibi(n_heads, context, N)
    xn = ln(x, ap['ln_w'], ap['ln_b'])
    q = (xn @ ap['wq']).reshape(B, N, n_heads, dh).transpose(0, 2, 1, 3)
    k = (xn @ ap['wk']).reshape(B, N, n_heads, dh).transpose(0, 2, 1, 3)
    v = (xn @ ap['wv']).reshape(B, N, n_heads, dh).transpose(0, 2, 1, 3)
    s = jnp.einsum('bhid,bhjd->bhij', q, k) / (dh ** 0.5) + alibi[None]
    a = jax.nn.softmax(s, axis=-1)
    o = jnp.einsum('bhij,bhjd->bhid', a, v).transpose(0, 2, 1, 3).reshape(B, N, D)
    x = x + o @ ap['wo']

    cp = p['conv']
    C = D
    xc = x.transpose(0, 2, 1)                                    # (B, C, N)
    xn = ln(xc, cp['ln_w'], cp['ln_b'])
    y = jnp.einsum('oc,bcn->bon', cp['w1'], xn) + cp['b1']
    z = y[:, :C] * _sigmoid(y[:, C:])
    dw = jax.lax.conv_general_dilated(
        z, cp['wdw'][:, None, :], window_strides=(1,), padding='SAME',
        feature_group_count=C, dimension_numbers=('NCH', 'OIH', 'NCH'))
    dw = dw + cp['bdw']
    dw = (dw - cp['bn_m']) / jnp.sqrt(cp['bn_v'] + EPS) * cp['bn_g'] + cp['bn_b']
    dw = _silu(dw)
    c_out = jnp.einsum('oc,bcn->bon', cp['w2'], dw) + cp['b2']
    x = x + c_out.transpose(0, 2, 1)

    y = x + 0.5 * ff(x, p['ff2'])
    return ln(y, p['ln_w'], p['ln_b'])


if __name__ == "__main__":
    import numpy as np

    B, N, D = 2, 16, 16        # seq_len == dim (required by literal conv-block LayerNorm)
    heads = 4                  # dim_head = 4, inner_dim = dim
    hidden = D * 4
    K = 17

    key = jax.random.PRNGKey(0)
    kx, kp = jax.random.split(key)
    x = jax.random.normal(kx, (B, N, D), jnp.float32)
    params = init_params(kp, D, hidden, heads, N, kernel_size=K)

    out = conformer_block(x, params, n_heads=heads, kernel_size=K, batch_groups=1)
    out = jax.block_until_ready(out)

    ref = reference(x, params, n_heads=heads, kernel_size=K)
    assert out.shape == (B, N, D)
    assert bool(jnp.all(jnp.isfinite(out)))
    np.testing.assert_allclose(np.asarray(out), np.asarray(ref),
                               rtol=2e-2, atol=2e-2)
    print("KERNEL_OK")
</pallas_src>

<mosaic_0001>
module attributes {stable_mosaic.version = 11 : i64} {
  func.func @conformer_kernel(%arg0: i32, %arg1: memref<32x16xf32, #tpu.memory_space<vmem>>, %arg2: memref<280x64xf32, #tpu.memory_space<vmem>>, %arg3: memref<24x64xf32, #tpu.memory_space<vmem>>, %arg4: memref<32x16xf32, #tpu.memory_space<vmem>>) attributes {dimension_semantics = [#tpu.dimension_semantics<parallel>], iteration_bounds = array<i64: 1>, scalar_prefetch = 0 : i64, scratch_operands = 0 : i64, tpu.core_type = #tpu.core_type<tc>, window_params = [{transform_indices = @transform_0, window_bounds = array<i64: 32, 16>}, {pipeline_mode = #tpu.pipeline_mode<synchronous>, transform_indices = @transform_1, window_bounds = array<i64: 280, 64>}, {pipeline_mode = #tpu.pipeline_mode<synchronous>, transform_indices = @transform_2, window_bounds = array<i64: 24, 64>}, {transform_indices = @transform_3, window_bounds = array<i64: 32, 16>}]} {
    %c0 = arith.constant 0 : index
    %c0_0 = arith.constant 0 : index
    %0 = vector.load %arg1[%c0, %c0_0] : memref<32x16xf32, #tpu.memory_space<vmem>>, vector<32x16xf32>
    %c0_1 = arith.constant 0 : index
    %c0_2 = arith.constant 0 : index
    %1 = vector.load %arg3[%c0_1, %c0_2] : memref<24x64xf32, #tpu.memory_space<vmem>>, vector<1x16xf32>
    %c1 = arith.constant 1 : index
    %c0_3 = arith.constant 0 : index
    %2 = vector.load %arg3[%c1, %c0_3] : memref<24x64xf32, #tpu.memory_space<vmem>>, vector<1x16xf32>
    %cst = arith.constant dense<0.000000e+00> : vector<32xf32>
    %3 = vector.multi_reduction <add>, %0, %cst [1] : vector<32x16xf32> to vector<32xf32>
    %4 = vector.shape_cast %3 : vector<32xf32> to vector<32x1xf32>
    %cst_4 = arith.constant 1.600000e+01 : f32
    %5 = vector.broadcast %cst_4 : f32 to vector<32x1xf32>
    %6 = arith.divf %4, %5 : vector<32x1xf32>
    %7 = vector.broadcast %6 : vector<32x1xf32> to vector<32x16xf32>
    %8 = arith.subf %0, %7 : vector<32x16xf32>
    %9 = arith.mulf %8, %8 : vector<32x16xf32>
    %cst_5 = arith.constant dense<0.000000e+00> : vector<32xf32>
    %10 = vector.multi_reduction <add>, %9, %cst_5 [1] : vector<32x16xf32> to vector<32xf32>
    %11 = vector.shape_cast %10 : vector<32xf32> to vector<32x1xf32>
    %cst_6 = arith.constant 1.600000e+01 : f32
    %12 = vector.broadcast %cst_6 : f32 to vector<32x1xf32>
    %13 = arith.divf %11, %12 : vector<32x1xf32>
    %14 = vector.broadcast %6 : vector<32x1xf32> to vector<32x16xf32>
    %15 = arith.subf %0, %14 : vector<32x16xf32>
    %cst_7 = arith.constant 9.99999974E-6 : f32
    %16 = vector.broadcast %cst_7 : f32 to vector<32x1xf32>
    %17 = arith.addf %13, %16 : vector<32x1xf32>
    %18 = math.rsqrt %17 : vector<32x1xf32>
    %19 = vector.broadcast %18 : vector<32x1xf32> to vector<32x16xf32>
    %20 = arith.mulf %15, %19 : vector<32x16xf32>
    %21 = vector.broadcast %1 : vector<1x16xf32> to vector<32x16xf32>
    %22 = arith.mulf %20, %21 : vector<32x16xf32>
    %23 = vector.broadcast %2 : vector<1x16xf32> to vector<32x16xf32>
    %24 = arith.addf %22, %23 : vector<32x16xf32>
    %c0_8 = arith.constant 0 : index
    %c0_9 = arith.constant 0 : index
    %25 = vector.load %arg2[%c0_8, %c0_9] : memref<280x64xf32, #tpu.memory_space<vmem>>, vector<16x64xf32>
    %cst_10 = arith.constant dense<0.000000e+00> : vector<32x64xf32>
    %26 = tpu.matmul %24, %25, %cst_10 {dimension_numbers = #tpu.dot_dimension_numbers<[1], [0], [0], [1], [0, 0, 1, 1], [], []>} : vector<32x16xf32>, vector<16x64xf32>, vector<32x64xf32> -> vector<32x64xf32>
    %c2 = arith.constant 2 : index
    %c0_11 = arith.constant 0 : index
    %27 = vector.load %arg3[%c2, %c0_11] : memref<24x64xf32, #tpu.memory_space<vmem>>, vector<1x64xf32>
    %28 = vector.broadcast %27 : vector<1x64xf32> to vector<32x64xf32>
    %29 = arith.addf %26, %28 : vector<32x64xf32>
    %cst_12 = arith.constant 0.000000e+00 : f32
    %30 = vector.broadcast %cst_12 : f32 to vector<32x64xf32>
    %31 = arith.subf %30, %29 : vector<32x64xf32>
    %32 = math.exp %31 : vector<32x64xf32>
    %cst_13 = arith.constant 1.000000e+00 : f32
    %33 = vector.broadcast %cst_13 : f32 to vector<32x64xf32>
    %34 = arith.addf %33, %32 : vector<32x64xf32>
    %cst_14 = arith.constant 1.000000e+00 : f32
    %35 = vector.broadcast %cst_14 : f32 to vector<32x64xf32>
    %36 = arith.divf %35, %34 : vector<32x64xf32>
    %37 = arith.mulf %29, %36 : vector<32x64xf32>
    %c16 = arith.constant 16 : index
    %c0_15 = arith.constant 0 : index
    %38 = vector.load %arg2[%c16, %c0_15] : memref<280x64xf32, #tpu.memory_space<vmem>>, vector<64x16xf32>
    %cst_16 = arith.constant dense<0.000000e+00> : vector<32x16xf32>
    %39 = tpu.matmul %37, %38, %cst_16 {dimension_numbers = #tpu.dot_dimension_numbers<[1], [0], [0], [1], [0, 0, 1, 1], [], []>} : vector<32x64xf32>, vector<64x16xf32>, vector<32x16xf32> -> vector<32x16xf32>
    %c3 = arith.constant 3 : index
    %c0_17 = arith.constant 0 : index
    %40 = vector.load %arg3[%c3, %c0_17] : memref<24x64xf32, #tpu.memory_space<vmem>>, vector<1x16xf32>
    %41 = vector.broadcast %40 : vector<1x16xf32> to vector<32x16xf32>
    %42 = arith.addf %39, %41 : vector<32x16xf32>
    %cst_18 = arith.constant 5.000000e-01 : f32
    %43 = vector.broadcast %cst_18 : f32 to vector<32x16xf32>
    %44 = arith.mulf %43, %42 : vector<32x16xf32>
    %45 = arith.addf %0, %44 : vector<32x16xf32>
    %c4 = arith.constant 4 : index
    %c0_19 = arith.constant 0 : index
    %46 = vector.load %arg3[%c4, %c0_19] : memref<24x64xf32, #tpu.memory_space<vmem>>, vector<1x16xf32>
    %c5 = arith.constant 5 : index
    %c0_20 = arith.constant 0 : index
    %47 = vector.load %arg3[%c5, %c0_20] : memref<24x64xf32, #tpu.memory_space<vmem>>, vector<1x16xf32>
    %cst_21 = arith.constant dense<0.000000e+00> : vector<32xf32>
    %48 = vector.multi_reduction <add>, %45, %cst_21 [1] : vector<32x16xf32> to vector<32xf32>
    %49 = vector.shape_cast %48 : vector<32xf32> to vector<32x1xf32>
    %cst_22 = arith.constant 1.600000e+01 : f32
    %50 = vector.broadcast %cst_22 : f32 to vector<32x1xf32>
    %51 = arith.divf %49, %50 : vector<32x1xf32>
    %52 = vector.broadcast %51 : vector<32x1xf32> to vector<32x16xf32>
    %53 = arith.subf %45, %52 : vector<32x16xf32>
    %54 = arith.mulf %53, %53 : vector<32x16xf32>
    %cst_23 = arith.constant dense<0.000000e+00> : vector<32xf32>
    %55 = vector.multi_reduction <add>, %54, %cst_23 [1] : vector<32x16xf32> to vector<32xf32>
    %56 = vector.shape_cast %55 : vector<32xf32> to vector<32x1xf32>
    %cst_24 = arith.constant 1.600000e+01 : f32
    %57 = vector.broadcast %cst_24 : f32 to vector<32x1xf32>
    %58 = arith.divf %56, %57 : vector<32x1xf32>
    %59 = vector.broadcast %51 : vector<32x1xf32> to vector<32x16xf32>
    %60 = arith.subf %45, %59 : vector<32x16xf32>
    %cst_25 = arith.constant 9.99999974E-6 : f32
    %61 = vector.broadcast %cst_25 : f32 to vector<32x1xf32>
    %62 = arith.addf %58, %61 : vector<32x1xf32>
    %63 = math.rsqrt %62 : vector<32x1xf32>
    %64 = vector.broadcast %63 : vector<32x1xf32> to vector<32x16xf32>
    %65 = arith.mulf %60, %64 : vector<32x16xf32>
    %66 = vector.broadcast %46 : vector<1x16xf32> to vector<32x16xf32>
    %67 = arith.mulf %65, %66 : vector<32x16xf32>
    %68 = vector.broadcast %47 : vector<1x16xf32> to vector<32x16xf32>
    %69 = arith.addf %67, %68 : vector<32x16xf32>
    %c160 = arith.constant 160 : index
    %c0_26 = arith.constant 0 : index
    %70 = vector.load %arg2[%c160, %c0_26] : memref<280x64xf32, #tpu.memory_space<vmem>>, vector<16x48xf32>
    %cst_27 = arith.constant dense<0.000000e+00> : vector<32x48xf32>
    %71 = tpu.matmul %69, %70, %cst_27 {dimension_numbers = #tpu.dot_dimension_numbers<[1], [0], [0], [1], [0, 0, 1, 1], [], []>} : vector<32x16xf32>, vector<16x48xf32>, vector<32x48xf32> -> vector<32x48xf32>
    %c176 = arith.constant 176 : index
    %c0_28 = arith.constant 0 : index
    %72 = vector.load %arg2[%c176, %c0_28] : memref<280x64xf32, #tpu.memory_space<vmem>>, vector<16x16xf32>
    %73 = tpu.iota {dimensions = array<i32: 0>} : vector<16x16xi32>
    %74 = tpu.iota {dimensions = array<i32: 1>} : vector<16x16xi32>
    %75 = arith.subi %73, %74 : vector<16x16xi32>
    %76 = math.absi %75 : vector<16x16xi32>
    %77 = arith.sitofp %76 : vector<16x16xi32> to vector<16x16xf32>
    %cst_29 = arith.constant 0.000000e+00 : f32
    %78 = vector.broadcast %cst_29 : f32 to vector<16x16xf32>
    %79 = arith.subf %78, %77 : vector<16x16xf32>
    %80 = vector.extract_strided_slice %71 {offsets = [0, 0], sizes = [16, 48], strides = [1, 1]} : vector<32x48xf32> to vector<16x48xf32>
    %cst_30 = arith.constant 0.000000e+00 : f32
    %81 = vector.broadcast %cst_30 : f32 to vector<16x16xf32>
    %82 = vector.extract_strided_slice %80 {offsets = [0, 0], sizes = [16, 4], strides = [1, 1]} : vector<16x48xf32> to vector<16x4xf32>
    %83 = vector.extract_strided_slice %80 {offsets = [0, 16], sizes = [16, 4], strides = [1, 1]} : vector<16x48xf32> to vector<16x4xf32>
    %84 = vector.extract_strided_slice %80 {offsets = [0, 32], sizes = [16, 4], strides = [1, 1]} : vector<16x48xf32> to vector<16x4xf32>
    %cst_31 = arith.constant dense<0.000000e+00> : vector<16x16xf32>
    %85 = tpu.matmul %82, %83, %cst_31 {dimension_numbers = #tpu.dot_dimension_numbers<[1], [1], [0], [0], [0, 0, 1, 0], [], []>} : vector<16x4xf32>, vector<16x4xf32>, vector<16x16xf32> -> vector<16x16xf32>
    %cst_32 = arith.constant 5.000000e-01 : f32
    %86 = vector.broadcast %cst_32 : f32 to vector<16x16xf32>
    %87 = arith.mulf %85, %86 : vector<16x16xf32>
    %cst_33 = arith.constant 2.500000e-01 : f32
    %88 = vector.broadcast %cst_33 : f32 to vector<16x16xf32>
    %89 = arith.mulf %79, %88 : vector<16x16xf32>
    %90 = arith.addf %87, %89 : vector<16x16xf32>
    %cst_34 = arith.constant dense<0xFF800000> : vector<16xf32>
    %91 = vector.multi_reduction <maximumf>, %90, %cst_34 [1] : vector<16x16xf32> to vector<16xf32>
    %92 = vector.shape_cast %91 : vector<16xf32> to vector<16x1xf32>
    %93 = vector.broadcast %92 : vector<16x1xf32> to vector<16x16xf32>
    %94 = arith.subf %90, %93 : vector<16x16xf32>
    %95 = math.exp %94 : vector<16x16xf32>
    %cst_35 = arith.constant dense<0.000000e+00> : vector<16xf32>
    %96 = vector.multi_reduction <add>, %95, %cst_35 [1] : vector<16x16xf32> to vector<16xf32>
    %97 = vector.shape_cast %96 : vector<16xf32> to vector<16x1xf32>
    %98 = tpu.reciprocal %97 {approx = true} : vector<16x1xf32> -> vector<16x1xf32>
    %99 = vector.broadcast %98 : vector<16x1xf32> to vector<16x16xf32>
    %100 = arith.mulf %95, %99 : vector<16x16xf32>
    %cst_36 = arith.constant dense<0.000000e+00> : vector<16x4xf32>
    %101 = tpu.matmul %100, %84, %cst_36 {dimension_numbers = #tpu.dot_dimension_numbers<[1], [0], [0], [1], [0, 0, 1, 1], [], []>} : vector<16x16xf32>, vector<16x4xf32>, vector<16x4xf32> -> vector<16x4xf32>
    %102 = vector.extract_strided_slice %72 {offsets = [0, 0], sizes = [4, 16], strides = [1, 1]} : vector<16x16xf32> to vector<4x16xf32>
    %cst_37 = arith.constant dense<0.000000e+00> : vector<16x16xf32>
    %103 = tpu.matmul %101, %102, %cst_37 {dimension_numbers = #tpu.dot_dimension_numbers<[1], [0], [0], [1], [0, 0, 1, 1], [], []>} : vector<16x4xf32>, vector<4x16xf32>, vector<16x16xf32> -> vector<16x16xf32>
    %104 = arith.addf %81, %103 : vector<16x16xf32>
    %105 = vector.extract_strided_slice %80 {offsets = [0, 4], sizes = [16, 4], strides = [1, 1]} : vector<16x48xf32> to vector<16x4xf32>
    %106 = vector.extract_strided_slice %80 {offsets = [0, 20], sizes = [16, 4], strides = [1, 1]} : vector<16x48xf32> to vector<16x4xf32>
    %107 = vector.extract_strided_slice %80 {offsets = [0, 36], sizes = [16, 4], strides = [1, 1]} : vector<16x48xf32> to vector<16x4xf32>
    %cst_38 = arith.constant dense<0.000000e+00> : vector<16x16xf32>
    %108 = tpu.matmul %105, %106, %cst_38 {dimension_numbers = #tpu.dot_dimension_numbers<[1], [1], [0], [0], [0, 0, 1, 0], [], []>} : vector<16x4xf32>, vector<16x4xf32>, vector<16x16xf32> -> vector<16x16xf32>
    %cst_39 = arith.constant 5.000000e-01 : f32
    %109 = vector.broadcast %cst_39 : f32 to vector<16x16xf32>
    %110 = arith.mulf %108, %109 : vector<16x16xf32>
    %cst_40 = arith.constant 0.157490134 : f32
    %111 = vector.broadcast %cst_40 : f32 to vector<16x16xf32>
    %112 = arith.mulf %79, %111 : vector<16x16xf32>
    %113 = arith.addf %110, %112 : vector<16x16xf32>
    %cst_41 = arith.constant dense<0xFF800000> : vector<16xf32>
    %114 = vector.multi_reduction <maximumf>, %113, %cst_41 [1] : vector<16x16xf32> to vector<16xf32>
    %115 = vector.shape_cast %114 : vector<16xf32> to vector<16x1xf32>
    %116 = vector.broadcast %115 : vector<16x1xf32> to vector<16x16xf32>
    %117 = arith.subf %113, %116 : vector<16x16xf32>
    %118 = math.exp %117 : vector<16x16xf32>
    %cst_42 = arith.constant dense<0.000000e+00> : vector<16xf32>
    %119 = vector.multi_reduction <add>, %118, %cst_42 [1] : vector<16x16xf32> to vector<16xf32>
    %120 = vector.shape_cast %119 : vector<16xf32> to vector<16x1xf32>
    %121 = tpu.reciprocal %120 {approx = true} : vector<16x1xf32> -> vector<16x1xf32>
    %122 = vector.broadcast %121 : vector<16x1xf32> to vector<16x16xf32>
    %123 = arith.mulf %118, %122 : vector<16x16xf32>
    %cst_43 = arith.constant dense<0.000000e+00> : vector<16x4xf32>
    %124 = tpu.matmul %123, %107, %cst_43 {dimension_numbers = #tpu.dot_dimension_numbers<[1], [0], [0], [1], [0, 0, 1, 1], [], []>} : vector<16x16xf32>, vector<16x4xf32>, vector<16x4xf32> -> vector<16x4xf32>
    %125 = vector.extract_strided_slice %72 {offsets = [4, 0], sizes = [4, 16], strides = [1, 1]} : vector<16x16xf32> to vector<4x16xf32>
    %cst_44 = arith.constant dense<0.000000e+00> : vector<16x16xf32>
    %126 = tpu.matmul %124, %125, %cst_44 {dimension_numbers = #tpu.dot_dimension_numbers<[1], [0], [0], [1], [0, 0, 1, 1], [], []>} : vector<16x4xf32>, vector<4x16xf32>, vector<16x16xf32> -> vector<16x16xf32>
    %127 = arith.addf %104, %126 : vector<16x16xf32>
    %128 = vector.extract_strided_slice %80 {offsets = [0, 8], sizes = [16, 4], strides = [1, 1]} : vector<16x48xf32> to vector<16x4xf32>
    %129 = vector.extract_strided_slice %80 {offsets = [0, 24], sizes = [16, 4], strides = [1, 1]} : vector<16x48xf32> to vector<16x4xf32>
    %130 = vector.extract_strided_slice %80 {offsets = [0, 40], sizes = [16, 4], strides = [1, 1]} : vector<16x48xf32> to vector<16x4xf32>
    %cst_45 = arith.constant dense<0.000000e+00> : vector<16x16xf32>
    %131 = tpu.matmul %128, %129, %cst_45 {dimension_numbers = #tpu.dot_dimension_numbers<[1], [1], [0], [0], [0, 0, 1, 0], [], []>} : vector<16x4xf32>, vector<16x4xf32>, vector<16x16xf32> -> vector<16x16xf32>
    %cst_46 = arith.constant 5.000000e-01 : f32
    %132 = vector.broadcast %cst_46 : f32 to vector<16x16xf32>
    %133 = arith.mulf %131, %132 : vector<16x16xf32>
    %cst_47 = arith.constant 6.250000e-02 : f32
    %134 = vector.broadcast %cst_47 : f32 to vector<16x16xf32>
    %135 = arith.mulf %79, %134 : vector<16x16xf32>
    %136 = arith.addf %133, %135 : vector<16x16xf32>
    %cst_48 = arith.constant dense<0xFF800000> : vector<16xf32>
    %137 = vector.multi_reduction <maximumf>, %136, %cst_48 [1] : vector<16x16xf32> to vector<16xf32>
    %138 = vector.shape_cast %137 : vector<16xf32> to vector<16x1xf32>
    %139 = vector.broadcast %138 : vector<16x1xf32> to vector<16x16xf32>
    %140 = arith.subf %136, %139 : vector<16x16xf32>
    %141 = math.exp %140 : vector<16x16xf32>
    %cst_49 = arith.constant dense<0.000000e+00> : vector<16xf32>
    %142 = vector.multi_reduction <add>, %141, %cst_49 [1] : vector<16x16xf32> to vector<16xf32>
    %143 = vector.shape_cast %142 : vector<16xf32> to vector<16x1xf32>
    %144 = tpu.reciprocal %143 {approx = true} : vector<16x1xf32> -> vector<16x1xf32>
    %145 = vector.broadcast %144 : vector<16x1xf32> to vector<16x16xf32>
    %146 = arith.mulf %141, %145 : vector<16x16xf32>
    %cst_50 = arith.constant dense<0.000000e+00> : vector<16x4xf32>
    %147 = tpu.matmul %146, %130, %cst_50 {dimension_numbers = #tpu.dot_dimension_numbers<[1], [0], [0], [1], [0, 0, 1, 1], [], []>} : vector<16x16xf32>, vector<16x4xf32>, vector<16x4xf32> -> vector<16x4xf32>
    %148 = vector.extract_strided_slice %72 {offsets = [8, 0], sizes = [4, 16], strides = [1, 1]} : vector<16x16xf32> to vector<4x16xf32>
    %cst_51 = arith.constant dense<0.000000e+00> : vector<16x16xf32>
    %149 = tpu.matmul %147, %148, %cst_51 {dimension_numbers = #tpu.dot_dimension_numbers<[1], [0], [0], [1], [0, 0, 1, 1], [], []>} : vector<16x4xf32>, vector<4x16xf32>, vector<16x16xf32> -> vector<16x16xf32>
    %150 = arith.addf %127, %149 : vector<16x16xf32>
    %151 = vector.extract_strided_slice %80 {offsets = [0, 12], sizes = [16, 4], strides = [1, 1]} : vector<16x48xf32> to vector<16x4xf32>
    %152 = vector.extract_strided_slice %80 {offsets = [0, 28], sizes = [16, 4], strides = [1, 1]} : vector<16x48xf32> to vector<16x4xf32>
    %153 = vector.extract_strided_slice %80 {offsets = [0, 44], sizes = [16, 4], strides = [1, 1]} : vector<16x48xf32> to vector<16x4xf32>
    %cst_52 = arith.constant dense<0.000000e+00> : vector<16x16xf32>
    %154 = tpu.matmul %151, %152, %cst_52 {dimension_numbers = #tpu.dot_dimension_numbers<[1], [1], [0], [0], [0, 0, 1, 0], [], []>} : vector<16x4xf32>, vector<16x4xf32>, vector<16x16xf32> -> vector<16x16xf32>
    %cst_53 = arith.constant 5.000000e-01 : f32
    %155 = vector.broadcast %cst_53 : f32 to vector<16x16xf32>
    %156 = arith.mulf %154, %155 : vector<16x16xf32>
    %cst_54 = arith.constant 3.906250e-03 : f32
    %157 = vector.broadcast %cst_54 : f32 to vector<16x16xf32>
    %158 = arith.mulf %79, %157 : vector<16x16xf32>
    %159 = arith.addf %156, %158 : vector<16x16xf32>
    %cst_55 = arith.constant dense<0xFF800000> : vector<16xf32>
    %160 = vector.multi_reduction <maximumf>, %159, %cst_55 [1] : vector<16x16xf32> to vector<16xf32>
    %161 = vector.shape_cast %160 : vector<16xf32> to vector<16x1xf32>
    %162 = vector.broadcast %161 : vector<16x1xf32> to vector<16x16xf32>
    %163 = arith.subf %159, %162 : vector<16x16xf32>
    %164 = math.exp %163 : vector<16x16xf32>
    %cst_56 = arith.constant dense<0.000000e+00> : vector<16xf32>
    %165 = vector.multi_reduction <add>, %164, %cst_56 [1] : vector<16x16xf32> to vector<16xf32>
    %166 = vector.shape_cast %165 : vector<16xf32> to vector<16x1xf32>
    %167 = tpu.reciprocal %166 {approx = true} : vector<16x1xf32> -> vector<16x1xf32>
    %168 = vector.broadcast %167 : vector<16x1xf32> to vector<16x16xf32>
    %169 = arith.mulf %164, %168 : vector<16x16xf32>
    %cst_57 = arith.constant dense<0.000000e+00> : vector<16x4xf32>
    %170 = tpu.matmul %169, %153, %cst_57 {dimension_numbers = #tpu.dot_dimension_numbers<[1], [0], [0], [1], [0, 0, 1, 1], [], []>} : vector<16x16xf32>, vector<16x4xf32>, vector<16x4xf32> -> vector<16x4xf32>
    %171 = vector.extract_strided_slice %72 {offsets = [12, 0], sizes = [4, 16], strides = [1, 1]} : vector<16x16xf32> to vector<4x16xf32>
    %cst_58 = arith.constant dense<0.000000e+00> : vector<16x16xf32>
    %172 = tpu.matmul %170, %171, %cst_58 {dimension_numbers = #tpu.dot_dimension_numbers<[1], [0], [0], [1], [0, 0, 1, 1], [], []>} : vector<16x4xf32>, vector<4x16xf32>, vector<16x16xf32> -> vector<16x16xf32>
    %173 = arith.addf %150, %172 : vector<16x16xf32>
    %174 = vector.extract_strided_slice %71 {offsets = [16, 0], sizes = [16, 48], strides = [1, 1]} : vector<32x48xf32> to vector<16x48xf32>
    %cst_59 = arith.constant 0.000000e+00 : f32
    %175 = vector.broadcast %cst_59 : f32 to vector<16x16xf32>
    %176 = vector.extract_strided_slice %174 {offsets = [0, 0], sizes = [16, 4], strides = [1, 1]} : vector<16x48xf32> to vector<16x4xf32>
    %177 = vector.extract_strided_slice %174 {offsets = [0, 16], sizes = [16, 4], strides = [1, 1]} : vector<16x48xf32> to vector<16x4xf32>
    %178 = vector.extract_strided_slice %174 {offsets = [0, 32], sizes = [16, 4], strides = [1, 1]} : vector<16x48xf32> to vector<16x4xf32>
    %cst_60 = arith.constant dense<0.000000e+00> : vector<16x16xf32>
    %179 = tpu.matmul %176, %177, %cst_60 {dimension_numbers = #tpu.dot_dimension_numbers<[1], [1], [0], [0], [0, 0, 1, 0], [], []>} : vector<16x4xf32>, vector<16x4xf32>, vector<16x16xf32> -> vector<16x16xf32>
    %cst_61 = arith.constant 5.000000e-01 : f32
    %180 = vector.broadcast %cst_61 : f32 to vector<16x16xf32>
    %181 = arith.mulf %179, %180 : vector<16x16xf32>
    %cst_62 = arith.constant 2.500000e-01 : f32
    %182 = vector.broadcast %cst_62 : f32 to vector<16x16xf32>
    %183 = arith.mulf %79, %182 : vector<16x16xf32>
    %184 = arith.addf %181, %183 : vector<16x16xf32>
    %cst_63 = arith.constant dense<0xFF800000> : vector<16xf32>
    %185 = vector.multi_reduction <maximumf>, %184, %cst_63 [1] : vector<16x16xf32> to vector<16xf32>
    %186 = vector.shape_cast %185 : vector<16xf32> to vector<16x1xf32>
    %187 = vector.broadcast %186 : vector<16x1xf32> to vector<16x16xf32>
    %188 = arith.subf %184, %187 : vector<16x16xf32>
    %189 = math.exp %188 : vector<16x16xf32>
    %cst_64 = arith.constant dense<0.000000e+00> : vector<16xf32>
    %190 = vector.multi_reduction <add>, %189, %cst_64 [1] : vector<16x16xf32> to vector<16xf32>
    %191 = vector.shape_cast %190 : vector<16xf32> to vector<16x1xf32>
    %192 = tpu.reciprocal %191 {approx = true} : vector<16x1xf32> -> vector<16x1xf32>
    %193 = vector.broadcast %192 : vector<16x1xf32> to vector<16x16xf32>
    %194 = arith.mulf %189, %193 : vector<16x16xf32>
    %cst_65 = arith.constant dense<0.000000e+00> : vector<16x4xf32>
    %195 = tpu.matmul %194, %178, %cst_65 {dimension_numbers = #tpu.dot_dimension_numbers<[1], [0], [0], [1], [0, 0, 1, 1], [], []>} : vector<16x16xf32>, vector<16x4xf32>, vector<16x4xf32> -> vector<16x4xf32>
    %196 = vector.extract_strided_slice %72 {offsets = [0, 0], sizes = [4, 16], strides = [1, 1]} : vector<16x16xf32> to vector<4x16xf32>
    %cst_66 = arith.constant dense<0.000000e+00> : vector<16x16xf32>
    %197 = tpu.matmul %195, %196, %cst_66 {dimension_numbers = #tpu.dot_dimension_numbers<[1], [0], [0], [1], [0, 0, 1, 1], [], []>} : vector<16x4xf32>, vector<4x16xf32>, vector<16x16xf32> -> vector<16x16xf32>
    %198 = arith.addf %175, %197 : vector<16x16xf32>
    %199 = vector.extract_strided_slice %174 {offsets = [0, 4], sizes = [16, 4], strides = [1, 1]} : vector<16x48xf32> to vector<16x4xf32>
    %200 = vector.extract_strided_slice %174 {offsets = [0, 20], sizes = [16, 4], strides = [1, 1]} : vector<16x48xf32> to vector<16x4xf32>
    %201 = vector.extract_strided_slice %174 {offsets = [0, 36], sizes = [16, 4], strides = [1, 1]} : vector<16x48xf32> to vector<16x4xf32>
    %cst_67 = arith.constant dense<0.000000e+00> : vector<16x16xf32>
    %202 = tpu.matmul %199, %200, %cst_67 {dimension_numbers = #tpu.dot_dimension_numbers<[1], [1], [0], [0], [0, 0, 1, 0], [], []>} : vector<16x4xf32>, vector<16x4xf32>, vector<16x16xf32> -> vector<16x16xf32>
    %cst_68 = arith.constant 5.000000e-01 : f32
    %203 = vector.broadcast %cst_68 : f32 to vector<16x16xf32>
    %204 = arith.mulf %202, %203 : vector<16x16xf32>
    %cst_69 = arith.constant 0.157490134 : f32
    %205 = vector.broadcast %cst_69 : f32 to vector<16x16xf32>
    %206 = arith.mulf %79, %205 : vector<16x16xf32>
    %207 = arith.addf %204, %206 : vector<16x16xf32>
    %cst_70 = arith.constant dense<0xFF800000> : vector<16xf32>
    %208 = vector.multi_reduction <maximumf>, %207, %cst_70 [1] : vector<16x16xf32> to vector<16xf32>
    %209 = vector.shape_cast %208 : vector<16xf32> to vector<16x1xf32>
    %210 = vector.broadcast %209 : vector<16x1xf32> to vector<16x16xf32>
    %211 = arith.subf %207, %210 : vector<16x16xf32>
    %212 = math.exp %211 : vector<16x16xf32>
    %cst_71 = arith.constant dense<0.000000e+00> : vector<16xf32>
    %213 = vector.multi_reduction <add>, %212, %cst_71 [1] : vector<16x16xf32> to vector<16xf32>
    %214 = vector.shape_cast %213 : vector<16xf32> to vector<16x1xf32>
    %215 = tpu.reciprocal %214 {approx = true} : vector<16x1xf32> -> vector<16x1xf32>
    %216 = vector.broadcast %215 : vector<16x1xf32> to vector<16x16xf32>
    %217 = arith.mulf %212, %216 : vector<16x16xf32>
    %cst_72 = arith.constant dense<0.000000e+00> : vector<16x4xf32>
    %218 = tpu.matmul %217, %201, %cst_72 {dimension_numbers = #tpu.dot_dimension_numbers<[1], [0], [0], [1], [0, 0, 1, 1], [], []>} : vector<16x16xf32>, vector<16x4xf32>, vector<16x4xf32> -> vector<16x4xf32>
    %219 = vector.extract_strided_slice %72 {offsets = [4, 0], sizes = [4, 16], strides = [1, 1]} : vector<16x16xf32> to vector<4x16xf32>
    %cst_73 = arith.constant dense<0.000000e+00> : vector<16x16xf32>
    %220 = tpu.matmul %218, %219, %cst_73 {dimension_numbers = #tpu.dot_dimension_numbers<[1], [0], [0], [1], [0, 0, 1, 1], [], []>} : vector<16x4xf32>, vector<4x16xf32>, vector<16x16xf32> -> vector<16x16xf32>
    %221 = arith.addf %198, %220 : vector<16x16xf32>
    %222 = vector.extract_strided_slice %174 {offsets = [0, 8], sizes = [16, 4], strides = [1, 1]} : vector<16x48xf32> to vector<16x4xf32>
    %223 = vector.extract_strided_slice %174 {offsets = [0, 24], sizes = [16, 4], strides = [1, 1]} : vector<16x48xf32> to vector<16x4xf32>
    %224 = vector.extract_strided_slice %174 {offsets = [0, 40], sizes = [16, 4], strides = [1, 1]} : vector<16x48xf32> to vector<16x4xf32>
    %cst_74 = arith.constant dense<0.000000e+00> : vector<16x16xf32>
    %225 = tpu.matmul %222, %223, %cst_74 {dimension_numbers = #tpu.dot_dimension_numbers<[1], [1], [0], [0], [0, 0, 1, 0], [], []>} : vector<16x4xf32>, vector<16x4xf32>, vector<16x16xf32> -> vector<16x16xf32>
    %cst_75 = arith.constant 5.000000e-01 : f32
    %226 = vector.broadcast %cst_75 : f32 to vector<16x16xf32>
    %227 = arith.mulf %225, %226 : vector<16x16xf32>
    %cst_76 = arith.constant 6.250000e-02 : f32
    %228 = vector.broadcast %cst_76 : f32 to vector<16x16xf32>
    %229 = arith.mulf %79, %228 : vector<16x16xf32>
    %230 = arith.addf %227, %229 : vector<16x16xf32>
    %cst_77 = arith.constant dense<0xFF800000> : vector<16xf32>
    %231 = vector.multi_reduction <maximumf>, %230, %cst_77 [1] : vector<16x16xf32> to vector<16xf32>
    %232 = vector.shape_cast %231 : vector<16xf32> to vector<16x1xf32>
    %233 = vector.broadcast %232 : vector<16x1xf32> to vector<16x16xf32>
    %234 = arith.subf %230, %233 : vector<16x16xf32>
    %235 = math.exp %234 : vector<16x16xf32>
    %cst_78 = arith.constant dense<0.000000e+00> : vector<16xf32>
    %236 = vector.multi_reduction <add>, %235, %cst_78 [1] : vector<16x16xf32> to vector<16xf32>
    %237 = vector.shape_cast %236 : vector<16xf32> to vector<16x1xf32>
    %238 = tpu.reciprocal %237 {approx = true} : vector<16x1xf32> -> vector<16x1xf32>
    %239 = vector.broadcast %238 : vector<16x1xf32> to vector<16x16xf32>
    %240 = arith.mulf %235, %239 : vector<16x16xf32>
    %cst_79 = arith.constant dense<0.000000e+00> : vector<16x4xf32>
    %241 = tpu.matmul %240, %224, %cst_79 {dimension_numbers = #tpu.dot_dimension_numbers<[1], [0], [0], [1], [0, 0, 1, 1], [], []>} : vector<16x16xf32>, vector<16x4xf32>, vector<16x4xf32> -> vector<16x4xf32>
    %242 = vector.extract_strided_slice %72 {offsets = [8, 0], sizes = [4, 16], strides = [1, 1]} : vector<16x16xf32> to vector<4x16xf32>
    %cst_80 = arith.constant dense<0.000000e+00> : vector<16x16xf32>
    %243 = tpu.matmul %241, %242, %cst_80 {dimension_numbers = #tpu.dot_dimension_numbers<[1], [0], [0], [1], [0, 0, 1, 1], [], []>} : vector<16x4xf32>, vector<4x16xf32>, vector<16x16xf32> -> vector<16x16xf32>
    %244 = arith.addf %221, %243 : vector<16x16xf32>
    %245 = vector.extract_strided_slice %174 {offsets = [0, 12], sizes = [16, 4], strides = [1, 1]} : vector<16x48xf32> to vector<16x4xf32>
    %246 = vector.extract_strided_slice %174 {offsets = [0, 28], sizes = [16, 4], strides = [1, 1]} : vector<16x48xf32> to vector<16x4xf32>
    %247 = vector.extract_strided_slice %174 {offsets = [0, 44], sizes = [16, 4], strides = [1, 1]} : vector<16x48xf32> to vector<16x4xf32>
    %cst_81 = arith.constant dense<0.000000e+00> : vector<16x16xf32>
    %248 = tpu.matmul %245, %246, %cst_81 {dimension_numbers = #tpu.dot_dimension_numbers<[1], [1], [0], [0], [0, 0, 1, 0], [], []>} : vector<16x4xf32>, vector<16x4xf32>, vector<16x16xf32> -> vector<16x16xf32>
    %cst_82 = arith.constant 5.000000e-01 : f32
    %249 = vector.broadcast %cst_82 : f32 to vector<16x16xf32>
    %250 = arith.mulf %248, %249 : vector<16x16xf32>
    %cst_83 = arith.constant 3.906250e-03 : f32
    %251 = vector.broadcast %cst_83 : f32 to vector<16x16xf32>
    %252 = arith.mulf %79, %251 : vector<16x16xf32>
    %253 = arith.addf %250, %252 : vector<16x16xf32>
    %cst_84 = arith.constant dense<0xFF800000> : vector<16xf32>
    %254 = vector.multi_reduction <maximumf>, %253, %cst_84 [1] : vector<16x16xf32> to vector<16xf32>
    %255 = vector.shape_cast %254 : vector<16xf32> to vector<16x1xf32>
    %256 = vector.broadcast %255 : vector<16x1xf32> to vector<16x16xf32>
    %257 = arith.subf %253, %256 : vector<16x16xf32>
    %258 = math.exp %257 : vector<16x16xf32>
    %cst_85 = arith.constant dense<0.000000e+00> : vector<16xf32>
    %259 = vector.multi_reduction <add>, %258, %cst_85 [1] : vector<16x16xf32> to vector<16xf32>
    %260 = vector.shape_cast %259 : vector<16xf32> to vector<16x1xf32>
    %261 = tpu.reciprocal %260 {approx = true} : vector<16x1xf32> -> vector<16x1xf32>
    %262 = vector.broadcast %261 : vector<16x1xf32> to vector<16x16xf32>
    %263 = arith.mulf %258, %262 : vector<16x16xf32>
    %cst_86 = arith.constant dense<0.000000e+00> : vector<16x4xf32>
    %264 = tpu.matmul %263, %247, %cst_86 {dimension_numbers = #tpu.dot_dimension_numbers<[1], [0], [0], [1], [0, 0, 1, 1], [], []>} : vector<16x16xf32>, vector<16x4xf32>, vector<16x4xf32> -> vector<16x4xf32>
    %265 = vector.extract_strided_slice %72 {offsets = [12, 0], sizes = [4, 16], strides = [1, 1]} : vector<16x16xf32> to vector<4x16xf32>
    %cst_87 = arith.constant dense<0.000000e+00> : vector<16x16xf32>
    %266 = tpu.matmul %264, %265, %cst_87 {dimension_numbers = #tpu.dot_dimension_numbers<[1], [0], [0], [1], [0, 0, 1, 1], [], []>} : vector<16x4xf32>, vector<4x16xf32>, vector<16x16xf32> -> vector<16x16xf32>
    %267 = arith.addf %244, %266 : vector<16x16xf32>
    %268 = tpu.concatenate %173, %267 in 0 : vector<16x16xf32>, vector<16x16xf32> -> vector<32x16xf32>
    %269 = arith.addf %45, %268 : vector<32x16xf32>
    %c264 = arith.constant 264 : index
    %c0_88 = arith.constant 0 : index
    %270 = vector.load %arg2[%c264, %c0_88] : memref<280x64xf32, #tpu.memory_space<vmem>>, vector<16x2xf32>
    %271 = vector.extract_strided_slice %270 {offsets = [0, 0], sizes = [16, 1], strides = [1, 1]} : vector<16x2xf32> to vector<16x1xf32>
    %272 = vector.extract_strided_slice %270 {offsets = [0, 1], sizes = [16, 1], strides = [1, 1]} : vector<16x2xf32> to vector<16x1xf32>
    %273 = vector.extract_strided_slice %269 {offsets = [0, 0], sizes = [16, 16], strides = [1, 1]} : vector<32x16xf32> to vector<16x16xf32>
    %cst_89 = arith.constant dense<0.000000e+00> : vector<16xf32>
    %274 = vector.multi_reduction <add>, %273, %cst_89 [0] : vector<16x16xf32> to vector<16xf32>
    %275 = vector.shape_cast %274 : vector<16xf32> to vector<1x16xf32>
    %cst_90 = arith.constant 1.600000e+01 : f32
    %276 = vector.broadcast %cst_90 : f32 to vector<1x16xf32>
    %277 = arith.divf %275, %276 : vector<1x16xf32>
    %278 = vector.broadcast %277 : vector<1x16xf32> to vector<16x16xf32>
    %279 = arith.subf %273, %278 : vector<16x16xf32>
    %280 = arith.mulf %279, %279 : vector<16x16xf32>
    %cst_91 = arith.constant dense<0.000000e+00> : vector<16xf32>
    %281 = vector.multi_reduction <add>, %280, %cst_91 [0] : vector<16x16xf32> to vector<16xf32>
    %282 = vector.shape_cast %281 : vector<16xf32> to vector<1x16xf32>
    %cst_92 = arith.constant 1.600000e+01 : f32
    %283 = vector.broadcast %cst_92 : f32 to vector<1x16xf32>
    %284 = arith.divf %282, %283 : vector<1x16xf32>
    %285 = vector.broadcast %277 : vector<1x16xf32> to vector<16x16xf32>
    %286 = arith.subf %273, %285 : vector<16x16xf32>
    %cst_93 = arith.constant 9.99999974E-6 : f32
    %287 = vector.broadcast %cst_93 : f32 to vector<1x16xf32>
    %288 = arith.addf %284, %287 : vector<1x16xf32>
    %289 = math.rsqrt %288 : vector<1x16xf32>
    %290 = vector.broadcast %289 : vector<1x16xf32> to vector<16x16xf32>
    %291 = arith.mulf %286, %290 : vector<16x16xf32>
    %292 = vector.broadcast %271 : vector<16x1xf32> to vector<16x16xf32>
    %293 = arith.mulf %291, %292 : vector<16x16xf32>
    %294 = vector.broadcast %272 : vector<16x1xf32> to vector<16x16xf32>
    %295 = arith.addf %293, %294 : vector<16x16xf32>
    %296 = vector.extract_strided_slice %269 {offsets = [16, 0], sizes = [16, 16], strides = [1, 1]} : vector<32x16xf32> to vector<16x16xf32>
    %cst_94 = arith.constant dense<0.000000e+00> : vector<16xf32>
    %297 = vector.multi_reduction <add>, %296, %cst_94 [0] : vector<16x16xf32> to vector<16xf32>
    %298 = vector.shape_cast %297 : vector<16xf32> to vector<1x16xf32>
    %cst_95 = arith.constant 1.600000e+01 : f32
    %299 = vector.broadcast %cst_95 : f32 to vector<1x16xf32>
    %300 = arith.divf %298, %299 : vector<1x16xf32>
    %301 = vector.broadcast %300 : vector<1x16xf32> to vector<16x16xf32>
    %302 = arith.subf %296, %301 : vector<16x16xf32>
    %303 = arith.mulf %302, %302 : vector<16x16xf32>
    %cst_96 = arith.constant dense<0.000000e+00> : vector<16xf32>
    %304 = vector.multi_reduction <add>, %303, %cst_96 [0] : vector<16x16xf32> to vector<16xf32>
    %305 = vector.shape_cast %304 : vector<16xf32> to vector<1x16xf32>
    %cst_97 = arith.constant 1.600000e+01 : f32
    %306 = vector.broadcast %cst_97 : f32 to vector<1x16xf32>
    %307 = arith.divf %305, %306 : vector<1x16xf32>
    %308 = vector.broadcast %300 : vector<1x16xf32> to vector<16x16xf32>
    %309 = arith.subf %296, %308 : vector<16x16xf32>
    %cst_98 = arith.constant 9.99999974E-6 : f32
    %310 = vector.broadcast %cst_98 : f32 to vector<1x16xf32>
    %311 = arith.addf %307, %310 : vector<1x16xf32>
    %312 = math.rsqrt %311 : vector<1x16xf32>
    %313 = vector.broadcast %312 : vector<1x16xf32> to vector<16x16xf32>
    %314 = arith.mulf %309, %313 : vector<16x16xf32>
    %315 = vector.broadcast %271 : vector<16x1xf32> to vector<16x16xf32>
    %316 = arith.mulf %314, %315 : vector<16x16xf32>
    %317 = vector.broadcast %272 : vector<16x1xf32> to vector<16x16xf32>
    %318 = arith.addf %316, %317 : vector<16x16xf32>
    %319 = tpu.concatenate %295, %318 in 0 : vector<16x16xf32>, vector<16x16xf32> -> vector<32x16xf32>
    %c192 = arith.constant 192 : index
    %c0_99 = arith.constant 0 : index
    %320 = vector.load %arg2[%c192, %c0_99] : memref<280x64xf32, #tpu.memory_space<vmem>>, vector<16x16xf32>
    %cst_100 = arith.constant dense<0.000000e+00> : vector<32x16xf32>
    %321 = tpu.matmul %319, %320, %cst_100 {dimension_numbers = #tpu.dot_dimension_numbers<[1], [0], [0], [1], [0, 0, 1, 1], [], []>} : vector<32x16xf32>, vector<16x16xf32>, vector<32x16xf32> -> vector<32x16xf32>
    %c6 = arith.constant 6 : index
    %c0_101 = arith.constant 0 : index
    %322 = vector.load %arg3[%c6, %c0_101] : memref<24x64xf32, #tpu.memory_space<vmem>>, vector<1x16xf32>
    %323 = vector.broadcast %322 : vector<1x16xf32> to vector<32x16xf32>
    %324 = arith.addf %321, %323 : vector<32x16xf32>
    %c208 = arith.constant 208 : index
    %c0_102 = arith.constant 0 : index
    %325 = vector.load %arg2[%c208, %c0_102] : memref<280x64xf32, #tpu.memory_space<vmem>>, vector<16x16xf32>
    %cst_103 = arith.constant dense<0.000000e+00> : vector<32x16xf32>
    %326 = tpu.matmul %319, %325, %cst_103 {dimension_numbers = #tpu.dot_dimension_numbers<[1], [0], [0], [1], [0, 0, 1, 1], [], []>} : vector<32x16xf32>, vector<16x16xf32>, vector<32x16xf32> -> vector<32x16xf32>
    %c7 = arith.constant 7 : index
    %c0_104 = arith.constant 0 : index
    %327 = vector.load %arg3[%c7, %c0_104] : memref<24x64xf32, #tpu.memory_space<vmem>>, vector<1x16xf32>
    %328 = vector.broadcast %327 : vector<1x16xf32> to vector<32x16xf32>
    %329 = arith.addf %326, %328 : vector<32x16xf32>
    %cst_105 = arith.constant 0.000000e+00 : f32
    %330 = vector.broadcast %cst_105 : f32 to vector<32x16xf32>
    %331 = arith.subf %330, %329 : vector<32x16xf32>
    %332 = math.exp %331 : vector<32x16xf32>
    %cst_106 = arith.constant 1.000000e+00 : f32
    %333 = vector.broadcast %cst_106 : f32 to vector<32x16xf32>
    %334 = arith.addf %333, %332 : vector<32x16xf32>
    %cst_107 = arith.constant 1.000000e+00 : f32
    %335 = vector.broadcast %cst_107 : f32 to vector<32x16xf32>
    %336 = arith.divf %335, %334 : vector<32x16xf32>
    %337 = arith.mulf %324, %336 : vector<32x16xf32>
    %c240 = arith.constant 240 : index
    %c0_108 = arith.constant 0 : index
    %338 = vector.load %arg2[%c240, %c0_108] : memref<280x64xf32, #tpu.memory_space<vmem>>, vector<17x16xf32>
    %cst_109 = arith.constant 0.000000e+00 : f32
    %339 = vector.broadcast %cst_109 : f32 to vector<8x16xf32>
    %340 = vector.extract_strided_slice %337 {offsets = [0, 0], sizes = [16, 16], strides = [1, 1]} : vector<32x16xf32> to vector<16x16xf32>
    %341 = tpu.concatenate %339, %340, %339 in 0 : vector<8x16xf32>, vector<16x16xf32>, vector<8x16xf32> -> vector<32x16xf32>
    %cst_110 = arith.constant 0.000000e+00 : f32
    %342 = vector.broadcast %cst_110 : f32 to vector<16x16xf32>
    %343 = vector.extract_strided_slice %338 {offsets = [0, 0], sizes = [1, 16], strides = [1, 1]} : vector<17x16xf32> to vector<1x16xf32>
    %344 = vector.extract_strided_slice %341 {offsets = [0, 0], sizes = [16, 16], strides = [1, 1]} : vector<32x16xf32> to vector<16x16xf32>
    %345 = vector.broadcast %343 : vector<1x16xf32> to vector<16x16xf32>
    %346 = arith.mulf %345, %344 : vector<16x16xf32>
    %347 = arith.addf %342, %346 : vector<16x16xf32>
    %348 = vector.extract_strided_slice %338 {offsets = [1, 0], sizes = [1, 16], strides = [1, 1]} : vector<17x16xf32> to vector<1x16xf32>
    %349 = vector.extract_strided_slice %341 {offsets = [1, 0], sizes = [16, 16], strides = [1, 1]} : vector<32x16xf32> to vector<16x16xf32>
    %350 = vector.broadcast %348 : vector<1x16xf32> to vector<16x16xf32>
    %351 = arith.mulf %350, %349 : vector<16x16xf32>
    %352 = arith.addf %347, %351 : vector<16x16xf32>
    %353 = vector.extract_strided_slice %338 {offsets = [2, 0], sizes = [1, 16], strides = [1, 1]} : vector<17x16xf32> to vector<1x16xf32>
    %354 = vector.extract_strided_slice %341 {offsets = [2, 0], sizes = [16, 16], strides = [1, 1]} : vector<32x16xf32> to vector<16x16xf32>
    %355 = vector.broadcast %353 : vector<1x16xf32> to vector<16x16xf32>
    %356 = arith.mulf %355, %354 : vector<16x16xf32>
    %357 = arith.addf %352, %356 : vector<16x16xf32>
    %358 = vector.extract_strided_slice %338 {offsets = [3, 0], sizes = [1, 16], strides = [1, 1]} : vector<17x16xf32> to vector<1x16xf32>
    %359 = vector.extract_strided_slice %341 {offsets = [3, 0], sizes = [16, 16], strides = [1, 1]} : vector<32x16xf32> to vector<16x16xf32>
    %360 = vector.broadcast %358 : vector<1x16xf32> to vector<16x16xf32>
    %361 = arith.mulf %360, %359 : vector<16x16xf32>
    %362 = arith.addf %357, %361 : vector<16x16xf32>
    %363 = vector.extract_strided_slice %338 {offsets = [4, 0], sizes = [1, 16], strides = [1, 1]} : vector<17x16xf32> to vector<1x16xf32>
    %364 = vector.extract_strided_slice %341 {offsets = [4, 0], sizes = [16, 16], strides = [1, 1]} : vector<32x16xf32> to vector<16x16xf32>
    %365 = vector.broadcast %363 : vector<1x16xf32> to vector<16x16xf32>
    %366 = arith.mulf %365, %364 : vector<16x16xf32>
    %367 = arith.addf %362, %366 : vector<16x16xf32>
    %368 = vector.extract_strided_slice %338 {offsets = [5, 0], sizes = [1, 16], strides = [1, 1]} : vector<17x16xf32> to vector<1x16xf32>
    %369 = vector.extract_strided_slice %341 {offsets = [5, 0], sizes = [16, 16], strides = [1, 1]} : vector<32x16xf32> to vector<16x16xf32>
    %370 = vector.broadcast %368 : vector<1x16xf32> to vector<16x16xf32>
    %371 = arith.mulf %370, %369 : vector<16x16xf32>
    %372 = arith.addf %367, %371 : vector<16x16xf32>
    %373 = vector.extract_strided_slice %338 {offsets = [6, 0], sizes = [1, 16], strides = [1, 1]} : vector<17x16xf32> to vector<1x16xf32>
    %374 = vector.extract_strided_slice %341 {offsets = [6, 0], sizes = [16, 16], strides = [1, 1]} : vector<32x16xf32> to vector<16x16xf32>
    %375 = vector.broadcast %373 : vector<1x16xf32> to vector<16x16xf32>
    %376 = arith.mulf %375, %374 : vector<16x16xf32>
    %377 = arith.addf %372, %376 : vector<16x16xf32>
    %378 = vector.extract_strided_slice %338 {offsets = [7, 0], sizes = [1, 16], strides = [1, 1]} : vector<17x16xf32> to vector<1x16xf32>
    %379 = vector.extract_strided_slice %341 {offsets = [7, 0], sizes = [16, 16], strides = [1, 1]} : vector<32x16xf32> to vector<16x16xf32>
    %380 = vector.broadcast %378 : vector<1x16xf32> to vector<16x16xf32>
    %381 = arith.mulf %380, %379 : vector<16x16xf32>
    %382 = arith.addf %377, %381 : vector<16x16xf32>
    %383 = vector.extract_strided_slice %338 {offsets = [8, 0], sizes = [1, 16], strides = [1, 1]} : vector<17x16xf32> to vector<1x16xf32>
    %384 = vector.extract_strided_slice %341 {offsets = [8, 0], sizes = [16, 16], strides = [1, 1]} : vector<32x16xf32> to vector<16x16xf32>
    %385 = vector.broadcast %383 : vector<1x16xf32> to vector<16x16xf32>
    %386 = arith.mulf %385, %384 : vector<16x16xf32>
    %387 = arith.addf %382, %386 : vector<16x16xf32>
    %388 = vector.extract_strided_slice %338 {offsets = [9, 0], sizes = [1, 16], strides = [1, 1]} : vector<17x16xf32> to vector<1x16xf32>
    %389 = vector.extract_strided_slice %341 {offsets = [9, 0], sizes = [16, 16], strides = [1, 1]} : vector<32x16xf32> to vector<16x16xf32>
    %390 = vector.broadcast %388 : vector<1x16xf32> to vector<16x16xf32>
    %391 = arith.mulf %390, %389 : vector<16x16xf32>
    %392 = arith.addf %387, %391 : vector<16x16xf32>
    %393 = vector.extract_strided_slice %338 {offsets = [10, 0], sizes = [1, 16], strides = [1, 1]} : vector<17x16xf32> to vector<1x16xf32>
    %394 = vector.extract_strided_slice %341 {offsets = [10, 0], sizes = [16, 16], strides = [1, 1]} : vector<32x16xf32> to vector<16x16xf32>
    %395 = vector.broadcast %393 : vector<1x16xf32> to vector<16x16xf32>
    %396 = arith.mulf %395, %394 : vector<16x16xf32>
    %397 = arith.addf %392, %396 : vector<16x16xf32>
    %398 = vector.extract_strided_slice %338 {offsets = [11, 0], sizes = [1, 16], strides = [1, 1]} : vector<17x16xf32> to vector<1x16xf32>
    %399 = vector.extract_strided_slice %341 {offsets = [11, 0], sizes = [16, 16], strides = [1, 1]} : vector<32x16xf32> to vector<16x16xf32>
    %400 = vector.broadcast %398 : vector<1x16xf32> to vector<16x16xf32>
    %401 = arith.mulf %400, %399 : vector<16x16xf32>
    %402 = arith.addf %397, %401 : vector<16x16xf32>
    %403 = vector.extract_strided_slice %338 {offsets = [12, 0], sizes = [1, 16], strides = [1, 1]} : vector<17x16xf32> to vector<1x16xf32>
    %404 = vector.extract_strided_slice %341 {offsets = [12, 0], sizes = [16, 16], strides = [1, 1]} : vector<32x16xf32> to vector<16x16xf32>
    %405 = vector.broadcast %403 : vector<1x16xf32> to vector<16x16xf32>
    %406 = arith.mulf %405, %404 : vector<16x16xf32>
    %407 = arith.addf %402, %406 : vector<16x16xf32>
    %408 = vector.extract_strided_slice %338 {offsets = [13, 0], sizes = [1, 16], strides = [1, 1]} : vector<17x16xf32> to vector<1x16xf32>
    %409 = vector.extract_strided_slice %341 {offsets = [13, 0], sizes = [16, 16], strides = [1, 1]} : vector<32x16xf32> to vector<16x16xf32>
    %410 = vector.broadcast %408 : vector<1x16xf32> to vector<16x16xf32>
    %411 = arith.mulf %410, %409 : vector<16x16xf32>
    %412 = arith.addf %407, %411 : vector<16x16xf32>
    %413 = vector.extract_strided_slice %338 {offsets = [14, 0], sizes = [1, 16], strides = [1, 1]} : vector<17x16xf32> to vector<1x16xf32>
    %414 = vector.extract_strided_slice %341 {offsets = [14, 0], sizes = [16, 16], strides = [1, 1]} : vector<32x16xf32> to vector<16x16xf32>
    %415 = vector.broadcast %413 : vector<1x16xf32> to vector<16x16xf32>
    %416 = arith.mulf %415, %414 : vector<16x16xf32>
    %417 = arith.addf %412, %416 : vector<16x16xf32>
    %418 = vector.extract_strided_slice %338 {offsets = [15, 0], sizes = [1, 16], strides = [1, 1]} : vector<17x16xf32> to vector<1x16xf32>
    %419 = vector.extract_strided_slice %341 {offsets = [15, 0], sizes = [16, 16], strides = [1, 1]} : vector<32x16xf32> to vector<16x16xf32>
    %420 = vector.broadcast %418 : vector<1x16xf32> to vector<16x16xf32>
    %421 = arith.mulf %420, %419 : vector<16x16xf32>
    %422 = arith.addf %417, %421 : vector<16x16xf32>
    %423 = vector.extract_strided_slice %338 {offsets = [16, 0], sizes = [1, 16], strides = [1, 1]} : vector<17x16xf32> to vector<1x16xf32>
    %424 = vector.extract_strided_slice %341 {offsets = [16, 0], sizes = [16, 16], strides = [1, 1]} : vector<32x16xf32> to vector<16x16xf32>
    %425 = vector.broadcast %423 : vector<1x16xf32> to vector<16x16xf32>
    %426 = arith.mulf %425, %424 : vector<16x16xf32>
    %427 = arith.addf %422, %426 : vector<16x16xf32>
    %428 = vector.extract_strided_slice %337 {offsets = [16, 0], sizes = [16, 16], strides = [1, 1]} : vector<32x16xf32> to vector<16x16xf32>
    %429 = tpu.concatenate %339, %428, %339 in 0 : vector<8x16xf32>, vector<16x16xf32>, vector<8x16xf32> -> vector<32x16xf32>
    %cst_111 = arith.constant 0.000000e+00 : f32
    %430 = vector.broadcast %cst_111 : f32 to vector<16x16xf32>
    %431 = vector.extract_strided_slice %338 {offsets = [0, 0], sizes = [1, 16], strides = [1, 1]} : vector<17x16xf32> to vector<1x16xf32>
    %432 = vector.extract_strided_slice %429 {offsets = [0, 0], sizes = [16, 16], strides = [1, 1]} : vector<32x16xf32> to vector<16x16xf32>
    %433 = vector.broadcast %431 : vector<1x16xf32> to vector<16x16xf32>
    %434 = arith.mulf %433, %432 : vector<16x16xf32>
    %435 = arith.addf %430, %434 : vector<16x16xf32>
    %436 = vector.extract_strided_slice %338 {offsets = [1, 0], sizes = [1, 16], strides = [1, 1]} : vector<17x16xf32> to vector<1x16xf32>
    %437 = vector.extract_strided_slice %429 {offsets = [1, 0], sizes = [16, 16], strides = [1, 1]} : vector<32x16xf32> to vector<16x16xf32>
    %438 = vector.broadcast %436 : vector<1x16xf32> to vector<16x16xf32>
    %439 = arith.mulf %438, %437 : vector<16x16xf32>
    %440 = arith.addf %435, %439 : vector<16x16xf32>
    %441 = vector.extract_strided_slice %338 {offsets = [2, 0], sizes = [1, 16], strides = [1, 1]} : vector<17x16xf32> to vector<1x16xf32>
    %442 = vector.extract_strided_slice %429 {offsets = [2, 0], sizes = [16, 16], strides = [1, 1]} : vector<32x16xf32> to vector<16x16xf32>
    %443 = vector.broadcast %441 : vector<1x16xf32> to vector<16x16xf32>
    %444 = arith.mulf %443, %442 : vector<16x16xf32>
    %445 = arith.addf %440, %444 : vector<16x16xf32>
    %446 = vector.extract_strided_slice %338 {offsets = [3, 0], sizes = [1, 16], strides = [1, 1]} : vector<17x16xf32> to vector<1x16xf32>
    %447 = vector.extract_strided_slice %429 {offsets = [3, 0], sizes = [16, 16], strides = [1, 1]} : vector<32x16xf32> to vector<16x16xf32>
    %448 = vector.broadcast %446 : vector<1x16xf32> to vector<16x16xf32>
    %449 = arith.mulf %448, %447 : vector<16x16xf32>
    %450 = arith.addf %445, %449 : vector<16x16xf32>
    %451 = vector.extract_strided_slice %338 {offsets = [4, 0], sizes = [1, 16], strides = [1, 1]} : vector<17x16xf32> to vector<1x16xf32>
    %452 = vector.extract_strided_slice %429 {offsets = [4, 0], sizes = [16, 16], strides = [1, 1]} : vector<32x16xf32> to vector<16x16xf32>
    %453 = vector.broadcast %451 : vector<1x16xf32> to vector<16x16xf32>
    %454 = arith.mulf %453, %452 : vector<16x16xf32>
    %455 = arith.addf %450, %454 : vector<16x16xf32>
    %456 = vector.extract_strided_slice %338 {offsets = [5, 0], sizes = [1, 16], strides = [1, 1]} : vector<17x16xf32> to vector<1x16xf32>
    %457 = vector.extract_strided_slice %429 {offsets = [5, 0], sizes = [16, 16], strides = [1, 1]} : vector<32x16xf32> to vector<16x16xf32>
    %458 = vector.broadcast %456 : vector<1x16xf32> to vector<16x16xf32>
    %459 = arith.mulf %458, %457 : vector<16x16xf32>
    %460 = arith.addf %455, %459 : vector<16x16xf32>
    %461 = vector.extract_strided_slice %338 {offsets = [6, 0], sizes = [1, 16], strides = [1, 1]} : vector<17x16xf32> to vector<1x16xf32>
    %462 = vector.extract_strided_slice %429 {offsets = [6, 0], sizes = [16, 16], strides = [1, 1]} : vector<32x16xf32> to vector<16x16xf32>
    %463 = vector.broadcast %461 : vector<1x16xf32> to vector<16x16xf32>
    %464 = arith.mulf %463, %462 : vector<16x16xf32>
    %465 = arith.addf %460, %464 : vector<16x16xf32>
    %466 = vector.extract_strided_slice %338 {offsets = [7, 0], sizes = [1, 16], strides = [1, 1]} : vector<17x16xf32> to vector<1x16xf32>
    %467 = vector.extract_strided_slice %429 {offsets = [7, 0], sizes = [16, 16], strides = [1, 1]} : vector<32x16xf32> to vector<16x16xf32>
    %468 = vector.broadcast %466 : vector<1x16xf32> to vector<16x16xf32>
    %469 = arith.mulf %468, %467 : vector<16x16xf32>
    %470 = arith.addf %465, %469 : vector<16x16xf32>
    %471 = vector.extract_strided_slice %338 {offsets = [8, 0], sizes = [1, 16], strides = [1, 1]} : vector<17x16xf32> to vector<1x16xf32>
    %472 = vector.extract_strided_slice %429 {offsets = [8, 0], sizes = [16, 16], strides = [1, 1]} : vector<32x16xf32> to vector<16x16xf32>
    %473 = vector.broadcast %471 : vector<1x16xf32> to vector<16x16xf32>
    %474 = arith.mulf %473, %472 : vector<16x16xf32>
    %475 = arith.addf %470, %474 : vector<16x16xf32>
    %476 = vector.extract_strided_slice %338 {offsets = [9, 0], sizes = [1, 16], strides = [1, 1]} : vector<17x16xf32> to vector<1x16xf32>
    %477 = vector.extract_strided_slice %429 {offsets = [9, 0], sizes = [16, 16], strides = [1, 1]} : vector<32x16xf32> to vector<16x16xf32>
    %478 = vector.broadcast %476 : vector<1x16xf32> to vector<16x16xf32>
    %479 = arith.mulf %478, %477 : vector<16x16xf32>
    %480 = arith.addf %475, %479 : vector<16x16xf32>
    %481 = vector.extract_strided_slice %338 {offsets = [10, 0], sizes = [1, 16], strides = [1, 1]} : vector<17x16xf32> to vector<1x16xf32>
    %482 = vector.extract_strided_slice %429 {offsets = [10, 0], sizes = [16, 16], strides = [1, 1]} : vector<32x16xf32> to vector<16x16xf32>
    %483 = vector.broadcast %481 : vector<1x16xf32> to vector<16x16xf32>
    %484 = arith.mulf %483, %482 : vector<16x16xf32>
    %485 = arith.addf %480, %484 : vector<16x16xf32>
    %486 = vector.extract_strided_slice %338 {offsets = [11, 0], sizes = [1, 16], strides = [1, 1]} : vector<17x16xf32> to vector<1x16xf32>
    %487 = vector.extract_strided_slice %429 {offsets = [11, 0], sizes = [16, 16], strides = [1, 1]} : vector<32x16xf32> to vector<16x16xf32>
    %488 = vector.broadcast %486 : vector<1x16xf32> to vector<16x16xf32>
    %489 = arith.mulf %488, %487 : vector<16x16xf32>
    %490 = arith.addf %485, %489 : vector<16x16xf32>
    %491 = vector.extract_strided_slice %338 {offsets = [12, 0], sizes = [1, 16], strides = [1, 1]} : vector<17x16xf32> to vector<1x16xf32>
    %492 = vector.extract_strided_slice %429 {offsets = [12, 0], sizes = [16, 16], strides = [1, 1]} : vector<32x16xf32> to vector<16x16xf32>
    %493 = vector.broadcast %491 : vector<1x16xf32> to vector<16x16xf32>
    %494 = arith.mulf %493, %492 : vector<16x16xf32>
    %495 = arith.addf %490, %494 : vector<16x16xf32>
    %496 = vector.extract_strided_slice %338 {offsets = [13, 0], sizes = [1, 16], strides = [1, 1]} : vector<17x16xf32> to vector<1x16xf32>
    %497 = vector.extract_strided_slice %429 {offsets = [13, 0], sizes = [16, 16], strides = [1, 1]} : vector<32x16xf32> to vector<16x16xf32>
    %498 = vector.broadcast %496 : vector<1x16xf32> to vector<16x16xf32>
    %499 = arith.mulf %498, %497 : vector<16x16xf32>
    %500 = arith.addf %495, %499 : vector<16x16xf32>
    %501 = vector.extract_strided_slice %338 {offsets = [14, 0], sizes = [1, 16], strides = [1, 1]} : vector<17x16xf32> to vector<1x16xf32>
    %502 = vector.extract_strided_slice %429 {offsets = [14, 0], sizes = [16, 16], strides = [1, 1]} : vector<32x16xf32> to vector<16x16xf32>
    %503 = vector.broadcast %501 : vector<1x16xf32> to vector<16x16xf32>
    %504 = arith.mulf %503, %502 : vector<16x16xf32>
    %505 = arith.addf %500, %504 : vector<16x16xf32>
    %506 = vector.extract_strided_slice %338 {offsets = [15, 0], sizes = [1, 16], strides = [1, 1]} : vector<17x16xf32> to vector<1x16xf32>
    %507 = vector.extract_strided_slice %429 {offsets = [15, 0], sizes = [16, 16], strides = [1, 1]} : vector<32x16xf32> to vector<16x16xf32>
    %508 = vector.broadcast %506 : vector<1x16xf32> to vector<16x16xf32>
    %509 = arith.mulf %508, %507 : vector<16x16xf32>
    %510 = arith.addf %505, %509 : vector<16x16xf32>
    %511 = vector.extract_strided_slice %338 {offsets = [16, 0], sizes = [1, 16], strides = [1, 1]} : vector<17x16xf32> to vector<1x16xf32>
    %512 = vector.extract_strided_slice %429 {offsets = [16, 0], sizes = [16, 16], strides = [1, 1]} : vector<32x16xf32> to vector<16x16xf32>
    %513 = vector.broadcast %511 : vector<1x16xf32> to vector<16x16xf32>
    %514 = arith.mulf %513, %512 : vector<16x16xf32>
    %515 = arith.addf %510, %514 : vector<16x16xf32>
    %516 = tpu.concatenate %427, %515 in 0 : vector<16x16xf32>, vector<16x16xf32> -> vector<32x16xf32>
    %c8 = arith.constant 8 : index
    %c0_112 = arith.constant 0 : index
    %517 = vector.load %arg3[%c8, %c0_112] : memref<24x64xf32, #tpu.memory_space<vmem>>, vector<1x16xf32>
    %518 = vector.broadcast %517 : vector<1x16xf32> to vector<32x16xf32>
    %519 = arith.addf %516, %518 : vector<32x16xf32>
    %c9 = arith.constant 9 : index
    %c0_113 = arith.constant 0 : index
    %520 = vector.load %arg3[%c9, %c0_113] : memref<24x64xf32, #tpu.memory_space<vmem>>, vector<1x16xf32>
    %521 = vector.broadcast %520 : vector<1x16xf32> to vector<32x16xf32>
    %522 = arith.mulf %519, %521 : vector<32x16xf32>
    %c10 = arith.constant 10 : index
    %c0_114 = arith.constant 0 : index
    %523 = vector.load %arg3[%c10, %c0_114] : memref<24x64xf32, #tpu.memory_space<vmem>>, vector<1x16xf32>
    %524 = vector.broadcast %523 : vector<1x16xf32> to vector<32x16xf32>
    %525 = arith.addf %522, %524 : vector<32x16xf32>
    %cst_115 = arith.constant 0.000000e+00 : f32
    %526 = vector.broadcast %cst_115 : f32 to vector<32x16xf32>
    %527 = arith.subf %526, %525 : vector<32x16xf32>
    %528 = math.exp %527 : vector<32x16xf32>
    %cst_116 = arith.constant 1.000000e+00 : f32
    %529 = vector.broadcast %cst_116 : f32 to vector<32x16xf32>
    %530 = arith.addf %529, %528 : vector<32x16xf32>
    %cst_117 = arith.constant 1.000000e+00 : f32
    %531 = vector.broadcast %cst_117 : f32 to vector<32x16xf32>
    %532 = arith.divf %531, %530 : vector<32x16xf32>
    %533 = arith.mulf %525, %532 : vector<32x16xf32>
    %c224 = arith.constant 224 : index
    %c0_118 = arith.constant 0 : index
    %534 = vector.load %arg2[%c224, %c0_118] : memref<280x64xf32, #tpu.memory_space<vmem>>, vector<16x16xf32>
    %cst_119 = arith.constant dense<0.000000e+00> : vector<32x16xf32>
    %535 = tpu.matmul %533, %534, %cst_119 {dimension_numbers = #tpu.dot_dimension_numbers<[1], [0], [0], [1], [0, 0, 1, 1], [], []>} : vector<32x16xf32>, vector<16x16xf32>, vector<32x16xf32> -> vector<32x16xf32>
    %536 = arith.addf %269, %535 : vector<32x16xf32>
    %c11 = arith.constant 11 : index
    %c0_120 = arith.constant 0 : index
    %537 = vector.load %arg3[%c11, %c0_120] : memref<24x64xf32, #tpu.memory_space<vmem>>, vector<1x16xf32>
    %538 = vector.broadcast %537 : vector<1x16xf32> to vector<32x16xf32>
    %539 = arith.addf %536, %538 : vector<32x16xf32>
    %c12 = arith.constant 12 : index
    %c0_121 = arith.constant 0 : index
    %540 = vector.load %arg3[%c12, %c0_121] : memref<24x64xf32, #tpu.memory_space<vmem>>, vector<1x16xf32>
    %c13 = arith.constant 13 : index
    %c0_122 = arith.constant 0 : index
    %541 = vector.load %arg3[%c13, %c0_122] : memref<24x64xf32, #tpu.memory_space<vmem>>, vector<1x16xf32>
    %cst_123 = arith.constant dense<0.000000e+00> : vector<32xf32>
    %542 = vector.multi_reduction <add>, %539, %cst_123 [1] : vector<32x16xf32> to vector<32xf32>
    %543 = vector.shape_cast %542 : vector<32xf32> to vector<32x1xf32>
    %cst_124 = arith.constant 1.600000e+01 : f32
    %544 = vector.broadcast %cst_124 : f32 to vector<32x1xf32>
    %545 = arith.divf %543, %544 : vector<32x1xf32>
    %546 = vector.broadcast %545 : vector<32x1xf32> to vector<32x16xf32>
    %547 = arith.subf %539, %546 : vector<32x16xf32>
    %548 = arith.mulf %547, %547 : vector<32x16xf32>
    %cst_125 = arith.constant dense<0.000000e+00> : vector<32xf32>
    %549 = vector.multi_reduction <add>, %548, %cst_125 [1] : vector<32x16xf32> to vector<32xf32>
    %550 = vector.shape_cast %549 : vector<32xf32> to vector<32x1xf32>
    %cst_126 = arith.constant 1.600000e+01 : f32
    %551 = vector.broadcast %cst_126 : f32 to vector<32x1xf32>
    %552 = arith.divf %550, %551 : vector<32x1xf32>
    %553 = vector.broadcast %545 : vector<32x1xf32> to vector<32x16xf32>
    %554 = arith.subf %539, %553 : vector<32x16xf32>
    %cst_127 = arith.constant 9.99999974E-6 : f32
    %555 = vector.broadcast %cst_127 : f32 to vector<32x1xf32>
    %556 = arith.addf %552, %555 : vector<32x1xf32>
    %557 = math.rsqrt %556 : vector<32x1xf32>
    %558 = vector.broadcast %557 : vector<32x1xf32> to vector<32x16xf32>
    %559 = arith.mulf %554, %558 : vector<32x16xf32>
    %560 = vector.broadcast %540 : vector<1x16xf32> to vector<32x16xf32>
    %561 = arith.mulf %559, %560 : vector<32x16xf32>
    %562 = vector.broadcast %541 : vector<1x16xf32> to vector<32x16xf32>
    %563 = arith.addf %561, %562 : vector<32x16xf32>
    %c80 = arith.constant 80 : index
    %c0_128 = arith.constant 0 : index
    %564 = vector.load %arg2[%c80, %c0_128] : memref<280x64xf32, #tpu.memory_space<vmem>>, vector<16x64xf32>
    %cst_129 = arith.constant dense<0.000000e+00> : vector<32x64xf32>
    %565 = tpu.matmul %563, %564, %cst_129 {dimension_numbers = #tpu.dot_dimension_numbers<[1], [0], [0], [1], [0, 0, 1, 1], [], []>} : vector<32x16xf32>, vector<16x64xf32>, vector<32x64xf32> -> vector<32x64xf32>
    %c14 = arith.constant 14 : index
    %c0_130 = arith.constant 0 : index
    %566 = vector.load %arg3[%c14, %c0_130] : memref<24x64xf32, #tpu.memory_space<vmem>>, vector<1x64xf32>
    %567 = vector.broadcast %566 : vector<1x64xf32> to vector<32x64xf32>
    %568 = arith.addf %565, %567 : vector<32x64xf32>
    %cst_131 = arith.constant 0.000000e+00 : f32
    %569 = vector.broadcast %cst_131 : f32 to vector<32x64xf32>
    %570 = arith.subf %569, %568 : vector<32x64xf32>
    %571 = math.exp %570 : vector<32x64xf32>
    %cst_132 = arith.constant 1.000000e+00 : f32
    %572 = vector.broadcast %cst_132 : f32 to vector<32x64xf32>
    %573 = arith.addf %572, %571 : vector<32x64xf32>
    %cst_133 = arith.constant 1.000000e+00 : f32
    %574 = vector.broadcast %cst_133 : f32 to vector<32x64xf32>
    %575 = arith.divf %574, %573 : vector<32x64xf32>
    %576 = arith.mulf %568, %575 : vector<32x64xf32>
    %c96 = arith.constant 96 : index
    %c0_134 = arith.constant 0 : index
    %577 = vector.load %arg2[%c96, %c0_134] : memref<280x64xf32, #tpu.memory_space<vmem>>, vector<64x16xf32>
    %cst_135 = arith.constant dense<0.000000e+00> : vector<32x16xf32>
    %578 = tpu.matmul %576, %577, %cst_135 {dimension_numbers = #tpu.dot_dimension_numbers<[1], [0], [0], [1], [0, 0, 1, 1], [], []>} : vector<32x64xf32>, vector<64x16xf32>, vector<32x16xf32> -> vector<32x16xf32>
    %c15 = arith.constant 15 : index
    %c0_136 = arith.constant 0 : index
    %579 = vector.load %arg3[%c15, %c0_136] : memref<24x64xf32, #tpu.memory_space<vmem>>, vector<1x16xf32>
    %580 = vector.broadcast %579 : vector<1x16xf32> to vector<32x16xf32>
    %581 = arith.addf %578, %580 : vector<32x16xf32>
    %cst_137 = arith.constant 5.000000e-01 : f32
    %582 = vector.broadcast %cst_137 : f32 to vector<32x16xf32>
    %583 = arith.mulf %582, %581 : vector<32x16xf32>
    %584 = arith.addf %539, %583 : vector<32x16xf32>
    %c16_138 = arith.constant 16 : index
    %c0_139 = arith.constant 0 : index
    %585 = vector.load %arg3[%c16_138, %c0_139] : memref<24x64xf32, #tpu.memory_space<vmem>>, vector<1x16xf32>
    %c17 = arith.constant 17 : index
    %c0_140 = arith.constant 0 : index
    %586 = vector.load %arg3[%c17, %c0_140] : memref<24x64xf32, #tpu.memory_space<vmem>>, vector<1x16xf32>
    %cst_141 = arith.constant dense<0.000000e+00> : vector<32xf32>
    %587 = vector.multi_reduction <add>, %584, %cst_141 [1] : vector<32x16xf32> to vector<32xf32>
    %588 = vector.shape_cast %587 : vector<32xf32> to vector<32x1xf32>
    %cst_142 = arith.constant 1.600000e+01 : f32
    %589 = vector.broadcast %cst_142 : f32 to vector<32x1xf32>
    %590 = arith.divf %588, %589 : vector<32x1xf32>
    %591 = vector.broadcast %590 : vector<32x1xf32> to vector<32x16xf32>
    %592 = arith.subf %584, %591 : vector<32x16xf32>
    %593 = arith.mulf %592, %592 : vector<32x16xf32>
    %cst_143 = arith.constant dense<0.000000e+00> : vector<32xf32>
    %594 = vector.multi_reduction <add>, %593, %cst_143 [1] : vector<32x16xf32> to vector<32xf32>
    %595 = vector.shape_cast %594 : vector<32xf32> to vector<32x1xf32>
    %cst_144 = arith.constant 1.600000e+01 : f32
    %596 = vector.broadcast %cst_144 : f32 to vector<32x1xf32>
    %597 = arith.divf %595, %596 : vector<32x1xf32>
    %598 = vector.broadcast %590 : vector<32x1xf32> to vector<32x16xf32>
    %599 = arith.subf %584, %598 : vector<32x16xf32>
    %cst_145 = arith.constant 9.99999974E-6 : f32
    %600 = vector.broadcast %cst_145 : f32 to vector<32x1xf32>
    %601 = arith.addf %597, %600 : vector<32x1xf32>
    %602 = math.rsqrt %601 : vector<32x1xf32>
    %603 = vector.broadcast %602 : vector<32x1xf32> to vector<32x16xf32>
    %604 = arith.mulf %599, %603 : vector<32x16xf32>
    %605 = vector.broadcast %585 : vector<1x16xf32> to vector<32x16xf32>
    %606 = arith.mulf %604, %605 : vector<32x16xf32>
    %607 = vector.broadcast %586 : vector<1x16xf32> to vector<32x16xf32>
    %608 = arith.addf %606, %607 : vector<32x16xf32>
    %c0_146 = arith.constant 0 : index
    %c0_147 = arith.constant 0 : index
    %609 = vector.load %arg4[%c0_146, %c0_147] : memref<32x16xf32, #tpu.memory_space<vmem>>, vector<32x16xf32>
    tpu.vector_store %arg4[%c0_146, %c0_147], %608 {strides = array<i32>} : memref<32x16xf32, #tpu.memory_space<vmem>>, vector<32x16xf32>,
    return
  }
  func.func @transform_0(%arg0: i32) -> (i32, i32) {
    %c0_i32 = arith.constant 0 : i32
    %c0_i32_0 = arith.constant 0 : i32
    return %arg0, %c0_i32 : i32, i32
  }
  func.func @transform_1(%arg0: i32) -> (i32, i32) {
    %c0_i32 = arith.constant 0 : i32
    %c0_i32_0 = arith.constant 0 : i32
    %c0_i32_1 = arith.constant 0 : i32
    return %c0_i32, %c0_i32_0 : i32, i32
  }
  func.func @transform_2(%arg0: i32) -> (i32, i32) {
    %c0_i32 = arith.constant 0 : i32
    %c0_i32_0 = arith.constant 0 : i32
    %c0_i32_1 = arith.constant 0 : i32
    return %c0_i32, %c0_i32_0 : i32, i32
  }
  func.func @transform_3(%arg0: i32) -> (i32, i32) {
    %c0_i32 = arith.constant 0 : i32
    %c0_i32_0 = arith.constant 0 : i32
    return %arg0, %c0_i32 : i32, i32
  }
}

</mosaic_0001>

<llo_original>
// kernel: tpu_custom_call.1
$region0: #{tpu_custom_call.1}
  #allocation0 [shape = 'u32[]', space=smem, size = 0x4, offset = 0x4, fixed_abs, tag = 'smem constant byte address 0x4 - core index']
  #allocation1 [shape = 'u32[144,128]{1,0:T(1,128)}', space=vmem, size = 0x12000, scoped, tag = 'internal scratch']
  %s0 = inlined_call_operand.vmem [shape: f32[32,16], index: 0, kind: input, shape index: {}]
  %s1 = inlined_call_operand.vmem [shape: f32[280,64], index: 1, kind: input, shape index: {}]
  %s2 = inlined_call_operand.vmem [shape: f32[24,64], index: 2, kind: input, shape index: {}]
  %s3 = inlined_call_operand.vmem [shape: f32[32,16], index: 3, kind: output, shape index: {}]
  %s4 = sld [smem:[#allocation0]]
  $region22: #{tpu_custom_call.1} parent=0
    _
  %s6 = ssub.s32 1, %s4
  %s7 = scalar_select 0, %s6, %s4
  // Predicated region
  $region2: #{tpu_custom_call.1} parent=0 // pred_check
    _
  $region3: #{tpu_custom_call.1} parent=0 // pred_check_branch
    %9 = sbr.rel (0) target = $region5
  $region4: #{tpu_custom_call.1} parent=0 // pred_region
    _
  $region5: #{tpu_custom_call.1} parent=0 // pred_fallthru
    _
  // Predicated region
  $region6: #{tpu_custom_call.1} parent=0 // pred_check
    _
  $region7: #{tpu_custom_call.1} parent=0 // pred_check_branch
    %11 = sbr.rel (0) target = $region9
  $region8: #{tpu_custom_call.1} parent=0 // pred_region
    _
  $region9: #{tpu_custom_call.1} parent=0 // pred_fallthru
    _
  // Predicated region
  $region10: #{tpu_custom_call.1} parent=0 // pred_check
    _
  $region11: #{tpu_custom_call.1} parent=0 // pred_check_branch
    %13 = sbr.rel (0) target = $region13
  $region12: #{tpu_custom_call.1} parent=0 // pred_region
    _
  $region13: #{tpu_custom_call.1} parent=0 // pred_fallthru
    _
  %v14 = vld [vmem:[%s0] sm:$0xff]
  %v15 = vld [vmem:[%s0 + $0x8] sm:$0xff]
  %v16 = vld [vmem:[%s0 + $0x10] sm:$0xff]
  %v17 = vld [vmem:[%s0 + $0x18] sm:$0xff]
  %v18 = vld [vmem:[%s2] sm:$0x1]
  %v19 = vld [vmem:[%s2 + $0x1] sm:$0x1]
  %vm20 = vcmask 130048
  %v21 = vsel %vm20, %v14, 0.0
  %22 = vadd.xlane.f32.xlu0 %v21
  %v23 = vpop.xlane.xlu0 %22
  %v24 = vsel %vm20, %v15, 0.0
  %25 = vadd.xlane.f32.xlu0 %v24
  %v26 = vpop.xlane.xlu0 %25
  %v27 = vsel %vm20, %v16, 0.0
  %28 = vadd.xlane.f32.xlu0 %v27
  %v29 = vpop.xlane.xlu0 %28
  %v30 = vsel %vm20, %v17, 0.0
  %31 = vadd.xlane.f32.xlu0 %v30
  %v32 = vpop.xlane.xlu0 %31
  %v33 = vrcp.pop 16.0
  %v34 = vmul.f32 %v23, %v33
  %v35 = vmul.f32 %v26, %v33
  %v36 = vmul.f32 %v29, %v33
  %v37 = vmul.f32 %v32, %v33
  %v38 = vsub.f32 %v14, %v34
  %v39 = vsub.f32 %v15, %v35
  %v40 = vsub.f32 %v16, %v36
  %v41 = vsub.f32 %v17, %v37
  %v42 = vmul.f32 %v38, %v38
  %v43 = vmul.f32 %v39, %v39
  %v44 = vmul.f32 %v40, %v40
  %v45 = vmul.f32 %v41, %v41
  %v46 = vsel %vm20, %v42, 0.0
  %47 = vadd.xlane.f32.xlu0 %v46
  %v48 = vpop.xlane.xlu0 %47
  %v49 = vsel %vm20, %v43, 0.0
  %50 = vadd.xlane.f32.xlu0 %v49
  %v51 = vpop.xlane.xlu0 %50
  %v52 = vsel %vm20, %v44, 0.0
  %53 = vadd.xlane.f32.xlu0 %v52
  %v54 = vpop.xlane.xlu0 %53
  %v55 = vsel %vm20, %v45, 0.0
  %56 = vadd.xlane.f32.xlu0 %v55
  %v57 = vpop.xlane.xlu0 %56
  %v58 = vmul.f32 %v48, %v33
  %v59 = vmul.f32 %v51, %v33
  %v60 = vmul.f32 %v54, %v33
  %v61 = vmul.f32 %v57, %v33
  %v62 = vadd.f32 %v58, 1e-05
  %v63 = vadd.f32 %v59, 1e-05
  %v64 = vadd.f32 %v60, 1e-05
  %v65 = vadd.f32 %v61, 1e-05
  %v66 = vrsqrt.pop %v62
  %v67 = vrsqrt.pop %v63
  %v68 = vrsqrt.pop %v64
  %v69 = vrsqrt.pop %v65
  %v70 = vmul.f32 %v38, %v66
  %v71 = vmul.f32 %v39, %v67
  %v72 = vmul.f32 %v40, %v68
  %v73 = vmul.f32 %v41, %v69
  %v74 = vlaneseq
  %v75 = vshrl.u32 %v74, 7
  %v76 = vsub.s32 0, %v75
  %v77 = vrot.slane %v18, %v76
  %v78 = vmul.f32 %v70, %v77
  %v79 = vmul.f32 %v71, %v77
  %v80 = vmul.f32 %v72, %v77
  %v81 = vmul.f32 %v73, %v77
  %v82 = vlaneseq
  %v83 = vshrl.u32 %v82, 7
  %v84 = vsub.s32 0, %v83
  %v85 = vrot.slane %v19, %v84
  %v86 = vadd.f32 %v78, %v85
  %v87 = vadd.f32 %v79, %v85
  %v88 = vadd.f32 %v80, %v85
  %v89 = vadd.f32 %v81, %v85
  %v90 = vld [vmem:[%s1] sm:$0xff]
  %v91 = vld [vmem:[%s1 + $0x8] sm:$0xff]
  %v92 = vld [vmem:[%s2 + $0x2] sm:$0x1]
  %v93 = vlaneseq
  %v94 = vshrl.u32 %v93, 7
  %v95 = vsub.s32 0, %v94
  %v96 = vrot.slane %v92, %v95
  %v98 = vsel %vm20, %v86, 0
  %v101 = vsel %vm20, %v87, 0
  %v104 = vsel %vm20, %v88, 0
  %v107 = vsel %vm20, %v89, 0
  %109 = vmatprep.subr.mxu0 0.0
  %110 = vmatpush1.msra.mxu0 %v90
  %111 = vmatprep.subr.mxu0 0.0
  %112 = vmatpush1.msra.mxu0 %v91
  %113 = vmatprep.subr.mxu0 0.0
  %114 = vmatpush1.msra.mxu0 0.0
  %115 = vmatprep.subr.mxu0 0.0
  %116 = vmatpush1.msra.mxu0 0.0
  %117 = vmatprep.subr.mxu0 0.0
  %118 = vmatpush1.msra.mxu0 0.0
  %119 = vmatprep.subr.mxu0 0.0
  %120 = vmatpush1.msra.mxu0 0.0
  %121 = vmatprep.subr.mxu0 0.0
  %122 = vmatpush1.msra.mxu0 0.0
  %123 = vmatprep.subr.mxu0 0.0
  %124 = vmatpush1.msra.mxu0 0.0
  %125 = vmatprep.subr.mxu0 0.0
  %126 = vmatpush1.msra.mxu0 0.0
  %127 = vmatprep.subr.mxu0 0.0
  %128 = vmatpush1.msra.mxu0 0.0
  %129 = vmatprep.subr.mxu0 0.0
  %130 = vmatpush1.msra.mxu0 0.0
  %131 = vmatprep.subr.mxu0 0.0
  %132 = vmatpush1.msra.mxu0 0.0
  %133 = vmatprep.subr.mxu0 0.0
  %134 = vmatpush1.msra.mxu0 0.0
  %135 = vmatprep.subr.mxu0 0.0
  %136 = vmatpush1.msra.mxu0 0.0
  %137 = vmatprep.subr.mxu0 0.0
  %138 = vmatpush1.msra.mxu0 0.0
  %139 = vmatprep.subr.mxu0 0.0
  %140 = vmatpush1.msra.mxu0 0.0
  %141 = vmatprep.subr.mxu0 0.0
  %142 = vmatpush1.msra.mxu0 0.0
  %143 = vmatprep.subr.mxu0 0.0
  %144 = vmatpush1.msra.mxu0 0.0
  %145 = vmatprep.subr.mxu0 0.0
  %146 = vmatpush1.msra.mxu0 0.0
  %147 = vmatprep.subr.mxu0 0.0
  %148 = vmatpush1.msra.mxu0 0.0
  %149 = vmatprep.subr.mxu0 0.0
  %150 = vmatpush1.msra.mxu0 0.0
  %151 = vmatprep.subr.mxu0 0.0
  %152 = vmatpush1.msra.mxu0 0.0
  %153 = vmatprep.subr.mxu0 0.0
  %154 = vmatpush1.msra.mxu0 0.0
  %155 = vmatprep.subr.mxu0 0.0
  %156 = vmatpush1.msra.mxu0 0.0
  %157 = vmatprep.subr.mxu0 0.0
  %158 = vmatpush1.msra.mxu0 0.0
  %159 = vmatprep.subr.mxu0 0.0
  %160 = vmatpush1.msra.mxu0 0.0
  %161 = vmatprep.subr.mxu0 0.0
  %162 = vmatpush1.msra.mxu0 0.0
  %163 = vmatprep.subr.mxu0 0.0
  %164 = vmatpush1.msra.mxu0 0.0
  %165 = vmatprep.subr.mxu0 0.0
  %166 = vmatpush1.msra.mxu0 0.0
  %167 = vmatprep.subr.mxu0 0.0
  %168 = vmatpush1.msra.mxu0 0.0
  %169 = vmatprep.subr.mxu0 0.0
  %170 = vmatpush1.msra.mxu0 0.0
  %171 = vmatprep.subr.mxu0 0.0
  %172 = vmatpush1.msra.mxu0 0.0
  %173 = vmatprep.mubr.f32.mxu0 0.0
  %174 = vmatmul.mubr.f32.gmra.mrb[0].mxu0 %v98
  %v175 = vpop.f32.mrb[0].mxu0
  %v176 = vadd.f32 %v96, %v175
  %v177 = vpop.f32.mrb[0].mxu0
  %178 = vmatprep.mubr.f32.mxu0 0.0
  %179 = vmatmul.mubr.f32.gmra.mrb[0].mxu0 %v101
  %v180 = vpop.f32.mrb[0].mxu0
  %v181 = vadd.f32 %v96, %v180
  %v182 = vpop.f32.mrb[0].mxu0
  %183 = vmatprep.mubr.f32.mxu0 0.0
  %184 = vmatmul.mubr.f32.gmra.mrb[0].mxu0 %v104
  %v185 = vpop.f32.mrb[0].mxu0
  %v186 = vadd.f32 %v96, %v185
  %v187 = vpop.f32.mrb[0].mxu0
  %188 = vmatprep.mubr.f32.mxu0 0.0
  %189 = vmatmul.mubr.f32.gmra.mrb[0].mxu0 %v107
  %v190 = vpop.f32.mrb[0].mxu0
  %v191 = vadd.f32 %v96, %v190
  %v192 = vpop.f32.mrb[0].mxu0
  %193 = vdwg.mxu0
  %v194 = vsub.f32 0.0, %v176
  %v195 = vsub.f32 0.0, %v181
  %v196 = vsub.f32 0.0, %v186
  %v197 = vsub.f32 0.0, %v191
  %v198 = vmul.f32 %v194, 1.442695
  %v199 = vpow.pop %v198
  %v200 = vmul.f32 %v195, 1.442695
  %v201 = vpow.pop %v200
  %v202 = vmul.f32 %v196, 1.442695
  %v203 = vpow.pop %v202
  %v204 = vmul.f32 %v197, 1.442695
  %v205 = vpow.pop %v204
  %v206 = vadd.f32 %v199, 1.0
  %v207 = vadd.f32 %v201, 1.0
  %v208 = vadd.f32 %v203, 1.0
  %v209 = vadd.f32 %v205, 1.0
  %v210 = vrcp.pop %v206
  %v211 = vmul.f32 1.0, %v210
  %v212 = vrcp.pop %v207
  %v213 = vmul.f32 1.0, %v212
  %v214 = vrcp.pop %v208
  %v215 = vmul.f32 1.0, %v214
  %v216 = vrcp.pop %v209
  %v217 = vmul.f32 1.0, %v216
  %v218 = vmul.f32 %v176, %v211
  %v219 = vmul.f32 %v181, %v213
  %v220 = vmul.f32 %v186, %v215
  %v221 = vmul.f32 %v191, %v217
  %v222 = vld [vmem:[%s1 + $0x10] sm:$0xff]
  %v223 = vld [vmem:[%s1 + $0x18] sm:$0xff]
  %v224 = vld [vmem:[%s1 + $0x20] sm:$0xff]
  %v225 = vld [vmem:[%s1 + $0x28] sm:$0xff]
  %v226 = vld [vmem:[%s1 + $0x30] sm:$0xff]
  %v227 = vld [vmem:[%s1 + $0x38] sm:$0xff]
  %v228 = vld [vmem:[%s1 + $0x40] sm:$0xff]
  %v229 = vld [vmem:[%s1 + $0x48] sm:$0xff]
  %v230 = vld [vmem:[%s2 + $0x3] sm:$0x1]
  %v231 = vlaneseq
  %v232 = vshrl.u32 %v231, 7
  %v233 = vsub.s32 0, %v232
  %v234 = vrot.slane %v230, %v233
  %vm235 = vcmask 523264
  %v237 = vsel %vm235, %v218, 0
  %v240 = vsel %vm235, %v219, 0
  %v243 = vsel %vm235, %v220, 0
  %v246 = vsel %vm235, %v221, 0
  %248 = vmatprep.subr.mxu0 0.0
  %249 = vmatpush1.msra.mxu0 %v222
  %250 = vmatprep.subr.mxu0 0.0
  %251 = vmatpush1.msra.mxu0 %v223
  %252 = vmatprep.subr.mxu0 0.0
  %253 = vmatpush1.msra.mxu0 %v224
  %254 = vmatprep.subr.mxu0 0.0
  %255 = vmatpush1.msra.mxu0 %v225
  %256 = vmatprep.subr.mxu0 0.0
  %257 = vmatpush1.msra.mxu0 %v226
  %258 = vmatprep.subr.mxu0 0.0
  %259 = vmatpush1.msra.mxu0 %v227
  %260 = vmatprep.subr.mxu0 0.0
  %261 = vmatpush1.msra.mxu0 %v228
  %262 = vmatprep.subr.mxu0 0.0
  %263 = vmatpush1.msra.mxu0 %v229
  %264 = vmatprep.subr.mxu0 0.0
  %265 = vmatpush1.msra.mxu0 0.0
  %266 = vmatprep.subr.mxu0 0.0
  %267 = vmatpush1.msra.mxu0 0.0
  %268 = vmatprep.subr.mxu0 0.0
  %269 = vmatpush1.msra.mxu0 0.0
  %270 = vmatprep.subr.mxu0 0.0
  %271 = vmatpush1.msra.mxu0 0.0
  %272 = vmatprep.subr.mxu0 0.0
  %273 = vmatpush1.msra.mxu0 0.0
  %274 = vmatprep.subr.mxu0 0.0
  %275 = vmatpush1.msra.mxu0 0.0
  %276 = vmatprep.subr.mxu0 0.0
  %277 = vmatpush1.msra.mxu0 0.0
  %278 = vmatprep.subr.mxu0 0.0
  %279 = vmatpush1.msra.mxu0 0.0
  %280 = vmatprep.subr.mxu0 0.0
  %281 = vmatpush1.msra.mxu0 0.0
  %282 = vmatprep.subr.mxu0 0.0
  %283 = vmatpush1.msra.mxu0 0.0
  %284 = vmatprep.subr.mxu0 0.0
  %285 = vmatpush1.msra.mxu0 0.0
  %286 = vmatprep.subr.mxu0 0.0
  %287 = vmatpush1.msra.mxu0 0.0
  %288 = vmatprep.subr.mxu0 0.0
  %289 = vmatpush1.msra.mxu0 0.0
  %290 = vmatprep.subr.mxu0 0.0
  %291 = vmatpush1.msra.mxu0 0.0
  %292 = vmatprep.subr.mxu0 0.0
  %293 = vmatpush1.msra.mxu0 0.0
  %294 = vmatprep.subr.mxu0 0.0
  %295 = vmatpush1.msra.mxu0 0.0
  %296 = vmatprep.subr.mxu0 0.0
  %297 = vmatpush1.msra.mxu0 0.0
  %298 = vmatprep.subr.mxu0 0.0
  %299 = vmatpush1.msra.mxu0 0.0
  %300 = vmatprep.subr.mxu0 0.0
  %301 = vmatpush1.msra.mxu0 0.0
  %302 = vmatprep.subr.mxu0 0.0
  %303 = vmatpush1.msra.mxu0 0.0
  %304 = vmatprep.subr.mxu0 0.0
  %305 = vmatpush1.msra.mxu0 0.0
  %306 = vmatprep.subr.mxu0 0.0
  %307 = vmatpush1.msra.mxu0 0.0
  %308 = vmatprep.subr.mxu0 0.0
  %309 = vmatpush1.msra.mxu0 0.0
  %310 = vmatprep.subr.mxu0 0.0
  %311 = vmatpush1.msra.mxu0 0.0
  %312 = vmatprep.mubr.f32.mxu0 0.0
  %313 = vmatmul.mubr.f32.gmra.mrb[0].mxu0 %v237
  %v314 = vpop.f32.mrb[0].mxu0
  %v315 = vadd.f32 %v234, %v314
  %v316 = vpop.f32.mrb[0].mxu0
  %317 = vmatprep.mubr.f32.mxu0 0.0
  %318 = vmatmul.mubr.f32.gmra.mrb[0].mxu0 %v240
  %v319 = vpop.f32.mrb[0].mxu0
  %v320 = vadd.f32 %v234, %v319
  %v321 = vpop.f32.mrb[0].mxu0
  %322 = vmatprep.mubr.f32.mxu0 0.0
  %323 = vmatmul.mubr.f32.gmra.mrb[0].mxu0 %v243
  %v324 = vpop.f32.mrb[0].mxu0
  %v325 = vadd.f32 %v234, %v324
  %v326 = vpop.f32.mrb[0].mxu0
  %327 = vmatprep.mubr.f32.mxu0 0.0
  %328 = vmatmul.mubr.f32.gmra.mrb[0].mxu0 %v246
  %v329 = vpop.f32.mrb[0].mxu0
  %v330 = vadd.f32 %v234, %v329
  %v331 = vpop.f32.mrb[0].mxu0
  %332 = vdwg.mxu0
  %v333 = vmul.f32 %v315, 0.5
  %v334 = vmul.f32 %v320, 0.5
  %v335 = vmul.f32 %v325, 0.5
  %v336 = vmul.f32 %v330, 0.5
  %v337 = vadd.f32 %v14, %v333
  %v338 = vadd.f32 %v15, %v334
  %v339 = vadd.f32 %v16, %v335
  %v340 = vadd.f32 %v17, %v336
  %v341 = vld [vmem:[%s2 + $0x4] sm:$0x1]
  %v342 = vld [vmem:[%s2 + $0x5] sm:$0x1]
  %v343 = vsel %vm20, %v337, 0.0
  %344 = vadd.xlane.f32.xlu0 %v343
  %v345 = vpop.xlane.xlu0 %344
  %v346 = vsel %vm20, %v338, 0.0
  %347 = vadd.xlane.f32.xlu0 %v346
  %v348 = vpop.xlane.xlu0 %347
  %v349 = vsel %vm20, %v339, 0.0
  %350 = vadd.xlane.f32.xlu0 %v349
  %v351 = vpop.xlane.xlu0 %350
  %v352 = vsel %vm20, %v340, 0.0
  %353 = vadd.xlane.f32.xlu0 %v352
  %v354 = vpop.xlane.xlu0 %353
  %v355 = vmul.f32 %v345, %v33
  %v356 = vmul.f32 %v348, %v33
  %v357 = vmul.f32 %v351, %v33
  %v358 = vmul.f32 %v354, %v33
  %v359 = vsub.f32 %v337, %v355
  %v360 = vsub.f32 %v338, %v356
  %v361 = vsub.f32 %v339, %v357
  %v362 = vsub.f32 %v340, %v358
  %v363 = vmul.f32 %v359, %v359
  %v364 = vmul.f32 %v360, %v360
  %v365 = vmul.f32 %v361, %v361
  %v366 = vmul.f32 %v362, %v362
  %v367 = vsel %vm20, %v363, 0.0
  %368 = vadd.xlane.f32.xlu0 %v367
  %v369 = vpop.xlane.xlu0 %368
  %v370 = vsel %vm20, %v364, 0.0
  %371 = vadd.xlane.f32.xlu0 %v370
  %v372 = vpop.xlane.xlu0 %371
  %v373 = vsel %vm20, %v365, 0.0
  %374 = vadd.xlane.f32.xlu0 %v373
  %v375 = vpop.xlane.xlu0 %374
  %v376 = vsel %vm20, %v366, 0.0
  %377 = vadd.xlane.f32.xlu0 %v376
  %v378 = vpop.xlane.xlu0 %377
  %v379 = vmul.f32 %v369, %v33
  %v380 = vmul.f32 %v372, %v33
  %v381 = vmul.f32 %v375, %v33
  %v382 = vmul.f32 %v378, %v33
  %v383 = vadd.f32 %v379, 1e-05
  %v384 = vadd.f32 %v380, 1e-05
  %v385 = vadd.f32 %v381, 1e-05
  %v386 = vadd.f32 %v382, 1e-05
  %v387 = vrsqrt.pop %v383
  %v388 = vrsqrt.pop %v384
  %v389 = vrsqrt.pop %v385
  %v390 = vrsqrt.pop %v386
  %v391 = vmul.f32 %v359, %v387
  %v392 = vmul.f32 %v360, %v388
  %v393 = vmul.f32 %v361, %v389
  %v394 = vmul.f32 %v362, %v390
  %v395 = vlaneseq
  %v396 = vshrl.u32 %v395, 7
  %v397 = vsub.s32 0, %v396
  %v398 = vrot.slane %v341, %v397
  %v399 = vmul.f32 %v391, %v398
  %v400 = vmul.f32 %v392, %v398
  %v401 = vmul.f32 %v393, %v398
  %v402 = vmul.f32 %v394, %v398
  %v403 = vlaneseq
  %v404 = vshrl.u32 %v403, 7
  %v405 = vsub.s32 0, %v404
  %v406 = vrot.slane %v342, %v405
  %v407 = vadd.f32 %v399, %v406
  %v408 = vadd.f32 %v400, %v406
  %v409 = vadd.f32 %v401, %v406
  %v410 = vadd.f32 %v402, %v406
  %v411 = vld [vmem:[%s1 + $0xa0] sm:$0xff]
  %v412 = vld [vmem:[%s1 + $0xa8] sm:$0xff]
  %v414 = vsel %vm20, %v407, 0
  %v417 = vsel %vm20, %v408, 0
  %v420 = vsel %vm20, %v409, 0
  %v423 = vsel %vm20, %v410, 0
  %425 = vmatprep.subr.mxu0 0.0
  %426 = vmatpush1.msra.mxu0 %v411
  %427 = vmatprep.subr.mxu0 0.0
  %428 = vmatpush1.msra.mxu0 %v412
  %429 = vmatprep.subr.mxu0 0.0
  %430 = vmatpush1.msra.mxu0 0.0
  %431 = vmatprep.subr.mxu0 0.0
  %432 = vmatpush1.msra.mxu0 0.0
  %433 = vmatprep.subr.mxu0 0.0
  %434 = vmatpush1.msra.mxu0 0.0
  %435 = vmatprep.subr.mxu0 0.0
  %436 = vmatpush1.msra.mxu0 0.0
  %437 = vmatprep.subr.mxu0 0.0
  %438 = vmatpush1.msra.mxu0 0.0
  %439 = vmatprep.subr.mxu0 0.0
  %440 = vmatpush1.msra.mxu0 0.0
  %441 = vmatprep.subr.mxu0 0.0
  %442 = vmatpush1.msra.mxu0 0.0
  %443 = vmatprep.subr.mxu0 0.0
  %444 = vmatpush1.msra.mxu0 0.0
  %445 = vmatprep.subr.mxu0 0.0
  %446 = vmatpush1.msra.mxu0 0.0
  %447 = vmatprep.subr.mxu0 0.0
  %448 = vmatpush1.msra.mxu0 0.0
  %449 = vmatprep.subr.mxu0 0.0
  %450 = vmatpush1.msra.mxu0 0.0
  %451 = vmatprep.subr.mxu0 0.0
  %452 = vmatpush1.msra.mxu0 0.0
  %453 = vmatprep.subr.mxu0 0.0
  %454 = vmatpush1.msra.mxu0 0.0
  %455 = vmatprep.subr.mxu0 0.0
  %456 = vmatpush1.msra.mxu0 0.0
  %457 = vmatprep.subr.mxu0 0.0
  %458 = vmatpush1.msra.mxu0 0.0
  %459 = vmatprep.subr.mxu0 0.0
  %460 = vmatpush1.msra.mxu0 0.0
  %461 = vmatprep.subr.mxu0 0.0
  %462 = vmatpush1.msra.mxu0 0.0
  %463 = vmatprep.subr.mxu0 0.0
  %464 = vmatpush1.msra.mxu0 0.0
  %465 = vmatprep.subr.mxu0 0.0
  %466 = vmatpush1.msra.mxu0 0.0
  %467 = vmatprep.subr.mxu0 0.0
  %468 = vmatpush1.msra.mxu0 0.0
  %469 = vmatprep.subr.mxu0 0.0
  %470 = vmatpush1.msra.mxu0 0.0
  %471 = vmatprep.subr.mxu0 0.0
  %472 = vmatpush1.msra.mxu0 0.0
  %473 = vmatprep.subr.mxu0 0.0
  %474 = vmatpush1.msra.mxu0 0.0
  %475 = vmatprep.subr.mxu0 0.0
  %476 = vmatpush1.msra.mxu0 0.0
  %477 = vmatprep.subr.mxu0 0.0
  %478 = vmatpush1.msra.mxu0 0.0
  %479 = vmatprep.subr.mxu0 0.0
  %480 = vmatpush1.msra.mxu0 0.0
  %481 = vmatprep.subr.mxu0 0.0
  %482 = vmatpush1.msra.mxu0 0.0
  %483 = vmatprep.subr.mxu0 0.0
  %484 = vmatpush1.msra.mxu0 0.0
  %485 = vmatprep.subr.mxu0 0.0
  %486 = vmatpush1.msra.mxu0 0.0
  %487 = vmatprep.subr.mxu0 0.0
  %488 = vmatpush1.msra.mxu0 0.0
  %489 = vmatprep.mubr.f32.mxu0 0.0
  %490 = vmatmul.mubr.f32.gmra.mrb[0].mxu0 %v414
  %v491 = vpop.f32.mrb[0].mxu0
  %v492 = vadd.f32 0.0, %v491
  %v493 = vpop.f32.mrb[0].mxu0
  %494 = vmatprep.mubr.f32.mxu0 0.0
  %495 = vmatmul.mubr.f32.gmra.mrb[0].mxu0 %v417
  %v496 = vpop.f32.mrb[0].mxu0
  %v497 = vadd.f32 0.0, %v496
  %v498 = vpop.f32.mrb[0].mxu0
  %499 = vmatprep.mubr.f32.mxu0 0.0
  %500 = vmatmul.mubr.f32.gmra.mrb[0].mxu0 %v420
  %v501 = vpop.f32.mrb[0].mxu0
  %v502 = vadd.f32 0.0, %v501
  %v503 = vpop.f32.mrb[0].mxu0
  %504 = vmatprep.mubr.f32.mxu0 0.0
  %505 = vmatmul.mubr.f32.gmra.mrb[0].mxu0 %v423
  %v506 = vpop.f32.mrb[0].mxu0
  %v507 = vadd.f32 0.0, %v506
  %v508 = vpop.f32.mrb[0].mxu0
  %509 = vdwg.mxu0
  %v510 = vld [vmem:[%s1 + $0xb0] sm:$0xff]
  %v511 = vld [vmem:[%s1 + $0xb8] sm:$0xff]
  %v512 = vlaneseq
  %v513 = vshrl.u32 %v512, 7
  %v514 = vadd.s32 %v513, 8
  %v515 = vlaneseq
  %v516 = vand.u32 %v515, 127
  %v517 = vsub.s32 %v513, %v516
  %v518 = vsub.s32 %v514, %v516
  %vm519 = vcmp.lt.s32.totalorder %v517, 0
  %v520 = vsub.s32 0, %v517
  %v521 = vsel %vm519, %v520, %v517
  %vm522 = vcmp.lt.s32.totalorder %v518, 0
  %v523 = vsub.s32 0, %v518
  %v524 = vsel %vm522, %v523, %v518
  %v525 = vcvt.s32.f32 %v521
  %v526 = vcvt.s32.f32 %v524
  %v527 = vsub.f32 0.0, %v525
  %v528 = vsub.f32 0.0, %v526
  %531 = vrot.lane.b32.xlu0 %v492, 112
  %v532 = vpop.permute.xlu0 %531
  %533 = vrot.lane.b32.xlu0 %v497, 112
  %v534 = vpop.permute.xlu0 %533
  %vm535 = vcmask 31744
  %v536 = vsel %vm535, %v492, 0
  %v538 = vsel %vm535, %v497, 0
  %v540 = vsel %vm535, %v532, 0
  %v542 = vsel %vm535, %v534, 0
  %544 = vmatprep.subr.mxu0 0.0
  %545 = vmatpush1.xpose.msra.mxu0 %v540
  %546 = vmatprep.subr.mxu0 0.0
  %547 = vmatpush1.xpose.msra.mxu0 %v542
  %548 = vmatprep.subr.mxu0 0.0
  %549 = vmatpush1.xpose.msra.mxu0 0.0
  %550 = vmatprep.subr.mxu0 0.0
  %551 = vmatpush1.xpose.msra.mxu0 0.0
  %552 = vmatprep.subr.mxu0 0.0
  %553 = vmatpush1.xpose.msra.mxu0 0.0
  %554 = vmatprep.subr.mxu0 0.0
  %555 = vmatpush1.xpose.msra.mxu0 0.0
  %556 = vmatprep.subr.mxu0 0.0
  %557 = vmatpush1.xpose.msra.mxu0 0.0
  %558 = vmatprep.subr.mxu0 0.0
  %559 = vmatpush1.xpose.msra.mxu0 0.0
  %560 = vmatprep.subr.mxu0 0.0
  %561 = vmatpush1.xpose.msra.mxu0 0.0
  %562 = vmatprep.subr.mxu0 0.0
  %563 = vmatpush1.xpose.msra.mxu0 0.0
  %564 = vmatprep.subr.mxu0 0.0
  %565 = vmatpush1.xpose.msra.mxu0 0.0
  %566 = vmatprep.subr.mxu0 0.0
  %567 = vmatpush1.xpose.msra.mxu0 0.0
  %568 = vmatprep.subr.mxu0 0.0
  %569 = vmatpush1.xpose.msra.mxu0 0.0
  %570 = vmatprep.subr.mxu0 0.0
  %571 = vmatpush1.xpose.msra.mxu0 0.0
  %572 = vmatprep.subr.mxu0 0.0
  %573 = vmatpush1.xpose.msra.mxu0 0.0
  %574 = vmatprep.subr.mxu0 0.0
  %575 = vmatpush1.xpose.msra.mxu0 0.0
  %576 = vmatprep.subr.mxu0 0.0
  %577 = vmatpush1.xpose.msra.mxu0 0.0
  %578 = vmatprep.subr.mxu0 0.0
  %579 = vmatpush1.xpose.msra.mxu0 0.0
  %580 = vmatprep.subr.mxu0 0.0
  %581 = vmatpush1.xpose.msra.mxu0 0.0
  %582 = vmatprep.subr.mxu0 0.0
  %583 = vmatpush1.xpose.msra.mxu0 0.0
  %584 = vmatprep.subr.mxu0 0.0
  %585 = vmatpush1.xpose.msra.mxu0 0.0
  %586 = vmatprep.subr.mxu0 0.0
  %587 = vmatpush1.xpose.msra.mxu0 0.0
  %588 = vmatprep.subr.mxu0 0.0
  %589 = vmatpush1.xpose.msra.mxu0 0.0
  %590 = vmatprep.subr.mxu0 0.0
  %591 = vmatpush1.xpose.msra.mxu0 0.0
  %592 = vmatprep.subr.mxu0 0.0
  %593 = vmatpush1.xpose.msra.mxu0 0.0
  %594 = vmatprep.subr.mxu0 0.0
  %595 = vmatpush1.xpose.msra.mxu0 0.0
  %596 = vmatprep.subr.mxu0 0.0
  %597 = vmatpush1.xpose.msra.mxu0 0.0
  %598 = vmatprep.subr.mxu0 0.0
  %599 = vmatpush1.xpose.msra.mxu0 0.0
  %600 = vmatprep.subr.mxu0 0.0
  %601 = vmatpush1.xpose.msra.mxu0 0.0
  %602 = vmatprep.subr.mxu0 0.0
  %603 = vmatpush1.xpose.msra.mxu0 0.0
  %604 = vmatprep.subr.mxu0 0.0
  %605 = vmatpush1.xpose.msra.mxu0 0.0
  %606 = vmatprep.subr.mxu0 0.0
  %607 = vmatpush1.xpose.msra.mxu0 0.0
  %608 = vmatprep.mubr.f32.mxu0 0.0
  %609 = vmatmul.mubr.f32.gmra.mrb[0].mxu0 %v536
  %v610 = vpop.f32.mrb[0].mxu0
  %v611 = vadd.f32 0.0, %v610
  %v612 = vpop.f32.mrb[0].mxu0
  %613 = vmatprep.mubr.f32.mxu0 0.0
  %614 = vmatmul.mubr.f32.gmra.mrb[0].mxu0 %v538
  %v615 = vpop.f32.mrb[0].mxu0
  %v616 = vadd.f32 0.0, %v615
  %v617 = vpop.f32.mrb[0].mxu0
  %618 = vdwg.mxu0
  %v619 = vmul.f32 %v611, 0.5
  %v620 = vmul.f32 %v616, 0.5
  %v621 = vmul.f32 %v527, 0.25
  %v622 = vmul.f32 %v528, 0.25
  %v623 = vadd.f32 %v619, %v621
  %v624 = vadd.f32 %v620, %v622
  %v625 = vsel %vm20, %v623, -inf
  %626 = vmax.xlane.f32.xlu0 %v625
  %v627 = vpop.xlane.xlu0 %626
  %v628 = vsel %vm20, %v624, -inf
  %629 = vmax.xlane.f32.xlu0 %v628
  %v630 = vpop.xlane.xlu0 %629
  %v631 = vsub.f32 %v623, %v627
  %v632 = vsub.f32 %v624, %v630
  %v633 = vmul.f32 %v631, 1.442695
  %v634 = vpow.pop %v633
  %v635 = vmul.f32 %v632, 1.442695
  %v636 = vpow.pop %v635
  %v637 = vsel %vm20, %v634, 0.0
  %638 = vadd.xlane.f32.xlu0 %v637
  %v639 = vpop.xlane.xlu0 %638
  %v640 = vsel %vm20, %v636, 0.0
  %641 = vadd.xlane.f32.xlu0 %v640
  %v642 = vpop.xlane.xlu0 %641
  %v643 = vrcp.pop %v639
  %v644 = vrcp.pop %v642
  %v645 = vmul.f32 %v634, %v643
  %v646 = vmul.f32 %v636, %v644
  %647 = vrot.lane.b32.xlu0 %v492, 96
  %v648 = vpop.permute.xlu0 %647
  %649 = vrot.lane.b32.xlu0 %v497, 96
  %v650 = vpop.permute.xlu0 %649
  %v654 = vsel %vm20, %v645, 0
  %v657 = vsel %vm20, %v646, 0
  %659 = vmatprep.subr.mxu0 0.0
  %660 = vmatpush1.msra.mxu0 %v648
  %661 = vmatprep.subr.mxu0 0.0
  %662 = vmatpush1.msra.mxu0 %v650
  %663 = vmatprep.subr.mxu0 0.0
  %664 = vmatpush1.msra.mxu0 0.0
  %665 = vmatprep.subr.mxu0 0.0
  %666 = vmatpush1.msra.mxu0 0.0
  %667 = vmatprep.subr.mxu0 0.0
  %668 = vmatpush1.msra.mxu0 0.0
  %669 = vmatprep.subr.mxu0 0.0
  %670 = vmatpush1.msra.mxu0 0.0
  %671 = vmatprep.subr.mxu0 0.0
  %672 = vmatpush1.msra.mxu0 0.0
  %673 = vmatprep.subr.mxu0 0.0
  %674 = vmatpush1.msra.mxu0 0.0
  %675 = vmatprep.subr.mxu0 0.0
  %676 = vmatpush1.msra.mxu0 0.0
  %677 = vmatprep.subr.mxu0 0.0
  %678 = vmatpush1.msra.mxu0 0.0
  %679 = vmatprep.subr.mxu0 0.0
  %680 = vmatpush1.msra.mxu0 0.0
  %681 = vmatprep.subr.mxu0 0.0
  %682 = vmatpush1.msra.mxu0 0.0
  %683 = vmatprep.subr.mxu0 0.0
  %684 = vmatpush1.msra.mxu0 0.0
  %685 = vmatprep.subr.mxu0 0.0
  %686 = vmatpush1.msra.mxu0 0.0
  %687 = vmatprep.subr.mxu0 0.0
  %688 = vmatpush1.msra.mxu0 0.0
  %689 = vmatprep.subr.mxu0 0.0
  %690 = vmatpush1.msra.mxu0 0.0
  %691 = vmatprep.subr.mxu0 0.0
  %692 = vmatpush1.msra.mxu0 0.0
  %693 = vmatprep.subr.mxu0 0.0
  %694 = vmatpush1.msra.mxu0 0.0
  %695 = vmatprep.subr.mxu0 0.0
  %696 = vmatpush1.msra.mxu0 0.0
  %697 = vmatprep.subr.mxu0 0.0
  %698 = vmatpush1.msra.mxu0 0.0
  %699 = vmatprep.subr.mxu0 0.0
  %700 = vmatpush1.msra.mxu0 0.0
  %701 = vmatprep.subr.mxu0 0.0
  %702 = vmatpush1.msra.mxu0 0.0
  %703 = vmatprep.subr.mxu0 0.0
  %704 = vmatpush1.msra.mxu0 0.0
  %705 = vmatprep.subr.mxu0 0.0
  %706 = vmatpush1.msra.mxu0 0.0
  %707 = vmatprep.subr.mxu0 0.0
  %708 = vmatpush1.msra.mxu0 0.0
  %709 = vmatprep.subr.mxu0 0.0
  %710 = vmatpush1.msra.mxu0 0.0
  %711 = vmatprep.subr.mxu0 0.0
  %712 = vmatpush1.msra.mxu0 0.0
  %713 = vmatprep.subr.mxu0 0.0
  %714 = vmatpush1.msra.mxu0 0.0
  %715 = vmatprep.subr.mxu0 0.0
  %716 = vmatpush1.msra.mxu0 0.0
  %717 = vmatprep.subr.mxu0 0.0
  %718 = vmatpush1.msra.mxu0 0.0
  %719 = vmatprep.subr.mxu0 0.0
  %720 = vmatpush1.msra.mxu0 0.0
  %721 = vmatprep.subr.mxu0 0.0
  %722 = vmatpush1.msra.mxu0 0.0
  %723 = vmatprep.mubr.f32.mxu0 0.0
  %724 = vmatmul.mubr.f32.gmra.mrb[0].mxu0 %v654
  %v725 = vpop.f32.mrb[0].mxu0
  %v726 = vadd.f32 0.0, %v725
  %v727 = vpop.f32.mrb[0].mxu0
  %728 = vmatprep.mubr.f32.mxu0 0.0
  %729 = vmatmul.mubr.f32.gmra.mrb[0].mxu0 %v657
  %v730 = vpop.f32.mrb[0].mxu0
  %v731 = vadd.f32 0.0, %v730
  %v732 = vpop.f32.mrb[0].mxu0
  %733 = vdwg.mxu0
  %734 = vrot.lane.b32.xlu0 %v492, 124
  %v735 = vpop.permute.xlu0 %734
  %736 = vrot.lane.b32.xlu0 %v497, 124
  %v737 = vpop.permute.xlu0 %736
  %738 = vrot.lane.b32.xlu0 %v492, 108
  %v739 = vpop.permute.xlu0 %738
  %740 = vrot.lane.b32.xlu0 %v497, 108
  %v741 = vpop.permute.xlu0 %740
  %v742 = vsel %vm535, %v735, 0
  %v744 = vsel %vm535, %v737, 0
  %v746 = vsel %vm535, %v739, 0
  %v748 = vsel %vm535, %v741, 0
  %750 = vmatprep.subr.mxu0 0.0
  %751 = vmatpush1.xpose.msra.mxu0 %v746
  %752 = vmatprep.subr.mxu0 0.0
  %753 = vmatpush1.xpose.msra.mxu0 %v748
  %754 = vmatprep.subr.mxu0 0.0
  %755 = vmatpush1.xpose.msra.mxu0 0.0
  %756 = vmatprep.subr.mxu0 0.0
  %757 = vmatpush1.xpose.msra.mxu0 0.0
  %758 = vmatprep.subr.mxu0 0.0
  %759 = vmatpush1.xpose.msra.mxu0 0.0
  %760 = vmatprep.subr.mxu0 0.0
  %761 = vmatpush1.xpose.msra.mxu0 0.0
  %762 = vmatprep.subr.mxu0 0.0
  %763 = vmatpush1.xpose.msra.mxu0 0.0
  %764 = vmatprep.subr.mxu0 0.0
  %765 = vmatpush1.xpose.msra.mxu0 0.0
  %766 = vmatprep.subr.mxu0 0.0
  %767 = vmatpush1.xpose.msra.mxu0 0.0
  %768 = vmatprep.subr.mxu0 0.0
  %769 = vmatpush1.xpose.msra.mxu0 0.0
  %770 = vmatprep.subr.mxu0 0.0
  %771 = vmatpush1.xpose.msra.mxu0 0.0
  %772 = vmatprep.subr.mxu0 0.0
  %773 = vmatpush1.xpose.msra.mxu0 0.0
  %774 = vmatprep.subr.mxu0 0.0
  %775 = vmatpush1.xpose.msra.mxu0 0.0
  %776 = vmatprep.subr.mxu0 0.0
  %777 = vmatpush1.xpose.msra.mxu0 0.0
  %778 = vmatprep.subr.mxu0 0.0
  %779 = vmatpush1.xpose.msra.mxu0 0.0
  %780 = vmatprep.subr.mxu0 0.0
  %781 = vmatpush1.xpose.msra.mxu0 0.0
  %782 = vmatprep.subr.mxu0 0.0
  %783 = vmatpush1.xpose.msra.mxu0 0.0
  %784 = vmatprep.subr.mxu0 0.0
  %785 = vmatpush1.xpose.msra.mxu0 0.0
  %786 = vmatprep.subr.mxu0 0.0
  %787 = vmatpush1.xpose.msra.mxu0 0.0
  %788 = vmatprep.subr.mxu0 0.0
  %789 = vmatpush1.xpose.msra.mxu0 0.0
  %790 = vmatprep.subr.mxu0 0.0
  %791 = vmatpush1.xpose.msra.mxu0 0.0
  %792 = vmatprep.subr.mxu0 0.0
  %793 = vmatpush1.xpose.msra.mxu0 0.0
  %794 = vmatprep.subr.mxu0 0.0
  %795 = vmatpush1.xpose.msra.mxu0 0.0
  %796 = vmatprep.subr.mxu0 0.0
  %797 = vmatpush1.xpose.msra.mxu0 0.0
  %798 = vmatprep.subr.mxu0 0.0
  %799 = vmatpush1.xpose.msra.mxu0 0.0
  %800 = vmatprep.subr.mxu0 0.0
  %801 = vmatpush1.xpose.msra.mxu0 0.0
  %802 = vmatprep.subr.mxu0 0.0
  %803 = vmatpush1.xpose.msra.mxu0 0.0
  %804 = vmatprep.subr.mxu0 0.0
  %805 = vmatpush1.xpose.msra.mxu0 0.0
  %806 = vmatprep.subr.mxu0 0.0
  %807 = vmatpush1.xpose.msra.mxu0 0.0
  %808 = vmatprep.subr.mxu0 0.0
  %809 = vmatpush1.xpose.msra.mxu0 0.0
  %810 = vmatprep.subr.mxu0 0.0
  %811 = vmatpush1.xpose.msra.mxu0 0.0
  %812 = vmatprep.subr.mxu0 0.0
  %813 = vmatpush1.xpose.msra.mxu0 0.0
  %814 = vmatprep.mubr.f32.mxu0 0.0
  %815 = vmatmul.mubr.f32.gmra.mrb[0].mxu0 %v742
  %v816 = vpop.f32.mrb[0].mxu0
  %v817 = vadd.f32 0.0, %v816
  %v818 = vpop.f32.mrb[0].mxu0
  %819 = vmatprep.mubr.f32.mxu0 0.0
  %820 = vmatmul.mubr.f32.gmra.mrb[0].mxu0 %v744
  %v821 = vpop.f32.mrb[0].mxu0
  %v822 = vadd.f32 0.0, %v821
  %v823 = vpop.f32.mrb[0].mxu0
  %824 = vdwg.mxu0
  %v825 = vmul.f32 %v817, 0.5
  %v826 = vmul.f32 %v822, 0.5
  %v827 = vmul.f32 %v527, 0.15749013
  %v828 = vmul.f32 %v528, 0.15749013
  %v829 = vadd.f32 %v825, %v827
  %v830 = vadd.f32 %v826, %v828
  %v831 = vsel %vm20, %v829, -inf
  %832 = vmax.xlane.f32.xlu0 %v831
  %v833 = vpop.xlane.xlu0 %832
  %v834 = vsel %vm20, %v830, -inf
  %835 = vmax.xlane.f32.xlu0 %v834
  %v836 = vpop.xlane.xlu0 %835
  %v837 = vsub.f32 %v829, %v833
  %v838 = vsub.f32 %v830, %v836
  %v839 = vmul.f32 %v837, 1.442695
  %v840 = vpow.pop %v839
  %v841 = vmul.f32 %v838, 1.442695
  %v842 = vpow.pop %v841
  %v843 = vsel %vm20, %v840, 0.0
  %844 = vadd.xlane.f32.xlu0 %v843
  %v845 = vpop.xlane.xlu0 %844
  %v846 = vsel %vm20, %v842, 0.0
  %847 = vadd.xlane.f32.xlu0 %v846
  %v848 = vpop.xlane.xlu0 %847
  %v849 = vrcp.pop %v845
  %v850 = vrcp.pop %v848
  %v851 = vmul.f32 %v840, %v849
  %v852 = vmul.f32 %v842, %v850
  %853 = vrot.lane.b32.xlu0 %v492, 92
  %v854 = vpop.permute.xlu0 %853
  %855 = vrot.lane.b32.xlu0 %v497, 92
  %v856 = vpop.permute.xlu0 %855
  %v860 = vsel %vm20, %v851, 0
  %v863 = vsel %vm20, %v852, 0
  %865 = vmatprep.subr.mxu0 0.0
  %866 = vmatpush1.msra.mxu0 %v854
  %867 = vmatprep.subr.mxu0 0.0
  %868 = vmatpush1.msra.mxu0 %v856
  %869 = vmatprep.subr.mxu0 0.0
  %870 = vmatpush1.msra.mxu0 0.0
  %871 = vmatprep.subr.mxu0 0.0
  %872 = vmatpush1.msra.mxu0 0.0
  %873 = vmatprep.subr.mxu0 0.0
  %874 = vmatpush1.msra.mxu0 0.0
  %875 = vmatprep.subr.mxu0 0.0
  %876 = vmatpush1.msra.mxu0 0.0
  %877 = vmatprep.subr.mxu0 0.0
  %878 = vmatpush1.msra.mxu0 0.0
  %879 = vmatprep.subr.mxu0 0.0
  %880 = vmatpush1.msra.mxu0 0.0
  %881 = vmatprep.subr.mxu0 0.0
  %882 = vmatpush1.msra.mxu0 0.0
  %883 = vmatprep.subr.mxu0 0.0
  %884 = vmatpush1.msra.mxu0 0.0
  %885 = vmatprep.subr.mxu0 0.0
  %886 = vmatpush1.msra.mxu0 0.0
  %887 = vmatprep.subr.mxu0 0.0
  %888 = vmatpush1.msra.mxu0 0.0
  %889 = vmatprep.subr.mxu0 0.0
  %890 = vmatpush1.msra.mxu0 0.0
  %891 = vmatprep.subr.mxu0 0.0
  %892 = vmatpush1.msra.mxu0 0.0
  %893 = vmatprep.subr.mxu0 0.0
  %894 = vmatpush1.msra.mxu0 0.0
  %895 = vmatprep.subr.mxu0 0.0
  %896 = vmatpush1.msra.mxu0 0.0
  %897 = vmatprep.subr.mxu0 0.0
  %898 = vmatpush1.msra.mxu0 0.0
  %899 = vmatprep.subr.mxu0 0.0
  %900 = vmatpush1.msra.mxu0 0.0
  %901 = vmatprep.subr.mxu0 0.0
  %902 = vmatpush1.msra.mxu0 0.0
  %903 = vmatprep.subr.mxu0 0.0
  %904 = vmatpush1.msra.mxu0 0.0
  %905 = vmatprep.subr.mxu0 0.0
  %906 = vmatpush1.msra.mxu0 0.0
  %907 = vmatprep.subr.mxu0 0.0
  %908 = vmatpush1.msra.mxu0 0.0
  %909 = vmatprep.subr.mxu0 0.0
  %910 = vmatpush1.msra.mxu0 0.0
  %911 = vmatprep.subr.mxu0 0.0
  %912 = vmatpush1.msra.mxu0 0.0
  %913 = vmatprep.subr.mxu0 0.0
  %914 = vmatpush1.msra.mxu0 0.0
  %915 = vmatprep.subr.mxu0 0.0
  %916 = vmatpush1.msra.mxu0 0.0
  %917 = vmatprep.subr.mxu0 0.0
  %918 = vmatpush1.msra.mxu0 0.0
  %919 = vmatprep.subr.mxu0 0.0
  %920 = vmatpush1.msra.mxu0 0.0
  %921 = vmatprep.subr.mxu0 0.0
  %922 = vmatpush1.msra.mxu0 0.0
  %923 = vmatprep.subr.mxu0 0.0
  %924 = vmatpush1.msra.mxu0 0.0
  %925 = vmatprep.subr.mxu0 0.0
  %926 = vmatpush1.msra.mxu0 0.0
  %927 = vmatprep.subr.mxu0 0.0
  %928 = vmatpush1.msra.mxu0 0.0
  %929 = vmatprep.mubr.f32.mxu0 0.0
  %930 = vmatmul.mubr.f32.gmra.mrb[0].mxu0 %v860
  %v931 = vpop.f32.mrb[0].mxu0
  %v932 = vadd.f32 0.0, %v931
  %v933 = vpop.f32.mrb[0].mxu0
  %934 = vmatprep.mubr.f32.mxu0 0.0
  %935 = vmatmul.mubr.f32.gmra.mrb[0].mxu0 %v863
  %v936 = vpop.f32.mrb[0].mxu0
  %v937 = vadd.f32 0.0, %v936
  %v938 = vpop.f32.mrb[0].mxu0
  %939 = vdwg.mxu0
  %v941 = vrot.slane %v510, 4
  %v943 = vsel %vm535, %v932, 0
  %v946 = vsel %vm535, %v937, 0
  %vm948 = vcmask 1043456
  %v949 = vsel %vm948, %v941, 0
  %951 = vmatprep.subr.mxu0 0.0
  %952 = vmatpush1.msra.mxu0 %v949
  %953 = vmatprep.subr.mxu0 0.0
  %954 = vmatpush1.msra.mxu0 0.0
  %955 = vmatprep.subr.mxu0 0.0
  %956 = vmatpush1.msra.mxu0 0.0
  %957 = vmatprep.subr.mxu0 0.0
  %958 = vmatpush1.msra.mxu0 0.0
  %959 = vmatprep.subr.mxu0 0.0
  %960 = vmatpush1.msra.mxu0 0.0
  %961 = vmatprep.subr.mxu0 0.0
  %962 = vmatpush1.msra.mxu0 0.0
  %963 = vmatprep.subr.mxu0 0.0
  %964 = vmatpush1.msra.mxu0 0.0
  %965 = vmatprep.subr.mxu0 0.0
  %966 = vmatpush1.msra.mxu0 0.0
  %967 = vmatprep.subr.mxu0 0.0
  %968 = vmatpush1.msra.mxu0 0.0
  %969 = vmatprep.subr.mxu0 0.0
  %970 = vmatpush1.msra.mxu0 0.0
  %971 = vmatprep.subr.mxu0 0.0
  %972 = vmatpush1.msra.mxu0 0.0
  %973 = vmatprep.subr.mxu0 0.0
  %974 = vmatpush1.msra.mxu0 0.0
  %975 = vmatprep.subr.mxu0 0.0
  %976 = vmatpush1.msra.mxu0 0.0
  %977 = vmatprep.subr.mxu0 0.0
  %978 = vmatpush1.msra.mxu0 0.0
  %979 = vmatprep.subr.mxu0 0.0
  %980 = vmatpush1.msra.mxu0 0.0
  %981 = vmatprep.subr.mxu0 0.0
  %982 = vmatpush1.msra.mxu0 0.0
  %983 = vmatprep.subr.mxu0 0.0
  %984 = vmatpush1.msra.mxu0 0.0
  %985 = vmatprep.subr.mxu0 0.0
  %986 = vmatpush1.msra.mxu0 0.0
  %987 = vmatprep.subr.mxu0 0.0
  %988 = vmatpush1.msra.mxu0 0.0
  %989 = vmatprep.subr.mxu0 0.0
  %990 = vmatpush1.msra.mxu0 0.0
  %991 = vmatprep.subr.mxu0 0.0
  %992 = vmatpush1.msra.mxu0 0.0
  %993 = vmatprep.subr.mxu0 0.0
  %994 = vmatpush1.msra.mxu0 0.0
  %995 = vmatprep.subr.mxu0 0.0
  %996 = vmatpush1.msra.mxu0 0.0
  %997 = vmatprep.subr.mxu0 0.0
  %998 = vmatpush1.msra.mxu0 0.0
  %999 = vmatprep.subr.mxu0 0.0
  %1000 = vmatpush1.msra.mxu0 0.0
  %1001 = vmatprep.subr.mxu0 0.0
  %1002 = vmatpush1.msra.mxu0 0.0
  %1003 = vmatprep.subr.mxu0 0.0
  %1004 = vmatpush1.msra.mxu0 0.0
  %1005 = vmatprep.subr.mxu0 0.0
  %1006 = vmatpush1.msra.mxu0 0.0
  %1007 = vmatprep.subr.mxu0 0.0
  %1008 = vmatpush1.msra.mxu0 0.0
  %1009 = vmatprep.subr.mxu0 0.0
  %1010 = vmatpush1.msra.mxu0 0.0
  %1011 = vmatprep.subr.mxu0 0.0
  %1012 = vmatpush1.msra.mxu0 0.0
  %1013 = vmatprep.subr.mxu0 0.0
  %1014 = vmatpush1.msra.mxu0 0.0
  %1015 = vmatprep.mubr.f32.mxu0 0.0
  %1016 = vmatmul.mubr.f32.gmra.mrb[0].mxu0 %v943
  %v1017 = vpop.f32.mrb[0].mxu0
  %v1018 = vadd.f32 0.0, %v1017
  %v1019 = vpop.f32.mrb[0].mxu0
  %1020 = vmatprep.mubr.f32.mxu0 0.0
  %1021 = vmatmul.mubr.f32.gmra.mrb[0].mxu0 %v946
  %v1022 = vpop.f32.mrb[0].mxu0
  %v1023 = vadd.f32 0.0, %v1022
  %v1024 = vpop.f32.mrb[0].mxu0
  %1025 = vdwg.mxu0
  %v1027 = vsel %vm535, %v726, 0
  %v1030 = vsel %vm535, %v731, 0
  %v1032 = vsel %vm948, %v510, 0
  %1034 = vmatprep.subr.mxu0 0.0
  %1035 = vmatpush1.msra.mxu0 %v1032
  %1036 = vmatprep.subr.mxu0 0.0
  %1037 = vmatpush1.msra.mxu0 0.0
  %1038 = vmatprep.subr.mxu0 0.0
  %1039 = vmatpush1.msra.mxu0 0.0
  %1040 = vmatprep.subr.mxu0 0.0
  %1041 = vmatpush1.msra.mxu0 0.0
  %1042 = vmatprep.subr.mxu0 0.0
  %1043 = vmatpush1.msra.mxu0 0.0
  %1044 = vmatprep.subr.mxu0 0.0
  %1045 = vmatpush1.msra.mxu0 0.0
  %1046 = vmatprep.subr.mxu0 0.0
  %1047 = vmatpush1.msra.mxu0 0.0
  %1048 = vmatprep.subr.mxu0 0.0
  %1049 = vmatpush1.msra.mxu0 0.0
  %1050 = vmatprep.subr.mxu0 0.0
  %1051 = vmatpush1.msra.mxu0 0.0
  %1052 = vmatprep.subr.mxu0 0.0
  %1053 = vmatpush1.msra.mxu0 0.0
  %1054 = vmatprep.subr.mxu0 0.0
  %1055 = vmatpush1.msra.mxu0 0.0
  %1056 = vmatprep.subr.mxu0 0.0
  %1057 = vmatpush1.msra.mxu0 0.0
  %1058 = vmatprep.subr.mxu0 0.0
  %1059 = vmatpush1.msra.mxu0 0.0
  %1060 = vmatprep.subr.mxu0 0.0
  %1061 = vmatpush1.msra.mxu0 0.0
  %1062 = vmatprep.subr.mxu0 0.0
  %1063 = vmatpush1.msra.mxu0 0.0
  %1064 = vmatprep.subr.mxu0 0.0
  %1065 = vmatpush1.msra.mxu0 0.0
  %1066 = vmatprep.subr.mxu0 0.0
  %1067 = vmatpush1.msra.mxu0 0.0
  %1068 = vmatprep.subr.mxu0 0.0
  %1069 = vmatpush1.msra.mxu0 0.0
  %1070 = vmatprep.subr.mxu0 0.0
  %1071 = vmatpush1.msra.mxu0 0.0
  %1072 = vmatprep.subr.mxu0 0.0
  %1073 = vmatpush1.msra.mxu0 0.0
  %1074 = vmatprep.subr.mxu0 0.0
  %1075 = vmatpush1.msra.mxu0 0.0
  %1076 = vmatprep.subr.mxu0 0.0
  %1077 = vmatpush1.msra.mxu0 0.0
  %1078 = vmatprep.subr.mxu0 0.0
  %1079 = vmatpush1.msra.mxu0 0.0
  %1080 = vmatprep.subr.mxu0 0.0
  %1081 = vmatpush1.msra.mxu0 0.0
  %1082 = vmatprep.subr.mxu0 0.0
  %1083 = vmatpush1.msra.mxu0 0.0
  %1084 = vmatprep.subr.mxu0 0.0
  %1085 = vmatpush1.msra.mxu0 0.0
  %1086 = vmatprep.subr.mxu0 0.0
  %1087 = vmatpush1.msra.mxu0 0.0
  %1088 = vmatprep.subr.mxu0 0.0
  %1089 = vmatpush1.msra.mxu0 0.0
  %1090 = vmatprep.subr.mxu0 0.0
  %1091 = vmatpush1.msra.mxu0 0.0
  %1092 = vmatprep.subr.mxu0 0.0
  %1093 = vmatpush1.msra.mxu0 0.0
  %1094 = vmatprep.subr.mxu0 0.0
  %1095 = vmatpush1.msra.mxu0 0.0
  %1096 = vmatprep.subr.mxu0 0.0
  %1097 = vmatpush1.msra.mxu0 0.0
  %1098 = vmatprep.mubr.f32.mxu0 0.0
  %1099 = vmatmul.mubr.f32.gmra.mrb[0].mxu0 %v1027
  %v1100 = vpop.f32.mrb[0].mxu0
  %v1101 = vadd.f32 %v1018, %v1100
  %v1102 = vpop.f32.mrb[0].mxu0
  %1103 = vmatprep.mubr.f32.mxu0 0.0
  %1104 = vmatmul.mubr.f32.gmra.mrb[0].mxu0 %v1030
  %v1105 = vpop.f32.mrb[0].mxu0
  %v1106 = vadd.f32 %v1023, %v1105
  %v1107 = vpop.f32.mrb[0].mxu0
  %1108 = vdwg.mxu0
  %1109 = vrot.lane.b32.xlu0 %v492, 120
  %v1110 = vpop.permute.xlu0 %1109
  %1111 = vrot.lane.b32.xlu0 %v497, 120
  %v1112 = vpop.permute.xlu0 %1111
  %1113 = vrot.lane.b32.xlu0 %v492, 104
  %v1114 = vpop.permute.xlu0 %1113
  %1115 = vrot.lane.b32.xlu0 %v497, 104
  %v1116 = vpop.permute.xlu0 %1115
  %v1117 = vsel %vm535, %v1110, 0
  %v1119 = vsel %vm535, %v1112, 0
  %v1121 = vsel %vm535, %v1114, 0
  %v1123 = vsel %vm535, %v1116, 0
  %1125 = vmatprep.subr.mxu0 0.0
  %1126 = vmatpush1.xpose.msra.mxu0 %v1121
  %1127 = vmatprep.subr.mxu0 0.0
  %1128 = vmatpush1.xpose.msra.mxu0 %v1123
  %1129 = vmatprep.subr.mxu0 0.0
  %1130 = vmatpush1.xpose.msra.mxu0 0.0
  %1131 = vmatprep.subr.mxu0 0.0
  %1132 = vmatpush1.xpose.msra.mxu0 0.0
  %1133 = vmatprep.subr.mxu0 0.0
  %1134 = vmatpush1.xpose.msra.mxu0 0.0
  %1135 = vmatprep.subr.mxu0 0.0
  %1136 = vmatpush1.xpose.msra.mxu0 0.0
  %1137 = vmatprep.subr.mxu0 0.0
  %1138 = vmatpush1.xpose.msra.mxu0 0.0
  %1139 = vmatprep.subr.mxu0 0.0
  %1140 = vmatpush1.xpose.msra.mxu0 0.0
  %1141 = vmatprep.subr.mxu0 0.0
  %1142 = vmatpush1.xpose.msra.mxu0 0.0
  %1143 = vmatprep.subr.mxu0 0.0
  %1144 = vmatpush1.xpose.msra.mxu0 0.0
  %1145 = vmatprep.subr.mxu0 0.0
  %1146 = vmatpush1.xpose.msra.mxu0 0.0
  %1147 = vmatprep.subr.mxu0 0.0
  %1148 = vmatpush1.xpose.msra.mxu0 0.0
  %1149 = vmatprep.subr.mxu0 0.0
  %1150 = vmatpush1.xpose.msra.mxu0 0.0
  %1151 = vmatprep.subr.mxu0 0.0
  %1152 = vmatpush1.xpose.msra.mxu0 0.0
  %1153 = vmatprep.subr.mxu0 0.0
  %1154 = vmatpush1.xpose.msra.mxu0 0.0
  %1155 = vmatprep.subr.mxu0 0.0
  %1156 = vmatpush1.xpose.msra.mxu0 0.0
  %1157 = vmatprep.subr.mxu0 0.0
  %1158 = vmatpush1.xpose.msra.mxu0 0.0
  %1159 = vmatprep.subr.mxu0 0.0
  %1160 = vmatpush1.xpose.msra.mxu0 0.0
  %1161 = vmatprep.subr.mxu0 0.0
  %1162 = vmatpush1.xpose.msra.mxu0 0.0
  %1163 = vmatprep.subr.mxu0 0.0
  %1164 = vmatpush1.xpose.msra.mxu0 0.0
  %1165 = vmatprep.subr.mxu0 0.0
  %1166 = vmatpush1.xpose.msra.mxu0 0.0
  %1167 = vmatprep.subr.mxu0 0.0
  %1168 = vmatpush1.xpose.msra.mxu0 0.0
  %1169 = vmatprep.subr.mxu0 0.0
  %1170 = vmatpush1.xpose.msra.mxu0 0.0
  %1171 = vmatprep.subr.mxu0 0.0
  %1172 = vmatpush1.xpose.msra.mxu0 0.0
  %1173 = vmatprep.subr.mxu0 0.0
  %1174 = vmatpush1.xpose.msra.mxu0 0.0
  %1175 = vmatprep.subr.mxu0 0.0
  %1176 = vmatpush1.xpose.msra.mxu0 0.0
  %1177 = vmatprep.subr.mxu0 0.0
  %1178 = vmatpush1.xpose.msra.mxu0 0.0
  %1179 = vmatprep.subr.mxu0 0.0
  %1180 = vmatpush1.xpose.msra.mxu0 0.0
  %1181 = vmatprep.subr.mxu0 0.0
  %1182 = vmatpush1.xpose.msra.mxu0 0.0
  %1183 = vmatprep.subr.mxu0 0.0
  %1184 = vmatpush1.xpose.msra.mxu0 0.0
  %1185 = vmatprep.subr.mxu0 0.0
  %1186 = vmatpush1.xpose.msra.mxu0 0.0
  %1187 = vmatprep.subr.mxu0 0.0
  %1188 = vmatpush1.xpose.msra.mxu0 0.0
  %1189 = vmatprep.mubr.f32.mxu0 0.0
  %1190 = vmatmul.mubr.f32.gmra.mrb[0].mxu0 %v1117
  %v1191 = vpop.f32.mrb[0].mxu0
  %v1192 = vadd.f32 0.0, %v1191
  %v1193 = vpop.f32.mrb[0].mxu0
  %1194 = vmatprep.mubr.f32.mxu0 0.0
  %1195 = vmatmul.mubr.f32.gmra.mrb[0].mxu0 %v1119
  %v1196 = vpop.f32.mrb[0].mxu0
  %v1197 = vadd.f32 0.0, %v1196
  %v1198 = vpop.f32.mrb[0].mxu0
  %1199 = vdwg.mxu0
  %v1200 = vmul.f32 %v1192, 0.5
  %v1201 = vmul.f32 %v1197, 0.5
  %v1202 = vmul.f32 %v527, 0.0625
  %v1203 = vmul.f32 %v528, 0.0625
  %v1204 = vadd.f32 %v1200, %v1202
  %v1205 = vadd.f32 %v1201, %v1203
  %v1206 = vsel %vm20, %v1204, -inf
  %1207 = vmax.xlane.f32.xlu0 %v1206
  %v1208 = vpop.xlane.xlu0 %1207
  %v1209 = vsel %vm20, %v1205, -inf
  %1210 = vmax.xlane.f32.xlu0 %v1209
  %v1211 = vpop.xlane.xlu0 %1210
  %v1212 = vsub.f32 %v1204, %v1208
  %v1213 = vsub.f32 %v1205, %v1211
  %v1214 = vmul.f32 %v1212, 1.442695
  %v1215 = vpow.pop %v1214
  %v1216 = vmul.f32 %v1213, 1.442695
  %v1217 = vpow.pop %v1216
  %v1218 = vsel %vm20, %v1215, 0.0
  %1219 = vadd.xlane.f32.xlu0 %v1218
  %v1220 = vpop.xlane.xlu0 %1219
  %v1221 = vsel %vm20, %v1217, 0.0
  %1222 = vadd.xlane.f32.xlu0 %v1221
  %v1223 = vpop.xlane.xlu0 %1222
  %v1224 = vrcp.pop %v1220
  %v1225 = vrcp.pop %v1223
  %v1226 = vmul.f32 %v1215, %v1224
  %v1227 = vmul.f32 %v1217, %v1225
  %1228 = vrot.lane.b32.xlu0 %v492, 88
  %v1229 = vpop.permute.xlu0 %1228
  %1230 = vrot.lane.b32.xlu0 %v497, 88
  %v1231 = vpop.permute.xlu0 %1230
  %v1235 = vsel %vm20, %v1226, 0
  %v1238 = vsel %vm20, %v1227, 0
  %1240 = vmatprep.subr.mxu0 0.0
  %1241 = vmatpush1.msra.mxu0 %v1229
  %1242 = vmatprep.subr.mxu0 0.0
  %1243 = vmatpush1.msra.mxu0 %v1231
  %1244 = vmatprep.subr.mxu0 0.0
  %1245 = vmatpush1.msra.mxu0 0.0
  %1246 = vmatprep.subr.mxu0 0.0
  %1247 = vmatpush1.msra.mxu0 0.0
  %1248 = vmatprep.subr.mxu0 0.0
  %1249 = vmatpush1.msra.mxu0 0.0
  %1250 = vmatprep.subr.mxu0 0.0
  %1251 = vmatpush1.msra.mxu0 0.0
  %1252 = vmatprep.subr.mxu0 0.0
  %1253 = vmatpush1.msra.mxu0 0.0
  %1254 = vmatprep.subr.mxu0 0.0
  %1255 = vmatpush1.msra.mxu0 0.0
  %1256 = vmatprep.subr.mxu0 0.0
  %1257 = vmatpush1.msra.mxu0 0.0
  %1258 = vmatprep.subr.mxu0 0.0
  %1259 = vmatpush1.msra.mxu0 0.0
  %1260 = vmatprep.subr.mxu0 0.0
  %1261 = vmatpush1.msra.mxu0 0.0
  %1262 = vmatprep.subr.mxu0 0.0
  %1263 = vmatpush1.msra.mxu0 0.0
  %1264 = vmatprep.subr.mxu0 0.0
  %1265 = vmatpush1.msra.mxu0 0.0
  %1266 = vmatprep.subr.mxu0 0.0
  %1267 = vmatpush1.msra.mxu0 0.0
  %1268 = vmatprep.subr.mxu0 0.0
  %1269 = vmatpush1.msra.mxu0 0.0
  %1270 = vmatprep.subr.mxu0 0.0
  %1271 = vmatpush1.msra.mxu0 0.0
  %1272 = vmatprep.subr.mxu0 0.0
  %1273 = vmatpush1.msra.mxu0 0.0
  %1274 = vmatprep.subr.mxu0 0.0
  %1275 = vmatpush1.msra.mxu0 0.0
  %1276 = vmatprep.subr.mxu0 0.0
  %1277 = vmatpush1.msra.mxu0 0.0
  %1278 = vmatprep.subr.mxu0 0.0
  %1279 = vmatpush1.msra.mxu0 0.0
  %1280 = vmatprep.subr.mxu0 0.0
  %1281 = vmatpush1.msra.mxu0 0.0
  %1282 = vmatprep.subr.mxu0 0.0
  %1283 = vmatpush1.msra.mxu0 0.0
  %1284 = vmatprep.subr.mxu0 0.0
  %1285 = vmatpush1.msra.mxu0 0.0
  %1286 = vmatprep.subr.mxu0 0.0
  %1287 = vmatpush1.msra.mxu0 0.0
  %1288 = vmatprep.subr.mxu0 0.0
  %1289 = vmatpush1.msra.mxu0 0.0
  %1290 = vmatprep.subr.mxu0 0.0
  %1291 = vmatpush1.msra.mxu0 0.0
  %1292 = vmatprep.subr.mxu0 0.0
  %1293 = vmatpush1.msra.mxu0 0.0
  %1294 = vmatprep.subr.mxu0 0.0
  %1295 = vmatpush1.msra.mxu0 0.0
  %1296 = vmatprep.subr.mxu0 0.0
  %1297 = vmatpush1.msra.mxu0 0.0
  %1298 = vmatprep.subr.mxu0 0.0
  %1299 = vmatpush1.msra.mxu0 0.0
  %1300 = vmatprep.subr.mxu0 0.0
  %1301 = vmatpush1.msra.mxu0 0.0
  %1302 = vmatprep.subr.mxu0 0.0
  %1303 = vmatpush1.msra.mxu0 0.0
  %1304 = vmatprep.mubr.f32.mxu0 0.0
  %1305 = vmatmul.mubr.f32.gmra.mrb[0].mxu0 %v1235
  %v1306 = vpop.f32.mrb[0].mxu0
  %v1307 = vadd.f32 0.0, %v1306
  %v1308 = vpop.f32.mrb[0].mxu0
  %1309 = vmatprep.mubr.f32.mxu0 0.0
  %1310 = vmatmul.mubr.f32.gmra.mrb[0].mxu0 %v1238
  %v1311 = vpop.f32.mrb[0].mxu0
  %v1312 = vadd.f32 0.0, %v1311
  %v1313 = vpop.f32.mrb[0].mxu0
  %1314 = vdwg.mxu0
  %v1316 = vsel %vm535, %v1307, 0
  %v1319 = vsel %vm535, %v1312, 0
  %v1322 = vsel %vm948, %v511, 0
  %1324 = vmatprep.subr.mxu0 0.0
  %1325 = vmatpush1.msra.mxu0 %v1322
  %1326 = vmatprep.subr.mxu0 0.0
  %1327 = vmatpush1.msra.mxu0 0.0
  %1328 = vmatprep.subr.mxu0 0.0
  %1329 = vmatpush1.msra.mxu0 0.0
  %1330 = vmatprep.subr.mxu0 0.0
  %1331 = vmatpush1.msra.mxu0 0.0
  %1332 = vmatprep.subr.mxu0 0.0
  %1333 = vmatpush1.msra.mxu0 0.0
  %1334 = vmatprep.subr.mxu0 0.0
  %1335 = vmatpush1.msra.mxu0 0.0
  %1336 = vmatprep.subr.mxu0 0.0
  %1337 = vmatpush1.msra.mxu0 0.0
  %1338 = vmatprep.subr.mxu0 0.0
  %1339 = vmatpush1.msra.mxu0 0.0
  %1340 = vmatprep.subr.mxu0 0.0
  %1341 = vmatpush1.msra.mxu0 0.0
  %1342 = vmatprep.subr.mxu0 0.0
  %1343 = vmatpush1.msra.mxu0 0.0
  %1344 = vmatprep.subr.mxu0 0.0
  %1345 = vmatpush1.msra.mxu0 0.0
  %1346 = vmatprep.subr.mxu0 0.0
  %1347 = vmatpush1.msra.mxu0 0.0
  %1348 = vmatprep.subr.mxu0 0.0
  %1349 = vmatpush1.msra.mxu0 0.0
  %1350 = vmatprep.subr.mxu0 0.0
  %1351 = vmatpush1.msra.mxu0 0.0
  %1352 = vmatprep.subr.mxu0 0.0
  %1353 = vmatpush1.msra.mxu0 0.0
  %1354 = vmatprep.subr.mxu0 0.0
  %1355 = vmatpush1.msra.mxu0 0.0
  %1356 = vmatprep.subr.mxu0 0.0
  %1357 = vmatpush1.msra.mxu0 0.0
  %1358 = vmatprep.subr.mxu0 0.0
  %1359 = vmatpush1.msra.mxu0 0.0
  %1360 = vmatprep.subr.mxu0 0.0
  %1361 = vmatpush1.msra.mxu0 0.0
  %1362 = vmatprep.subr.mxu0 0.0
  %1363 = vmatpush1.msra.mxu0 0.0
  %1364 = vmatprep.subr.mxu0 0.0
  %1365 = vmatpush1.msra.mxu0 0.0
  %1366 = vmatprep.subr.mxu0 0.0
  %1367 = vmatpush1.msra.mxu0 0.0
  %1368 = vmatprep.subr.mxu0 0.0
  %1369 = vmatpush1.msra.mxu0 0.0
  %1370 = vmatprep.subr.mxu0 0.0
  %1371 = vmatpush1.msra.mxu0 0.0
  %1372 = vmatprep.subr.mxu0 0.0
  %1373 = vmatpush1.msra.mxu0 0.0
  %1374 = vmatprep.subr.mxu0 0.0
  %1375 = vmatpush1.msra.mxu0 0.0
  %1376 = vmatprep.subr.mxu0 0.0
  %1377 = vmatpush1.msra.mxu0 0.0
  %1378 = vmatprep.subr.mxu0 0.0
  %1379 = vmatpush1.msra.mxu0 0.0
  %1380 = vmatprep.subr.mxu0 0.0
  %1381 = vmatpush1.msra.mxu0 0.0
  %1382 = vmatprep.subr.mxu0 0.0
  %1383 = vmatpush1.msra.mxu0 0.0
  %1384 = vmatprep.subr.mxu0 0.0
  %1385 = vmatpush1.msra.mxu0 0.0
  %1386 = vmatprep.subr.mxu0 0.0
  %1387 = vmatpush1.msra.mxu0 0.0
  %1388 = vmatprep.mubr.f32.mxu0 0.0
  %1389 = vmatmul.mubr.f32.gmra.mrb[0].mxu0 %v1316
  %v1390 = vpop.f32.mrb[0].mxu0
  %v1391 = vadd.f32 0.0, %v1390
  %v1392 = vpop.f32.mrb[0].mxu0
  %1393 = vmatprep.mubr.f32.mxu0 0.0
  %1394 = vmatmul.mubr.f32.gmra.mrb[0].mxu0 %v1319
  %v1395 = vpop.f32.mrb[0].mxu0
  %v1396 = vadd.f32 0.0, %v1395
  %v1397 = vpop.f32.mrb[0].mxu0
  %1398 = vdwg.mxu0
  %v1399 = vadd.f32 %v1101, %v1391
  %v1400 = vadd.f32 %v1106, %v1396
  %1401 = vrot.lane.b32.xlu0 %v492, 116
  %v1402 = vpop.permute.xlu0 %1401
  %1403 = vrot.lane.b32.xlu0 %v497, 116
  %v1404 = vpop.permute.xlu0 %1403
  %1405 = vrot.lane.b32.xlu0 %v492, 100
  %v1406 = vpop.permute.xlu0 %1405
  %1407 = vrot.lane.b32.xlu0 %v497, 100
  %v1408 = vpop.permute.xlu0 %1407
  %v1409 = vsel %vm535, %v1402, 0
  %v1411 = vsel %vm535, %v1404, 0
  %v1413 = vsel %vm535, %v1406, 0
  %v1415 = vsel %vm535, %v1408, 0
  %1417 = vmatprep.subr.mxu0 0.0
  %1418 = vmatpush1.xpose.msra.mxu0 %v1413
  %1419 = vmatprep.subr.mxu0 0.0
  %1420 = vmatpush1.xpose.msra.mxu0 %v1415
  %1421 = vmatprep.subr.mxu0 0.0
  %1422 = vmatpush1.xpose.msra.mxu0 0.0
  %1423 = vmatprep.subr.mxu0 0.0
  %1424 = vmatpush1.xpose.msra.mxu0 0.0
  %1425 = vmatprep.subr.mxu0 0.0
  %1426 = vmatpush1.xpose.msra.mxu0 0.0
  %1427 = vmatprep.subr.mxu0 0.0
  %1428 = vmatpush1.xpose.msra.mxu0 0.0
  %1429 = vmatprep.subr.mxu0 0.0
  %1430 = vmatpush1.xpose.msra.mxu0 0.0
  %1431 = vmatprep.subr.mxu0 0.0
  %1432 = vmatpush1.xpose.msra.mxu0 0.0
  %1433 = vmatprep.subr.mxu0 0.0
  %1434 = vmatpush1.xpose.msra.mxu0 0.0
  %1435 = vmatprep.subr.mxu0 0.0
  %1436 = vmatpush1.xpose.msra.mxu0 0.0
  %1437 = vmatprep.subr.mxu0 0.0
  %1438 = vmatpush1.xpose.msra.mxu0 0.0
  %1439 = vmatprep.subr.mxu0 0.0
  %1440 = vmatpush1.xpose.msra.mxu0 0.0
  %1441 = vmatprep.subr.mxu0 0.0
  %1442 = vmatpush1.xpose.msra.mxu0 0.0
  %1443 = vmatprep.subr.mxu0 0.0
  %1444 = vmatpush1.xpose.msra.mxu0 0.0
  %1445 = vmatprep.subr.mxu0 0.0
  %1446 = vmatpush1.xpose.msra.mxu0 0.0
  %1447 = vmatprep.subr.mxu0 0.0
  %1448 = vmatpush1.xpose.msra.mxu0 0.0
  %1449 = vmatprep.subr.mxu0 0.0
  %1450 = vmatpush1.xpose.msra.mxu0 0.0
  %1451 = vmatprep.subr.mxu0 0.0
  %1452 = vmatpush1.xpose.msra.mxu0 0.0
  %1453 = vmatprep.subr.mxu0 0.0
  %1454 = vmatpush1.xpose.msra.mxu0 0.0
  %1455 = vmatprep.subr.mxu0 0.0
  %1456 = vmatpush1.xpose.msra.mxu0 0.0
  %1457 = vmatprep.subr.mxu0 0.0
  %1458 = vmatpush1.xpose.msra.mxu0 0.0
  %1459 = vmatprep.subr.mxu0 0.0
  %1460 = vmatpush1.xpose.msra.mxu0 0.0
  %1461 = vmatprep.subr.mxu0 0.0
  %1462 = vmatpush1.xpose.msra.mxu0 0.0
  %1463 = vmatprep.subr.mxu0 0.0
  %1464 = vmatpush1.xpose.msra.mxu0 0.0
  %1465 = vmatprep.subr.mxu0 0.0
  %1466 = vmatpush1.xpose.msra.mxu0 0.0
  %1467 = vmatprep.subr.mxu0 0.0
  %1468 = vmatpush1.xpose.msra.mxu0 0.0
  %1469 = vmatprep.subr.mxu0 0.0
  %1470 = vmatpush1.xpose.msra.mxu0 0.0
  %1471 = vmatprep.subr.mxu0 0.0
  %1472 = vmatpush1.xpose.msra.mxu0 0.0
  %1473 = vmatprep.subr.mxu0 0.0
  %1474 = vmatpush1.xpose.msra.mxu0 0.0
  %1475 = vmatprep.subr.mxu0 0.0
  %1476 = vmatpush1.xpose.msra.mxu0 0.0
  %1477 = vmatprep.subr.mxu0 0.0
  %1478 = vmatpush1.xpose.msra.mxu0 0.0
  %1479 = vmatprep.subr.mxu0 0.0
  %1480 = vmatpush1.xpose.msra.mxu0 0.0
  %1481 = vmatprep.mubr.f32.mxu0 0.0
  %1482 = vmatmul.mubr.f32.gmra.mrb[0].mxu0 %v1409
  %v1483 = vpop.f32.mrb[0].mxu0
  %v1484 = vadd.f32 0.0, %v1483
  %v1485 = vpop.f32.mrb[0].mxu0
  %1486 = vmatprep.mubr.f32.mxu0 0.0
  %1487 = vmatmul.mubr.f32.gmra.mrb[0].mxu0 %v1411
  %v1488 = vpop.f32.mrb[0].mxu0
  %v1489 = vadd.f32 0.0, %v1488
  %v1490 = vpop.f32.mrb[0].mxu0
  %1491 = vdwg.mxu0
  %v1492 = vmul.f32 %v1484, 0.5
  %v1493 = vmul.f32 %v1489, 0.5
  %v1494 = vmul.f32 %v527, 0.00390625
  %v1495 = vmul.f32 %v528, 0.00390625
  %v1496 = vadd.f32 %v1492, %v1494
  %v1497 = vadd.f32 %v1493, %v1495
  %v1498 = vsel %vm20, %v1496, -inf
  %1499 = vmax.xlane.f32.xlu0 %v1498
  %v1500 = vpop.xlane.xlu0 %1499
  %v1501 = vsel %vm20, %v1497, -inf
  %1502 = vmax.xlane.f32.xlu0 %v1501
  %v1503 = vpop.xlane.xlu0 %1502
  %v1504 = vsub.f32 %v1496, %v1500
  %v1505 = vsub.f32 %v1497, %v1503
  %v1506 = vmul.f32 %v1504, 1.442695
  %v1507 = vpow.pop %v1506
  %v1508 = vmul.f32 %v1505, 1.442695
  %v1509 = vpow.pop %v1508
  %v1510 = vsel %vm20, %v1507, 0.0
  %1511 = vadd.xlane.f32.xlu0 %v1510
  %v1512 = vpop.xlane.xlu0 %1511
  %v1513 = vsel %vm20, %v1509, 0.0
  %1514 = vadd.xlane.f32.xlu0 %v1513
  %v1515 = vpop.xlane.xlu0 %1514
  %v1516 = vrcp.pop %v1512
  %v1517 = vrcp.pop %v1515
  %v1518 = vmul.f32 %v1507, %v1516
  %v1519 = vmul.f32 %v1509, %v1517
  %1520 = vrot.lane.b32.xlu0 %v492, 84
  %v1521 = vpop.permute.xlu0 %1520
  %1522 = vrot.lane.b32.xlu0 %v497, 84
  %v1523 = vpop.permute.xlu0 %1522
  %v1527 = vsel %vm20, %v1518, 0
  %v1530 = vsel %vm20, %v1519, 0
  %1532 = vmatprep.subr.mxu0 0.0
  %1533 = vmatpush1.msra.mxu0 %v1521
  %1534 = vmatprep.subr.mxu0 0.0
  %1535 = vmatpush1.msra.mxu0 %v1523
  %1536 = vmatprep.subr.mxu0 0.0
  %1537 = vmatpush1.msra.mxu0 0.0
  %1538 = vmatprep.subr.mxu0 0.0
  %1539 = vmatpush1.msra.mxu0 0.0
  %1540 = vmatprep.subr.mxu0 0.0
  %1541 = vmatpush1.msra.mxu0 0.0
  %1542 = vmatprep.subr.mxu0 0.0
  %1543 = vmatpush1.msra.mxu0 0.0
  %1544 = vmatprep.subr.mxu0 0.0
  %1545 = vmatpush1.msra.mxu0 0.0
  %1546 = vmatprep.subr.mxu0 0.0
  %1547 = vmatpush1.msra.mxu0 0.0
  %1548 = vmatprep.subr.mxu0 0.0
  %1549 = vmatpush1.msra.mxu0 0.0
  %1550 = vmatprep.subr.mxu0 0.0
  %1551 = vmatpush1.msra.mxu0 0.0
  %1552 = vmatprep.subr.mxu0 0.0
  %1553 = vmatpush1.msra.mxu0 0.0
  %1554 = vmatprep.subr.mxu0 0.0
  %1555 = vmatpush1.msra.mxu0 0.0
  %1556 = vmatprep.subr.mxu0 0.0
  %1557 = vmatpush1.msra.mxu0 0.0
  %1558 = vmatprep.subr.mxu0 0.0
  %1559 = vmatpush1.msra.mxu0 0.0
  %1560 = vmatprep.subr.mxu0 0.0
  %1561 = vmatpush1.msra.mxu0 0.0
  %1562 = vmatprep.subr.mxu0 0.0
  %1563 = vmatpush1.msra.mxu0 0.0
  %1564 = vmatprep.subr.mxu0 0.0
  %1565 = vmatpush1.msra.mxu0 0.0
  %1566 = vmatprep.subr.mxu0 0.0
  %1567 = vmatpush1.msra.mxu0 0.0
  %1568 = vmatprep.subr.mxu0 0.0
  %1569 = vmatpush1.msra.mxu0 0.0
  %1570 = vmatprep.subr.mxu0 0.0
  %1571 = vmatpush1.msra.mxu0 0.0
  %1572 = vmatprep.subr.mxu0 0.0
  %1573 = vmatpush1.msra.mxu0 0.0
  %1574 = vmatprep.subr.mxu0 0.0
  %1575 = vmatpush1.msra.mxu0 0.0
  %1576 = vmatprep.subr.mxu0 0.0
  %1577 = vmatpush1.msra.mxu0 0.0
  %1578 = vmatprep.subr.mxu0 0.0
  %1579 = vmatpush1.msra.mxu0 0.0
  %1580 = vmatprep.subr.mxu0 0.0
  %1581 = vmatpush1.msra.mxu0 0.0
  %1582 = vmatprep.subr.mxu0 0.0
  %1583 = vmatpush1.msra.mxu0 0.0
  %1584 = vmatprep.subr.mxu0 0.0
  %1585 = vmatpush1.msra.mxu0 0.0
  %1586 = vmatprep.subr.mxu0 0.0
  %1587 = vmatpush1.msra.mxu0 0.0
  %1588 = vmatprep.subr.mxu0 0.0
  %1589 = vmatpush1.msra.mxu0 0.0
  %1590 = vmatprep.subr.mxu0 0.0
  %1591 = vmatpush1.msra.mxu0 0.0
  %1592 = vmatprep.subr.mxu0 0.0
  %1593 = vmatpush1.msra.mxu0 0.0
  %1594 = vmatprep.subr.mxu0 0.0
  %1595 = vmatpush1.msra.mxu0 0.0
  %1596 = vmatprep.mubr.f32.mxu0 0.0
  %1597 = vmatmul.mubr.f32.gmra.mrb[0].mxu0 %v1527
  %v1598 = vpop.f32.mrb[0].mxu0
  %v1599 = vadd.f32 0.0, %v1598
  %v1600 = vpop.f32.mrb[0].mxu0
  %1601 = vmatprep.mubr.f32.mxu0 0.0
  %1602 = vmatmul.mubr.f32.gmra.mrb[0].mxu0 %v1530
  %v1603 = vpop.f32.mrb[0].mxu0
  %v1604 = vadd.f32 0.0, %v1603
  %v1605 = vpop.f32.mrb[0].mxu0
  %1606 = vdwg.mxu0
  %v1607 = vrot.slane %v511, 4
  %v1609 = vsel %vm535, %v1599, 0
  %v1612 = vsel %vm535, %v1604, 0
  %v1614 = vsel %vm948, %v1607, 0
  %1616 = vmatprep.subr.mxu0 0.0
  %1617 = vmatpush1.msra.mxu0 %v1614
  %1618 = vmatprep.subr.mxu0 0.0
  %1619 = vmatpush1.msra.mxu0 0.0
  %1620 = vmatprep.subr.mxu0 0.0
  %1621 = vmatpush1.msra.mxu0 0.0
  %1622 = vmatprep.subr.mxu0 0.0
  %1623 = vmatpush1.msra.mxu0 0.0
  %1624 = vmatprep.subr.mxu0 0.0
  %1625 = vmatpush1.msra.mxu0 0.0
  %1626 = vmatprep.subr.mxu0 0.0
  %1627 = vmatpush1.msra.mxu0 0.0
  %1628 = vmatprep.subr.mxu0 0.0
  %1629 = vmatpush1.msra.mxu0 0.0
  %1630 = vmatprep.subr.mxu0 0.0
  %1631 = vmatpush1.msra.mxu0 0.0
  %1632 = vmatprep.subr.mxu0 0.0
  %1633 = vmatpush1.msra.mxu0 0.0
  %1634 = vmatprep.subr.mxu0 0.0
  %1635 = vmatpush1.msra.mxu0 0.0
  %1636 = vmatprep.subr.mxu0 0.0
  %1637 = vmatpush1.msra.mxu0 0.0
  %1638 = vmatprep.subr.mxu0 0.0
  %1639 = vmatpush1.msra.mxu0 0.0
  %1640 = vmatprep.subr.mxu0 0.0
  %1641 = vmatpush1.msra.mxu0 0.0
  %1642 = vmatprep.subr.mxu0 0.0
  %1643 = vmatpush1.msra.mxu0 0.0
  %1644 = vmatprep.subr.mxu0 0.0
  %1645 = vmatpush1.msra.mxu0 0.0
  %1646 = vmatprep.subr.mxu0 0.0
  %1647 = vmatpush1.msra.mxu0 0.0
  %1648 = vmatprep.subr.mxu0 0.0
  %1649 = vmatpush1.msra.mxu0 0.0
  %1650 = vmatprep.subr.mxu0 0.0
  %1651 = vmatpush1.msra.mxu0 0.0
  %1652 = vmatprep.subr.mxu0 0.0
  %1653 = vmatpush1.msra.mxu0 0.0
  %1654 = vmatprep.subr.mxu0 0.0
  %1655 = vmatpush1.msra.mxu0 0.0
  %1656 = vmatprep.subr.mxu0 0.0
  %1657 = vmatpush1.msra.mxu0 0.0
  %1658 = vmatprep.subr.mxu0 0.0
  %1659 = vmatpush1.msra.mxu0 0.0
  %1660 = vmatprep.subr.mxu0 0.0
  %1661 = vmatpush1.msra.mxu0 0.0
  %1662 = vmatprep.subr.mxu0 0.0
  %1663 = vmatpush1.msra.mxu0 0.0
  %1664 = vmatprep.subr.mxu0 0.0
  %1665 = vmatpush1.msra.mxu0 0.0
  %1666 = vmatprep.subr.mxu0 0.0
  %1667 = vmatpush1.msra.mxu0 0.0
  %1668 = vmatprep.subr.mxu0 0.0
  %1669 = vmatpush1.msra.mxu0 0.0
  %1670 = vmatprep.subr.mxu0 0.0
  %1671 = vmatpush1.msra.mxu0 0.0
  %1672 = vmatprep.subr.mxu0 0.0
  %1673 = vmatpush1.msra.mxu0 0.0
  %1674 = vmatprep.subr.mxu0 0.0
  %1675 = vmatpush1.msra.mxu0 0.0
  %1676 = vmatprep.subr.mxu0 0.0
  %1677 = vmatpush1.msra.mxu0 0.0
  %1678 = vmatprep.subr.mxu0 0.0
  %1679 = vmatpush1.msra.mxu0 0.0
  %1680 = vmatprep.mubr.f32.mxu0 0.0
  %1681 = vmatmul.mubr.f32.gmra.mrb[0].mxu0 %v1609
  %v1682 = vpop.f32.mrb[0].mxu0
  %v1683 = vadd.f32 0.0, %v1682
  %v1684 = vpop.f32.mrb[0].mxu0
  %1685 = vmatprep.mubr.f32.mxu0 0.0
  %1686 = vmatmul.mubr.f32.gmra.mrb[0].mxu0 %v1612
  %v1687 = vpop.f32.mrb[0].mxu0
  %v1688 = vadd.f32 0.0, %v1687
  %v1689 = vpop.f32.mrb[0].mxu0
  %1690 = vdwg.mxu0
  %v1691 = vadd.f32 %v1399, %v1683
  %v1692 = vadd.f32 %v1400, %v1688
  %1695 = vrot.lane.b32.xlu0 %v502, 112
  %v1696 = vpop.permute.xlu0 %1695
  %1697 = vrot.lane.b32.xlu0 %v507, 112
  %v1698 = vpop.permute.xlu0 %1697
  %v1699 = vsel %vm535, %v502, 0
  %v1701 = vsel %vm535, %v507, 0
  %v1703 = vsel %vm535, %v1696, 0
  %v1705 = vsel %vm535, %v1698, 0
  %1707 = vmatprep.subr.mxu0 0.0
  %1708 = vmatpush1.xpose.msra.mxu0 %v1703
  %1709 = vmatprep.subr.mxu0 0.0
  %1710 = vmatpush1.xpose.msra.mxu0 %v1705
  %1711 = vmatprep.subr.mxu0 0.0
  %1712 = vmatpush1.xpose.msra.mxu0 0.0
  %1713 = vmatprep.subr.mxu0 0.0
  %1714 = vmatpush1.xpose.msra.mxu0 0.0
  %1715 = vmatprep.subr.mxu0 0.0
  %1716 = vmatpush1.xpose.msra.mxu0 0.0
  %1717 = vmatprep.subr.mxu0 0.0
  %1718 = vmatpush1.xpose.msra.mxu0 0.0
  %1719 = vmatprep.subr.mxu0 0.0
  %1720 = vmatpush1.xpose.msra.mxu0 0.0
  %1721 = vmatprep.subr.mxu0 0.0
  %1722 = vmatpush1.xpose.msra.mxu0 0.0
  %1723 = vmatprep.subr.mxu0 0.0
  %1724 = vmatpush1.xpose.msra.mxu0 0.0
  %1725 = vmatprep.subr.mxu0 0.0
  %1726 = vmatpush1.xpose.msra.mxu0 0.0
  %1727 = vmatprep.subr.mxu0 0.0
  %1728 = vmatpush1.xpose.msra.mxu0 0.0
  %1729 = vmatprep.subr.mxu0 0.0
  %1730 = vmatpush1.xpose.msra.mxu0 0.0
  %1731 = vmatprep.subr.mxu0 0.0
  %1732 = vmatpush1.xpose.msra.mxu0 0.0
  %1733 = vmatprep.subr.mxu0 0.0
  %1734 = vmatpush1.xpose.msra.mxu0 0.0
  %1735 = vmatprep.subr.mxu0 0.0
  %1736 = vmatpush1.xpose.msra.mxu0 0.0
  %1737 = vmatprep.subr.mxu0 0.0
  %1738 = vmatpush1.xpose.msra.mxu0 0.0
  %1739 = vmatprep.subr.mxu0 0.0
  %1740 = vmatpush1.xpose.msra.mxu0 0.0
  %1741 = vmatprep.subr.mxu0 0.0
  %1742 = vmatpush1.xpose.msra.mxu0 0.0
  %1743 = vmatprep.subr.mxu0 0.0
  %1744 = vmatpush1.xpose.msra.mxu0 0.0
  %1745 = vmatprep.subr.mxu0 0.0
  %1746 = vmatpush1.xpose.msra.mxu0 0.0
  %1747 = vmatprep.subr.mxu0 0.0
  %1748 = vmatpush1.xpose.msra.mxu0 0.0
  %1749 = vmatprep.subr.mxu0 0.0
  %1750 = vmatpush1.xpose.msra.mxu0 0.0
  %1751 = vmatprep.subr.mxu0 0.0
  %1752 = vmatpush1.xpose.msra.mxu0 0.0
  %1753 = vmatprep.subr.mxu0 0.0
  %1754 = vmatpush1.xpose.msra.mxu0 0.0
  %1755 = vmatprep.subr.mxu0 0.0
  %1756 = vmatpush1.xpose.msra.mxu0 0.0
  %1757 = vmatprep.subr.mxu0 0.0
  %1758 = vmatpush1.xpose.msra.mxu0 0.0
  %1759 = vmatprep.subr.mxu0 0.0
  %1760 = vmatpush1.xpose.msra.mxu0 0.0
  %1761 = vmatprep.subr.mxu0 0.0
  %1762 = vmatpush1.xpose.msra.mxu0 0.0
  %1763 = vmatprep.subr.mxu0 0.0
  %1764 = vmatpush1.xpose.msra.mxu0 0.0
  %1765 = vmatprep.subr.mxu0 0.0
  %1766 = vmatpush1.xpose.msra.mxu0 0.0
  %1767 = vmatprep.subr.mxu0 0.0
  %1768 = vmatpush1.xpose.msra.mxu0 0.0
  %1769 = vmatprep.subr.mxu0 0.0
  %1770 = vmatpush1.xpose.msra.mxu0 0.0
  %1771 = vmatprep.mubr.f32.mxu0 0.0
  %1772 = vmatmul.mubr.f32.gmra.mrb[0].mxu0 %v1699
  %v1773 = vpop.f32.mrb[0].mxu0
  %v1774 = vadd.f32 0.0, %v1773
  %v1775 = vpop.f32.mrb[0].mxu0
  %1776 = vmatprep.mubr.f32.mxu0 0.0
  %1777 = vmatmul.mubr.f32.gmra.mrb[0].mxu0 %v1701
  %v1778 = vpop.f32.mrb[0].mxu0
  %v1779 = vadd.f32 0.0, %v1778
  %v1780 = vpop.f32.mrb[0].mxu0
  %1781 = vdwg.mxu0
  %v1782 = vmul.f32 %v1774, 0.5
  %v1783 = vmul.f32 %v1779, 0.5
  %v1784 = vadd.f32 %v1782, %v621
  %v1785 = vadd.f32 %v1783, %v622
  %v1786 = vsel %vm20, %v1784, -inf
  %1787 = vmax.xlane.f32.xlu0 %v1786
  %v1788 = vpop.xlane.xlu0 %1787
  %v1789 = vsel %vm20, %v1785, -inf
  %1790 = vmax.xlane.f32.xlu0 %v1789
  %v1791 = vpop.xlane.xlu0 %1790
  %v1792 = vsub.f32 %v1784, %v1788
  %v1793 = vsub.f32 %v1785, %v1791
  %v1794 = vmul.f32 %v1792, 1.442695
  %v1795 = vpow.pop %v1794
  %v1796 = vmul.f32 %v1793, 1.442695
  %v1797 = vpow.pop %v1796
  %v1798 = vsel %vm20, %v1795, 0.0
  %1799 = vadd.xlane.f32.xlu0 %v1798
  %v1800 = vpop.xlane.xlu0 %1799
  %v1801 = vsel %vm20, %v1797, 0.0
  %1802 = vadd.xlane.f32.xlu0 %v1801
  %v1803 = vpop.xlane.xlu0 %1802
  %v1804 = vrcp.pop %v1800
  %v1805 = vrcp.pop %v1803
  %v1806 = vmul.f32 %v1795, %v1804
  %v1807 = vmul.f32 %v1797, %v1805
  %1808 = vrot.lane.b32.xlu0 %v502, 96
  %v1809 = vpop.permute.xlu0 %1808
  %1810 = vrot.lane.b32.xlu0 %v507, 96
  %v1811 = vpop.permute.xlu0 %1810
  %v1815 = vsel %vm20, %v1806, 0
  %v1818 = vsel %vm20, %v1807, 0
  %1820 = vmatprep.subr.mxu0 0.0
  %1821 = vmatpush1.msra.mxu0 %v1809
  %1822 = vmatprep.subr.mxu0 0.0
  %1823 = vmatpush1.msra.mxu0 %v1811
  %1824 = vmatprep.subr.mxu0 0.0
  %1825 = vmatpush1.msra.mxu0 0.0
  %1826 = vmatprep.subr.mxu0 0.0
  %1827 = vmatpush1.msra.mxu0 0.0
  %1828 = vmatprep.subr.mxu0 0.0
  %1829 = vmatpush1.msra.mxu0 0.0
  %1830 = vmatprep.subr.mxu0 0.0
  %1831 = vmatpush1.msra.mxu0 0.0
  %1832 = vmatprep.subr.mxu0 0.0
  %1833 = vmatpush1.msra.mxu0 0.0
  %1834 = vmatprep.subr.mxu0 0.0
  %1835 = vmatpush1.msra.mxu0 0.0
  %1836 = vmatprep.subr.mxu0 0.0
  %1837 = vmatpush1.msra.mxu0 0.0
  %1838 = vmatprep.subr.mxu0 0.0
  %1839 = vmatpush1.msra.mxu0 0.0
  %1840 = vmatprep.subr.mxu0 0.0
  %1841 = vmatpush1.msra.mxu0 0.0
  %1842 = vmatprep.subr.mxu0 0.0
  %1843 = vmatpush1.msra.mxu0 0.0
  %1844 = vmatprep.subr.mxu0 0.0
  %1845 = vmatpush1.msra.mxu0 0.0
  %1846 = vmatprep.subr.mxu0 0.0
  %1847 = vmatpush1.msra.mxu0 0.0
  %1848 = vmatprep.subr.mxu0 0.0
  %1849 = vmatpush1.msra.mxu0 0.0
  %1850 = vmatprep.subr.mxu0 0.0
  %1851 = vmatpush1.msra.mxu0 0.0
  %1852 = vmatprep.subr.mxu0 0.0
  %1853 = vmatpush1.msra.mxu0 0.0
  %1854 = vmatprep.subr.mxu0 0.0
  %1855 = vmatpush1.msra.mxu0 0.0
  %1856 = vmatprep.subr.mxu0 0.0
  %1857 = vmatpush1.msra.mxu0 0.0
  %1858 = vmatprep.subr.mxu0 0.0
  %1859 = vmatpush1.msra.mxu0 0.0
  %1860 = vmatprep.subr.mxu0 0.0
  %1861 = vmatpush1.msra.mxu0 0.0
  %1862 = vmatprep.subr.mxu0 0.0
  %1863 = vmatpush1.msra.mxu0 0.0
  %1864 = vmatprep.subr.mxu0 0.0
  %1865 = vmatpush1.msra.mxu0 0.0
  %1866 = vmatprep.subr.mxu0 0.0
  %1867 = vmatpush1.msra.mxu0 0.0
  %1868 = vmatprep.subr.mxu0 0.0
  %1869 = vmatpush1.msra.mxu0 0.0
  %1870 = vmatprep.subr.mxu0 0.0
  %1871 = vmatpush1.msra.mxu0 0.0
  %1872 = vmatprep.subr.mxu0 0.0
  %1873 = vmatpush1.msra.mxu0 0.0
  %1874 = vmatprep.subr.mxu0 0.0
  %1875 = vmatpush1.msra.mxu0 0.0
  %1876 = vmatprep.subr.mxu0 0.0
  %1877 = vmatpush1.msra.mxu0 0.0
  %1878 = vmatprep.subr.mxu0 0.0
  %1879 = vmatpush1.msra.mxu0 0.0
  %1880 = vmatprep.subr.mxu0 0.0
  %1881 = vmatpush1.msra.mxu0 0.0
  %1882 = vmatprep.subr.mxu0 0.0
  %1883 = vmatpush1.msra.mxu0 0.0
  %1884 = vmatprep.mubr.f32.mxu0 0.0
  %1885 = vmatmul.mubr.f32.gmra.mrb[0].mxu0 %v1815
  %v1886 = vpop.f32.mrb[0].mxu0
  %v1887 = vadd.f32 0.0, %v1886
  %v1888 = vpop.f32.mrb[0].mxu0
  %1889 = vmatprep.mubr.f32.mxu0 0.0
  %1890 = vmatmul.mubr.f32.gmra.mrb[0].mxu0 %v1818
  %v1891 = vpop.f32.mrb[0].mxu0
  %v1892 = vadd.f32 0.0, %v1891
  %v1893 = vpop.f32.mrb[0].mxu0
  %1894 = vdwg.mxu0
  %1895 = vrot.lane.b32.xlu0 %v502, 124
  %v1896 = vpop.permute.xlu0 %1895
  %1897 = vrot.lane.b32.xlu0 %v507, 124
  %v1898 = vpop.permute.xlu0 %1897
  %1899 = vrot.lane.b32.xlu0 %v502, 108
  %v1900 = vpop.permute.xlu0 %1899
  %1901 = vrot.lane.b32.xlu0 %v507, 108
  %v1902 = vpop.permute.xlu0 %1901
  %v1903 = vsel %vm535, %v1896, 0
  %v1905 = vsel %vm535, %v1898, 0
  %v1907 = vsel %vm535, %v1900, 0
  %v1909 = vsel %vm535, %v1902, 0
  %1911 = vmatprep.subr.mxu0 0.0
  %1912 = vmatpush1.xpose.msra.mxu0 %v1907
  %1913 = vmatprep.subr.mxu0 0.0
  %1914 = vmatpush1.xpose.msra.mxu0 %v1909
  %1915 = vmatprep.subr.mxu0 0.0
  %1916 = vmatpush1.xpose.msra.mxu0 0.0
  %1917 = vmatprep.subr.mxu0 0.0
  %1918 = vmatpush1.xpose.msra.mxu0 0.0
  %1919 = vmatprep.subr.mxu0 0.0
  %1920 = vmatpush1.xpose.msra.mxu0 0.0
  %1921 = vmatprep.subr.mxu0 0.0
  %1922 = vmatpush1.xpose.msra.mxu0 0.0
  %1923 = vmatprep.subr.mxu0 0.0
  %1924 = vmatpush1.xpose.msra.mxu0 0.0
  %1925 = vmatprep.subr.mxu0 0.0
  %1926 = vmatpush1.xpose.msra.mxu0 0.0
  %1927 = vmatprep.subr.mxu0 0.0
  %1928 = vmatpush1.xpose.msra.mxu0 0.0
  %1929 = vmatprep.subr.mxu0 0.0
  %1930 = vmatpush1.xpose.msra.mxu0 0.0
  %1931 = vmatprep.subr.mxu0 0.0
  %1932 = vmatpush1.xpose.msra.mxu0 0.0
  %1933 = vmatprep.subr.mxu0 0.0
  %1934 = vmatpush1.xpose.msra.mxu0 0.0
  %1935 = vmatprep.subr.mxu0 0.0
  %1936 = vmatpush1.xpose.msra.mxu0 0.0
  %1937 = vmatprep.subr.mxu0 0.0
  %1938 = vmatpush1.xpose.msra.mxu0 0.0
  %1939 = vmatprep.subr.mxu0 0.0
  %1940 = vmatpush1.xpose.msra.mxu0 0.0
  %1941 = vmatprep.subr.mxu0 0.0
  %1942 = vmatpush1.xpose.msra.mxu0 0.0
  %1943 = vmatprep.subr.mxu0 0.0
  %1944 = vmatpush1.xpose.msra.mxu0 0.0
  %1945 = vmatprep.subr.mxu0 0.0
  %1946 = vmatpush1.xpose.msra.mxu0 0.0
  %1947 = vmatprep.subr.mxu0 0.0
  %1948 = vmatpush1.xpose.msra.mxu0 0.0
  %1949 = vmatprep.subr.mxu0 0.0
  %1950 = vmatpush1.xpose.msra.mxu0 0.0
  %1951 = vmatprep.subr.mxu0 0.0
  %1952 = vmatpush1.xpose.msra.mxu0 0.0
  %1953 = vmatprep.subr.mxu0 0.0
  %1954 = vmatpush1.xpose.msra.mxu0 0.0
  %1955 = vmatprep.subr.mxu0 0.0
  %1956 = vmatpush1.xpose.msra.mxu0 0.0
  %1957 = vmatprep.subr.mxu0 0.0
  %1958 = vmatpush1.xpose.msra.mxu0 0.0
  %1959 = vmatprep.subr.mxu0 0.0
  %1960 = vmatpush1.xpose.msra.mxu0 0.0
  %1961 = vmatprep.subr.mxu0 0.0
  %1962 = vmatpush1.xpose.msra.mxu0 0.0
  %1963 = vmatprep.subr.mxu0 0.0
  %1964 = vmatpush1.xpose.msra.mxu0 0.0
  %1965 = vmatprep.subr.mxu0 0.0
  %1966 = vmatpush1.xpose.msra.mxu0 0.0
  %1967 = vmatprep.subr.mxu0 0.0
  %1968 = vmatpush1.xpose.msra.mxu0 0.0
  %1969 = vmatprep.subr.mxu0 0.0
  %1970 = vmatpush1.xpose.msra.mxu0 0.0
  %1971 = vmatprep.subr.mxu0 0.0
  %1972 = vmatpush1.xpose.msra.mxu0 0.0
  %1973 = vmatprep.subr.mxu0 0.0
  %1974 = vmatpush1.xpose.msra.mxu0 0.0
  %1975 = vmatprep.mubr.f32.mxu0 0.0
  %1976 = vmatmul.mubr.f32.gmra.mrb[0].mxu0 %v1903
  %v1977 = vpop.f32.mrb[0].mxu0
  %v1978 = vadd.f32 0.0, %v1977
  %v1979 = vpop.f32.mrb[0].mxu0
  %1980 = vmatprep.mubr.f32.mxu0 0.0
  %1981 = vmatmul.mubr.f32.gmra.mrb[0].mxu0 %v1905
  %v1982 = vpop.f32.mrb[0].mxu0
  %v1983 = vadd.f32 0.0, %v1982
  %v1984 = vpop.f32.mrb[0].mxu0
  %1985 = vdwg.mxu0
  %v1986 = vmul.f32 %v1978, 0.5
  %v1987 = vmul.f32 %v1983, 0.5
  %v1988 = vadd.f32 %v1986, %v827
  %v1989 = vadd.f32 %v1987, %v828
  %v1990 = vsel %vm20, %v1988, -inf
  %1991 = vmax.xlane.f32.xlu0 %v1990
  %v1992 = vpop.xlane.xlu0 %1991
  %v1993 = vsel %vm20, %v1989, -inf
  %1994 = vmax.xlane.f32.xlu0 %v1993
  %v1995 = vpop.xlane.xlu0 %1994
  %v1996 = vsub.f32 %v1988, %v1992
  %v1997 = vsub.f32 %v1989, %v1995
  %v1998 = vmul.f32 %v1996, 1.442695
  %v1999 = vpow.pop %v1998
  %v2000 = vmul.f32 %v1997, 1.442695
  %v2001 = vpow.pop %v2000
  %v2002 = vsel %vm20, %v1999, 0.0
  %2003 = vadd.xlane.f32.xlu0 %v2002
  %v2004 = vpop.xlane.xlu0 %2003
  %v2005 = vsel %vm20, %v2001, 0.0
  %2006 = vadd.xlane.f32.xlu0 %v2005
  %v2007 = vpop.xlane.xlu0 %2006
  %v2008 = vrcp.pop %v2004
  %v2009 = vrcp.pop %v2007
  %v2010 = vmul.f32 %v1999, %v2008
  %v2011 = vmul.f32 %v2001, %v2009
  %2012 = vrot.lane.b32.xlu0 %v502, 92
  %v2013 = vpop.permute.xlu0 %2012
  %2014 = vrot.lane.b32.xlu0 %v507, 92
  %v2015 = vpop.permute.xlu0 %2014
  %v2019 = vsel %vm20, %v2010, 0
  %v2022 = vsel %vm20, %v2011, 0
  %2024 = vmatprep.subr.mxu0 0.0
  %2025 = vmatpush1.msra.mxu0 %v2013
  %2026 = vmatprep.subr.mxu0 0.0
  %2027 = vmatpush1.msra.mxu0 %v2015
  %2028 = vmatprep.subr.mxu0 0.0
  %2029 = vmatpush1.msra.mxu0 0.0
  %2030 = vmatprep.subr.mxu0 0.0
  %2031 = vmatpush1.msra.mxu0 0.0
  %2032 = vmatprep.subr.mxu0 0.0
  %2033 = vmatpush1.msra.mxu0 0.0
  %2034 = vmatprep.subr.mxu0 0.0
  %2035 = vmatpush1.msra.mxu0 0.0
  %2036 = vmatprep.subr.mxu0 0.0
  %2037 = vmatpush1.msra.mxu0 0.0
  %2038 = vmatprep.subr.mxu0 0.0
  %2039 = vmatpush1.msra.mxu0 0.0
  %2040 = vmatprep.subr.mxu0 0.0
  %2041 = vmatpush1.msra.mxu0 0.0
  %2042 = vmatprep.subr.mxu0 0.0
  %2043 = vmatpush1.msra.mxu0 0.0
  %2044 = vmatprep.subr.mxu0 0.0
  %2045 = vmatpush1.msra.mxu0 0.0
  %2046 = vmatprep.subr.mxu0 0.0
  %2047 = vmatpush1.msra.mxu0 0.0
  %2048 = vmatprep.subr.mxu0 0.0
  %2049 = vmatpush1.msra.mxu0 0.0
  %2050 = vmatprep.subr.mxu0 0.0
  %2051 = vmatpush1.msra.mxu0 0.0
  %2052 = vmatprep.subr.mxu0 0.0
  %2053 = vmatpush1.msra.mxu0 0.0
  %2054 = vmatprep.subr.mxu0 0.0
  %2055 = vmatpush1.msra.mxu0 0.0
  %2056 = vmatprep.subr.mxu0 0.0
  %2057 = vmatpush1.msra.mxu0 0.0
  %2058 = vmatprep.subr.mxu0 0.0
  %2059 = vmatpush1.msra.mxu0 0.0
  %2060 = vmatprep.subr.mxu0 0.0
  %2061 = vmatpush1.msra.mxu0 0.0
  %2062 = vmatprep.subr.mxu0 0.0
  %2063 = vmatpush1.msra.mxu0 0.0
  %2064 = vmatprep.subr.mxu0 0.0
  %2065 = vmatpush1.msra.mxu0 0.0
  %2066 = vmatprep.subr.mxu0 0.0
  %2067 = vmatpush1.msra.mxu0 0.0
  %2068 = vmatprep.subr.mxu0 0.0
  %2069 = vmatpush1.msra.mxu0 0.0
  %2070 = vmatprep.subr.mxu0 0.0
  %2071 = vmatpush1.msra.mxu0 0.0
  %2072 = vmatprep.subr.mxu0 0.0
  %2073 = vmatpush1.msra.mxu0 0.0
  %2074 = vmatprep.subr.mxu0 0.0
  %2075 = vmatpush1.msra.mxu0 0.0
  %2076 = vmatprep.subr.mxu0 0.0
  %2077 = vmatpush1.msra.mxu0 0.0
  %2078 = vmatprep.subr.mxu0 0.0
  %2079 = vmatpush1.msra.mxu0 0.0
  %2080 = vmatprep.subr.mxu0 0.0
  %2081 = vmatpush1.msra.mxu0 0.0
  %2082 = vmatprep.subr.mxu0 0.0
  %2083 = vmatpush1.msra.mxu0 0.0
  %2084 = vmatprep.subr.mxu0 0.0
  %2085 = vmatpush1.msra.mxu0 0.0
  %2086 = vmatprep.subr.mxu0 0.0
  %2087 = vmatpush1.msra.mxu0 0.0
  %2088 = vmatprep.mubr.f32.mxu0 0.0
  %2089 = vmatmul.mubr.f32.gmra.mrb[0].mxu0 %v2019
  %v2090 = vpop.f32.mrb[0].mxu0
  %v2091 = vadd.f32 0.0, %v2090
  %v2092 = vpop.f32.mrb[0].mxu0
  %2093 = vmatprep.mubr.f32.mxu0 0.0
  %2094 = vmatmul.mubr.f32.gmra.mrb[0].mxu0 %v2022
  %v2095 = vpop.f32.mrb[0].mxu0
  %v2096 = vadd.f32 0.0, %v2095
  %v2097 = vpop.f32.mrb[0].mxu0
  %2098 = vdwg.mxu0
  %v2100 = vsel %vm535, %v2091, 0
  %v2103 = vsel %vm535, %v2096, 0
  %2105 = vmatprep.subr.mxu0 0.0
  %2106 = vmatpush1.msra.mxu0 %v949
  %2107 = vmatprep.subr.mxu0 0.0
  %2108 = vmatpush1.msra.mxu0 0.0
  %2109 = vmatprep.subr.mxu0 0.0
  %2110 = vmatpush1.msra.mxu0 0.0
  %2111 = vmatprep.subr.mxu0 0.0
  %2112 = vmatpush1.msra.mxu0 0.0
  %2113 = vmatprep.subr.mxu0 0.0
  %2114 = vmatpush1.msra.mxu0 0.0
  %2115 = vmatprep.subr.mxu0 0.0
  %2116 = vmatpush1.msra.mxu0 0.0
  %2117 = vmatprep.subr.mxu0 0.0
  %2118 = vmatpush1.msra.mxu0 0.0
  %2119 = vmatprep.subr.mxu0 0.0
  %2120 = vmatpush1.msra.mxu0 0.0
  %2121 = vmatprep.subr.mxu0 0.0
  %2122 = vmatpush1.msra.mxu0 0.0
  %2123 = vmatprep.subr.mxu0 0.0
  %2124 = vmatpush1.msra.mxu0 0.0
  %2125 = vmatprep.subr.mxu0 0.0
  %2126 = vmatpush1.msra.mxu0 0.0
  %2127 = vmatprep.subr.mxu0 0.0
  %2128 = vmatpush1.msra.mxu0 0.0
  %2129 = vmatprep.subr.mxu0 0.0
  %2130 = vmatpush1.msra.mxu0 0.0
  %2131 = vmatprep.subr.mxu0 0.0
  %2132 = vmatpush1.msra.mxu0 0.0
  %2133 = vmatprep.subr.mxu0 0.0
  %2134 = vmatpush1.msra.mxu0 0.0
  %2135 = vmatprep.subr.mxu0 0.0
  %2136 = vmatpush1.msra.mxu0 0.0
  %2137 = vmatprep.subr.mxu0 0.0
  %2138 = vmatpush1.msra.mxu0 0.0
  %2139 = vmatprep.subr.mxu0 0.0
  %2140 = vmatpush1.msra.mxu0 0.0
  %2141 = vmatprep.subr.mxu0 0.0
  %2142 = vmatpush1.msra.mxu0 0.0
  %2143 = vmatprep.subr.mxu0 0.0
  %2144 = vmatpush1.msra.mxu0 0.0
  %2145 = vmatprep.subr.mxu0 0.0
  %2146 = vmatpush1.msra.mxu0 0.0
  %2147 = vmatprep.subr.mxu0 0.0
  %2148 = vmatpush1.msra.mxu0 0.0
  %2149 = vmatprep.subr.mxu0 0.0
  %2150 = vmatpush1.msra.mxu0 0.0
  %2151 = vmatprep.subr.mxu0 0.0
  %2152 = vmatpush1.msra.mxu0 0.0
  %2153 = vmatprep.subr.mxu0 0.0
  %2154 = vmatpush1.msra.mxu0 0.0
  %2155 = vmatprep.subr.mxu0 0.0
  %2156 = vmatpush1.msra.mxu0 0.0
  %2157 = vmatprep.subr.mxu0 0.0
  %2158 = vmatpush1.msra.mxu0 0.0
  %2159 = vmatprep.subr.mxu0 0.0
  %2160 = vmatpush1.msra.mxu0 0.0
  %2161 = vmatprep.subr.mxu0 0.0
  %2162 = vmatpush1.msra.mxu0 0.0
  %2163 = vmatprep.subr.mxu0 0.0
  %2164 = vmatpush1.msra.mxu0 0.0
  %2165 = vmatprep.subr.mxu0 0.0
  %2166 = vmatpush1.msra.mxu0 0.0
  %2167 = vmatprep.subr.mxu0 0.0
  %2168 = vmatpush1.msra.mxu0 0.0
  %2169 = vmatprep.mubr.f32.mxu0 0.0
  %2170 = vmatmul.mubr.f32.gmra.mrb[0].mxu0 %v2100
  %v2171 = vpop.f32.mrb[0].mxu0
  %v2172 = vadd.f32 0.0, %v2171
  %v2173 = vpop.f32.mrb[0].mxu0
  %2174 = vmatprep.mubr.f32.mxu0 0.0
  %2175 = vmatmul.mubr.f32.gmra.mrb[0].mxu0 %v2103
  %v2176 = vpop.f32.mrb[0].mxu0
  %v2177 = vadd.f32 0.0, %v2176
  %v2178 = vpop.f32.mrb[0].mxu0
  %2179 = vdwg.mxu0
  %v2181 = vsel %vm535, %v1887, 0
  %v2184 = vsel %vm535, %v1892, 0
  %2186 = vmatprep.subr.mxu0 0.0
  %2187 = vmatpush1.msra.mxu0 %v1032
  %2188 = vmatprep.subr.mxu0 0.0
  %2189 = vmatpush1.msra.mxu0 0.0
  %2190 = vmatprep.subr.mxu0 0.0
  %2191 = vmatpush1.msra.mxu0 0.0
  %2192 = vmatprep.subr.mxu0 0.0
  %2193 = vmatpush1.msra.mxu0 0.0
  %2194 = vmatprep.subr.mxu0 0.0
  %2195 = vmatpush1.msra.mxu0 0.0
  %2196 = vmatprep.subr.mxu0 0.0
  %2197 = vmatpush1.msra.mxu0 0.0
  %2198 = vmatprep.subr.mxu0 0.0
  %2199 = vmatpush1.msra.mxu0 0.0
  %2200 = vmatprep.subr.mxu0 0.0
  %2201 = vmatpush1.msra.mxu0 0.0
  %2202 = vmatprep.subr.mxu0 0.0
  %2203 = vmatpush1.msra.mxu0 0.0
  %2204 = vmatprep.subr.mxu0 0.0
  %2205 = vmatpush1.msra.mxu0 0.0
  %2206 = vmatprep.subr.mxu0 0.0
  %2207 = vmatpush1.msra.mxu0 0.0
  %2208 = vmatprep.subr.mxu0 0.0
  %2209 = vmatpush1.msra.mxu0 0.0
  %2210 = vmatprep.subr.mxu0 0.0
  %2211 = vmatpush1.msra.mxu0 0.0
  %2212 = vmatprep.subr.mxu0 0.0
  %2213 = vmatpush1.msra.mxu0 0.0
  %2214 = vmatprep.subr.mxu0 0.0
  %2215 = vmatpush1.msra.mxu0 0.0
  %2216 = vmatprep.subr.mxu0 0.0
  %2217 = vmatpush1.msra.mxu0 0.0
  %2218 = vmatprep.subr.mxu0 0.0
  %2219 = vmatpush1.msra.mxu0 0.0
  %2220 = vmatprep.subr.mxu0 0.0
  %2221 = vmatpush1.msra.mxu0 0.0
  %2222 = vmatprep.subr.mxu0 0.0
  %2223 = vmatpush1.msra.mxu0 0.0
  %2224 = vmatprep.subr.mxu0 0.0
  %2225 = vmatpush1.msra.mxu0 0.0
  %2226 = vmatprep.subr.mxu0 0.0
  %2227 = vmatpush1.msra.mxu0 0.0
  %2228 = vmatprep.subr.mxu0 0.0
  %2229 = vmatpush1.msra.mxu0 0.0
  %2230 = vmatprep.subr.mxu0 0.0
  %2231 = vmatpush1.msra.mxu0 0.0
  %2232 = vmatprep.subr.mxu0 0.0
  %2233 = vmatpush1.msra.mxu0 0.0
  %2234 = vmatprep.subr.mxu0 0.0
  %2235 = vmatpush1.msra.mxu0 0.0
  %2236 = vmatprep.subr.mxu0 0.0
  %2237 = vmatpush1.msra.mxu0 0.0
  %2238 = vmatprep.subr.mxu0 0.0
  %2239 = vmatpush1.msra.mxu0 0.0
  %2240 = vmatprep.subr.mxu0 0.0
  %2241 = vmatpush1.msra.mxu0 0.0
  %2242 = vmatprep.subr.mxu0 0.0
  %2243 = vmatpush1.msra.mxu0 0.0
  %2244 = vmatprep.subr.mxu0 0.0
  %2245 = vmatpush1.msra.mxu0 0.0
  %2246 = vmatprep.subr.mxu0 0.0
  %2247 = vmatpush1.msra.mxu0 0.0
  %2248 = vmatprep.subr.mxu0 0.0
  %2249 = vmatpush1.msra.mxu0 0.0
  %2250 = vmatprep.mubr.f32.mxu0 0.0
  %2251 = vmatmul.mubr.f32.gmra.mrb[0].mxu0 %v2181
  %v2252 = vpop.f32.mrb[0].mxu0
  %v2253 = vadd.f32 %v2172, %v2252
  %v2254 = vpop.f32.mrb[0].mxu0
  %2255 = vmatprep.mubr.f32.mxu0 0.0
  %2256 = vmatmul.mubr.f32.gmra.mrb[0].mxu0 %v2184
  %v2257 = vpop.f32.mrb[0].mxu0
  %v2258 = vadd.f32 %v2177, %v2257
  %v2259 = vpop.f32.mrb[0].mxu0
  %2260 = vdwg.mxu0
  %2261 = vrot.lane.b32.xlu0 %v502, 120
  %v2262 = vpop.permute.xlu0 %2261
  %2263 = vrot.lane.b32.xlu0 %v507, 120
  %v2264 = vpop.permute.xlu0 %2263
  %2265 = vrot.lane.b32.xlu0 %v502, 104
  %v2266 = vpop.permute.xlu0 %2265
  %2267 = vrot.lane.b32.xlu0 %v507, 104
  %v2268 = vpop.permute.xlu0 %2267
  %v2269 = vsel %vm535, %v2262, 0
  %v2271 = vsel %vm535, %v2264, 0
  %v2273 = vsel %vm535, %v2266, 0
  %v2275 = vsel %vm535, %v2268, 0
  %2277 = vmatprep.subr.mxu0 0.0
  %2278 = vmatpush1.xpose.msra.mxu0 %v2273
  %2279 = vmatprep.subr.mxu0 0.0
  %2280 = vmatpush1.xpose.msra.mxu0 %v2275
  %2281 = vmatprep.subr.mxu0 0.0
  %2282 = vmatpush1.xpose.msra.mxu0 0.0
  %2283 = vmatprep.subr.mxu0 0.0
  %2284 = vmatpush1.xpose.msra.mxu0 0.0
  %2285 = vmatprep.subr.mxu0 0.0
  %2286 = vmatpush1.xpose.msra.mxu0 0.0
  %2287 = vmatprep.subr.mxu0 0.0
  %2288 = vmatpush1.xpose.msra.mxu0 0.0
  %2289 = vmatprep.subr.mxu0 0.0
  %2290 = vmatpush1.xpose.msra.mxu0 0.0
  %2291 = vmatprep.subr.mxu0 0.0
  %2292 = vmatpush1.xpose.msra.mxu0 0.0
  %2293 = vmatprep.subr.mxu0 0.0
  %2294 = vmatpush1.xpose.msra.mxu0 0.0
  %2295 = vmatprep.subr.mxu0 0.0
  %2296 = vmatpush1.xpose.msra.mxu0 0.0
  %2297 = vmatprep.subr.mxu0 0.0
  %2298 = vmatpush1.xpose.msra.mxu0 0.0
  %2299 = vmatprep.subr.mxu0 0.0
  %2300 = vmatpush1.xpose.msra.mxu0 0.0
  %2301 = vmatprep.subr.mxu0 0.0
  %2302 = vmatpush1.xpose.msra.mxu0 0.0
  %2303 = vmatprep.subr.mxu0 0.0
  %2304 = vmatpush1.xpose.msra.mxu0 0.0
  %2305 = vmatprep.subr.mxu0 0.0
  %2306 = vmatpush1.xpose.msra.mxu0 0.0
  %2307 = vmatprep.subr.mxu0 0.0
  %2308 = vmatpush1.xpose.msra.mxu0 0.0
  %2309 = vmatprep.subr.mxu0 0.0
  %2310 = vmatpush1.xpose.msra.mxu0 0.0
  %2311 = vmatprep.subr.mxu0 0.0
  %2312 = vmatpush1.xpose.msra.mxu0 0.0
  %2313 = vmatprep.subr.mxu0 0.0
  %2314 = vmatpush1.xpose.msra.mxu0 0.0
  %2315 = vmatprep.subr.mxu0 0.0
  %2316 = vmatpush1.xpose.msra.mxu0 0.0
  %2317 = vmatprep.subr.mxu0 0.0
  %2318 = vmatpush1.xpose.msra.mxu0 0.0
  %2319 = vmatprep.subr.mxu0 0.0
  %2320 = vmatpush1.xpose.msra.mxu0 0.0
  %2321 = vmatprep.subr.mxu0 0.0
  %2322 = vmatpush1.xpose.msra.mxu0 0.0
  %2323 = vmatprep.subr.mxu0 0.0
  %2324 = vmatpush1.xpose.msra.mxu0 0.0
  %2325 = vmatprep.subr.mxu0 0.0
  %2326 = vmatpush1.xpose.msra.mxu0 0.0
  %2327 = vmatprep.subr.mxu0 0.0
  %2328 = vmatpush1.xpose.msra.mxu0 0.0
  %2329 = vmatprep.subr.mxu0 0.0
  %2330 = vmatpush1.xpose.msra.mxu0 0.0
  %2331 = vmatprep.subr.mxu0 0.0
  %2332 = vmatpush1.xpose.msra.mxu0 0.0
  %2333 = vmatprep.subr.mxu0 0.0
  %2334 = vmatpush1.xpose.msra.mxu0 0.0
  %2335 = vmatprep.subr.mxu0 0.0
  %2336 = vmatpush1.xpose.msra.mxu0 0.0
  %2337 = vmatprep.subr.mxu0 0.0
  %2338 = vmatpush1.xpose.msra.mxu0 0.0
  %2339 = vmatprep.subr.mxu0 0.0
  %2340 = vmatpush1.xpose.msra.mxu0 0.0
  %2341 = vmatprep.mubr.f32.mxu0 0.0
  %2342 = vmatmul.mubr.f32.gmra.mrb[0].mxu0 %v2269
  %v2343 = vpop.f32.mrb[0].mxu0
  %v2344 = vadd.f32 0.0, %v2343
  %v2345 = vpop.f32.mrb[0].mxu0
  %2346 = vmatprep.mubr.f32.mxu0 0.0
  %2347 = vmatmul.mubr.f32.gmra.mrb[0].mxu0 %v2271
  %v2348 = vpop.f32.mrb[0].mxu0
  %v2349 = vadd.f32 0.0, %v2348
  %v2350 = vpop.f32.mrb[0].mxu0
  %2351 = vdwg.mxu0
  %v2352 = vmul.f32 %v2344, 0.5
  %v2353 = vmul.f32 %v2349, 0.5
  %v2354 = vadd.f32 %v2352, %v1202
  %v2355 = vadd.f32 %v2353, %v1203
  %v2356 = vsel %vm20, %v2354, -inf
  %2357 = vmax.xlane.f32.xlu0 %v2356
  %v2358 = vpop.xlane.xlu0 %2357
  %v2359 = vsel %vm20, %v2355, -inf
  %2360 = vmax.xlane.f32.xlu0 %v2359
  %v2361 = vpop.xlane.xlu0 %2360
  %v2362 = vsub.f32 %v2354, %v2358
  %v2363 = vsub.f32 %v2355, %v2361
  %v2364 = vmul.f32 %v2362, 1.442695
  %v2365 = vpow.pop %v2364
  %v2366 = vmul.f32 %v2363, 1.442695
  %v2367 = vpow.pop %v2366
  %v2368 = vsel %vm20, %v2365, 0.0
  %2369 = vadd.xlane.f32.xlu0 %v2368
  %v2370 = vpop.xlane.xlu0 %2369
  %v2371 = vsel %vm20, %v2367, 0.0
  %2372 = vadd.xlane.f32.xlu0 %v2371
  %v2373 = vpop.xlane.xlu0 %2372
  %v2374 = vrcp.pop %v2370
  %v2375 = vrcp.pop %v2373
  %v2376 = vmul.f32 %v2365, %v2374
  %v2377 = vmul.f32 %v2367, %v2375
  %2378 = vrot.lane.b32.xlu0 %v502, 88
  %v2379 = vpop.permute.xlu0 %2378
  %2380 = vrot.lane.b32.xlu0 %v507, 88
  %v2381 = vpop.permute.xlu0 %2380
  %v2385 = vsel %vm20, %v2376, 0
  %v2388 = vsel %vm20, %v2377, 0
  %2390 = vmatprep.subr.mxu0 0.0
  %2391 = vmatpush1.msra.mxu0 %v2379
  %2392 = vmatprep.subr.mxu0 0.0
  %2393 = vmatpush1.msra.mxu0 %v2381
  %2394 = vmatprep.subr.mxu0 0.0
  %2395 = vmatpush1.msra.mxu0 0.0
  %2396 = vmatprep.subr.mxu0 0.0
  %2397 = vmatpush1.msra.mxu0 0.0
  %2398 = vmatprep.subr.mxu0 0.0
  %2399 = vmatpush1.msra.mxu0 0.0
  %2400 = vmatprep.subr.mxu0 0.0
  %2401 = vmatpush1.msra.mxu0 0.0
  %2402 = vmatprep.subr.mxu0 0.0
  %2403 = vmatpush1.msra.mxu0 0.0
  %2404 = vmatprep.subr.mxu0 0.0
  %2405 = vmatpush1.msra.mxu0 0.0
  %2406 = vmatprep.subr.mxu0 0.0
  %2407 = vmatpush1.msra.mxu0 0.0
  %2408 = vmatprep.subr.mxu0 0.0
  %2409 = vmatpush1.msra.mxu0 0.0
  %2410 = vmatprep.subr.mxu0 0.0
  %2411 = vmatpush1.msra.mxu0 0.0
  %2412 = vmatprep.subr.mxu0 0.0
  %2413 = vmatpush1.msra.mxu0 0.0
  %2414 = vmatprep.subr.mxu0 0.0
  %2415 = vmatpush1.msra.mxu0 0.0
  %2416 = vmatprep.subr.mxu0 0.0
  %2417 = vmatpush1.msra.mxu0 0.0
  %2418 = vmatprep.subr.mxu0 0.0
  %2419 = vmatpush1.msra.mxu0 0.0
  %2420 = vmatprep.subr.mxu0 0.0
  %2421 = vmatpush1.msra.mxu0 0.0
  %2422 = vmatprep.subr.mxu0 0.0
  %2423 = vmatpush1.msra.mxu0 0.0
  %2424 = vmatprep.subr.mxu0 0.0
  %2425 = vmatpush1.msra.mxu0 0.0
  %2426 = vmatprep.subr.mxu0 0.0
  %2427 = vmatpush1.msra.mxu0 0.0
  %2428 = vmatprep.subr.mxu0 0.0
  %2429 = vmatpush1.msra.mxu0 0.0
  %2430 = vmatprep.subr.mxu0 0.0
  %2431 = vmatpush1.msra.mxu0 0.0
  %2432 = vmatprep.subr.mxu0 0.0
  %2433 = vmatpush1.msra.mxu0 0.0
  %2434 = vmatprep.subr.mxu0 0.0
  %2435 = vmatpush1.msra.mxu0 0.0
  %2436 = vmatprep.subr.mxu0 0.0
  %2437 = vmatpush1.msra.mxu0 0.0
  %2438 = vmatprep.subr.mxu0 0.0
  %2439 = vmatpush1.msra.mxu0 0.0
  %2440 = vmatprep.subr.mxu0 0.0
  %2441 = vmatpush1.msra.mxu0 0.0
  %2442 = vmatprep.subr.mxu0 0.0
  %2443 = vmatpush1.msra.mxu0 0.0
  %2444 = vmatprep.subr.mxu0 0.0
  %2445 = vmatpush1.msra.mxu0 0.0
  %2446 = vmatprep.subr.mxu0 0.0
  %2447 = vmatpush1.msra.mxu0 0.0
  %2448 = vmatprep.subr.mxu0 0.0
  %2449 = vmatpush1.msra.mxu0 0.0
  %2450 = vmatprep.subr.mxu0 0.0
  %2451 = vmatpush1.msra.mxu0 0.0
  %2452 = vmatprep.subr.mxu0 0.0
  %2453 = vmatpush1.msra.mxu0 0.0
  %2454 = vmatprep.mubr.f32.mxu0 0.0
  %2455 = vmatmul.mubr.f32.gmra.mrb[0].mxu0 %v2385
  %v2456 = vpop.f32.mrb[0].mxu0
  %v2457 = vadd.f32 0.0, %v2456
  %v2458 = vpop.f32.mrb[0].mxu0
  %2459 = vmatprep.mubr.f32.mxu0 0.0
  %2460 = vmatmul.mubr.f32.gmra.mrb[0].mxu0 %v2388
  %v2461 = vpop.f32.mrb[0].mxu0
  %v2462 = vadd.f32 0.0, %v2461
  %v2463 = vpop.f32.mrb[0].mxu0
  %2464 = vdwg.mxu0
  %v2466 = vsel %vm535, %v2457, 0
  %v2469 = vsel %vm535, %v2462, 0
  %2471 = vmatprep.subr.mxu0 0.0
  %2472 = vmatpush1.msra.mxu0 %v1322
  %2473 = vmatprep.subr.mxu0 0.0
  %2474 = vmatpush1.msra.mxu0 0.0
  %2475 = vmatprep.subr.mxu0 0.0
  %2476 = vmatpush1.msra.mxu0 0.0
  %2477 = vmatprep.subr.mxu0 0.0
  %2478 = vmatpush1.msra.mxu0 0.0
  %2479 = vmatprep.subr.mxu0 0.0
  %2480 = vmatpush1.msra.mxu0 0.0
  %2481 = vmatprep.subr.mxu0 0.0
  %2482 = vmatpush1.msra.mxu0 0.0
  %2483 = vmatprep.subr.mxu0 0.0
  %2484 = vmatpush1.msra.mxu0 0.0
  %2485 = vmatprep.subr.mxu0 0.0
  %2486 = vmatpush1.msra.mxu0 0.0
  %2487 = vmatprep.subr.mxu0 0.0
  %2488 = vmatpush1.msra.mxu0 0.0
  %2489 = vmatprep.subr.mxu0 0.0
  %2490 = vmatpush1.msra.mxu0 0.0
  %2491 = vmatprep.subr.mxu0 0.0
  %2492 = vmatpush1.msra.mxu0 0.0
  %2493 = vmatprep.subr.mxu0 0.0
  %2494 = vmatpush1.msra.mxu0 0.0
  %2495 = vmatprep.subr.mxu0 0.0
  %2496 = vmatpush1.msra.mxu0 0.0
  %2497 = vmatprep.subr.mxu0 0.0
  %2498 = vmatpush1.msra.mxu0 0.0
  %2499 = vmatprep.subr.mxu0 0.0
  %2500 = vmatpush1.msra.mxu0 0.0
  %2501 = vmatprep.subr.mxu0 0.0
  %2502 = vmatpush1.msra.mxu0 0.0
  %2503 = vmatprep.subr.mxu0 0.0
  %2504 = vmatpush1.msra.mxu0 0.0
  %2505 = vmatprep.subr.mxu0 0.0
  %2506 = vmatpush1.msra.mxu0 0.0
  %2507 = vmatprep.subr.mxu0 0.0
  %2508 = vmatpush1.msra.mxu0 0.0
  %2509 = vmatprep.subr.mxu0 0.0
  %2510 = vmatpush1.msra.mxu0 0.0
  %2511 = vmatprep.subr.mxu0 0.0
  %2512 = vmatpush1.msra.mxu0 0.0
  %2513 = vmatprep.subr.mxu0 0.0
  %2514 = vmatpush1.msra.mxu0 0.0
  %2515 = vmatprep.subr.mxu0 0.0
  %2516 = vmatpush1.msra.mxu0 0.0
  %2517 = vmatprep.subr.mxu0 0.0
  %2518 = vmatpush1.msra.mxu0 0.0
  %2519 = vmatprep.subr.mxu0 0.0
  %2520 = vmatpush1.msra.mxu0 0.0
  %2521 = vmatprep.subr.mxu0 0.0
  %2522 = vmatpush1.msra.mxu0 0.0
  %2523 = vmatprep.subr.mxu0 0.0
  %2524 = vmatpush1.msra.mxu0 0.0
  %2525 = vmatprep.subr.mxu0 0.0
  %2526 = vmatpush1.msra.mxu0 0.0
  %2527 = vmatprep.subr.mxu0 0.0
  %2528 = vmatpush1.msra.mxu0 0.0
  %2529 = vmatprep.subr.mxu0 0.0
  %2530 = vmatpush1.msra.mxu0 0.0
  %2531 = vmatprep.subr.mxu0 0.0
  %2532 = vmatpush1.msra.mxu0 0.0
  %2533 = vmatprep.subr.mxu0 0.0
  %2534 = vmatpush1.msra.mxu0 0.0
  %2535 = vmatprep.mubr.f32.mxu0 0.0
  %2536 = vmatmul.mubr.f32.gmra.mrb[0].mxu0 %v2466
  %v2537 = vpop.f32.mrb[0].mxu0
  %v2538 = vadd.f32 0.0, %v2537
  %v2539 = vpop.f32.mrb[0].mxu0
  %2540 = vmatprep.mubr.f32.mxu0 0.0
  %2541 = vmatmul.mubr.f32.gmra.mrb[0].mxu0 %v2469
  %v2542 = vpop.f32.mrb[0].mxu0
  %v2543 = vadd.f32 0.0, %v2542
  %v2544 = vpop.f32.mrb[0].mxu0
  %2545 = vdwg.mxu0
  %v2546 = vadd.f32 %v2253, %v2538
  %v2547 = vadd.f32 %v2258, %v2543
  %2548 = vrot.lane.b32.xlu0 %v502, 116
  %v2549 = vpop.permute.xlu0 %2548
  %2550 = vrot.lane.b32.xlu0 %v507, 116
  %v2551 = vpop.permute.xlu0 %2550
  %2552 = vrot.lane.b32.xlu0 %v502, 100
  %v2553 = vpop.permute.xlu0 %2552
  %2554 = vrot.lane.b32.xlu0 %v507, 100
  %v2555 = vpop.permute.xlu0 %2554
  %v2556 = vsel %vm535, %v2549, 0
  %v2558 = vsel %vm535, %v2551, 0
  %v2560 = vsel %vm535, %v2553, 0
  %v2562 = vsel %vm535, %v2555, 0
  %2564 = vmatprep.subr.mxu0 0.0
  %2565 = vmatpush1.xpose.msra.mxu0 %v2560
  %2566 = vmatprep.subr.mxu0 0.0
  %2567 = vmatpush1.xpose.msra.mxu0 %v2562
  %2568 = vmatprep.subr.mxu0 0.0
  %2569 = vmatpush1.xpose.msra.mxu0 0.0
  %2570 = vmatprep.subr.mxu0 0.0
  %2571 = vmatpush1.xpose.msra.mxu0 0.0
  %2572 = vmatprep.subr.mxu0 0.0
  %2573 = vmatpush1.xpose.msra.mxu0 0.0
  %2574 = vmatprep.subr.mxu0 0.0
  %2575 = vmatpush1.xpose.msra.mxu0 0.0
  %2576 = vmatprep.subr.mxu0 0.0
  %2577 = vmatpush1.xpose.msra.mxu0 0.0
  %2578 = vmatprep.subr.mxu0 0.0
  %2579 = vmatpush1.xpose.msra.mxu0 0.0
  %2580 = vmatprep.subr.mxu0 0.0
  %2581 = vmatpush1.xpose.msra.mxu0 0.0
  %2582 = vmatprep.subr.mxu0 0.0
  %2583 = vmatpush1.xpose.msra.mxu0 0.0
  %2584 = vmatprep.subr.mxu0 0.0
  %2585 = vmatpush1.xpose.msra.mxu0 0.0
  %2586 = vmatprep.subr.mxu0 0.0
  %2587 = vmatpush1.xpose.msra.mxu0 0.0
  %2588 = vmatprep.subr.mxu0 0.0
  %2589 = vmatpush1.xpose.msra.mxu0 0.0
  %2590 = vmatprep.subr.mxu0 0.0
  %2591 = vmatpush1.xpose.msra.mxu0 0.0
  %2592 = vmatprep.subr.mxu0 0.0
  %2593 = vmatpush1.xpose.msra.mxu0 0.0
  %2594 = vmatprep.subr.mxu0 0.0
  %2595 = vmatpush1.xpose.msra.mxu0 0.0
  %2596 = vmatprep.subr.mxu0 0.0
  %2597 = vmatpush1.xpose.msra.mxu0 0.0
  %2598 = vmatprep.subr.mxu0 0.0
  %2599 = vmatpush1.xpose.msra.mxu0 0.0
  %2600 = vmatprep.subr.mxu0 0.0
  %2601 = vmatpush1.xpose.msra.mxu0 0.0
  %2602 = vmatprep.subr.mxu0 0.0
  %2603 = vmatpush1.xpose.msra.mxu0 0.0
  %2604 = vmatprep.subr.mxu0 0.0
  %2605 = vmatpush1.xpose.msra.mxu0 0.0
  %2606 = vmatprep.subr.mxu0 0.0
  %2607 = vmatpush1.xpose.msra.mxu0 0.0
  %2608 = vmatprep.subr.mxu0 0.0
  %2609 = vmatpush1.xpose.msra.mxu0 0.0
  %2610 = vmatprep.subr.mxu0 0.0
  %2611 = vmatpush1.xpose.msra.mxu0 0.0
  %2612 = vmatprep.subr.mxu0 0.0
  %2613 = vmatpush1.xpose.msra.mxu0 0.0
  %2614 = vmatprep.subr.mxu0 0.0
  %2615 = vmatpush1.xpose.msra.mxu0 0.0
  %2616 = vmatprep.subr.mxu0 0.0
  %2617 = vmatpush1.xpose.msra.mxu0 0.0
  %2618 = vmatprep.subr.mxu0 0.0
  %2619 = vmatpush1.xpose.msra.mxu0 0.0
  %2620 = vmatprep.subr.mxu0 0.0
  %2621 = vmatpush1.xpose.msra.mxu0 0.0
  %2622 = vmatprep.subr.mxu0 0.0
  %2623 = vmatpush1.xpose.msra.mxu0 0.0
  %2624 = vmatprep.subr.mxu0 0.0
  %2625 = vmatpush1.xpose.msra.mxu0 0.0
  %2626 = vmatprep.subr.mxu0 0.0
  %2627 = vmatpush1.xpose.msra.mxu0 0.0
  %2628 = vmatprep.mubr.f32.mxu0 0.0
  %2629 = vmatmul.mubr.f32.gmra.mrb[0].mxu0 %v2556
  %v2630 = vpop.f32.mrb[0].mxu0
  %v2631 = vadd.f32 0.0, %v2630
  %v2632 = vpop.f32.mrb[0].mxu0
  %2633 = vmatprep.mubr.f32.mxu0 0.0
  %2634 = vmatmul.mubr.f32.gmra.mrb[0].mxu0 %v2558
  %v2635 = vpop.f32.mrb[0].mxu0
  %v2636 = vadd.f32 0.0, %v2635
  %v2637 = vpop.f32.mrb[0].mxu0
  %2638 = vdwg.mxu0
  %v2639 = vmul.f32 %v2631, 0.5
  %v2640 = vmul.f32 %v2636, 0.5
  %v2641 = vadd.f32 %v2639, %v1494
  %v2642 = vadd.f32 %v2640, %v1495
  %v2643 = vsel %vm20, %v2641, -inf
  %2644 = vmax.xlane.f32.xlu0 %v2643
  %v2645 = vpop.xlane.xlu0 %2644
  %v2646 = vsel %vm20, %v2642, -inf
  %2647 = vmax.xlane.f32.xlu0 %v2646
  %v2648 = vpop.xlane.xlu0 %2647
  %v2649 = vsub.f32 %v2641, %v2645
  %v2650 = vsub.f32 %v2642, %v2648
  %v2651 = vmul.f32 %v2649, 1.442695
  %v2652 = vpow.pop %v2651
  %v2653 = vmul.f32 %v2650, 1.442695
  %v2654 = vpow.pop %v2653
  %v2655 = vsel %vm20, %v2652, 0.0
  %2656 = vadd.xlane.f32.xlu0 %v2655
  %v2657 = vpop.xlane.xlu0 %2656
  %v2658 = vsel %vm20, %v2654, 0.0
  %2659 = vadd.xlane.f32.xlu0 %v2658
  %v2660 = vpop.xlane.xlu0 %2659
  %v2661 = vrcp.pop %v2657
  %v2662 = vrcp.pop %v2660
  %v2663 = vmul.f32 %v2652, %v2661
  %v2664 = vmul.f32 %v2654, %v2662
  %2665 = vrot.lane.b32.xlu0 %v502, 84
  %v2666 = vpop.permute.xlu0 %2665
  %2667 = vrot.lane.b32.xlu0 %v507, 84
  %v2668 = vpop.permute.xlu0 %2667
  %v2672 = vsel %vm20, %v2663, 0
  %v2675 = vsel %vm20, %v2664, 0
  %2677 = vmatprep.subr.mxu0 0.0
  %2678 = vmatpush1.msra.mxu0 %v2666
  %2679 = vmatprep.subr.mxu0 0.0
  %2680 = vmatpush1.msra.mxu0 %v2668
  %2681 = vmatprep.subr.mxu0 0.0
  %2682 = vmatpush1.msra.mxu0 0.0
  %2683 = vmatprep.subr.mxu0 0.0
  %2684 = vmatpush1.msra.mxu0 0.0
  %2685 = vmatprep.subr.mxu0 0.0
  %2686 = vmatpush1.msra.mxu0 0.0
  %2687 = vmatprep.subr.mxu0 0.0
  %2688 = vmatpush1.msra.mxu0 0.0
  %2689 = vmatprep.subr.mxu0 0.0
  %2690 = vmatpush1.msra.mxu0 0.0
  %2691 = vmatprep.subr.mxu0 0.0
  %2692 = vmatpush1.msra.mxu0 0.0
  %2693 = vmatprep.subr.mxu0 0.0
  %2694 = vmatpush1.msra.mxu0 0.0
  %2695 = vmatprep.subr.mxu0 0.0
  %2696 = vmatpush1.msra.mxu0 0.0
  %2697 = vmatprep.subr.mxu0 0.0
  %2698 = vmatpush1.msra.mxu0 0.0
  %2699 = vmatprep.subr.mxu0 0.0
  %2700 = vmatpush1.msra.mxu0 0.0
  %2701 = vmatprep.subr.mxu0 0.0
  %2702 = vmatpush1.msra.mxu0 0.0
  %2703 = vmatprep.subr.mxu0 0.0
  %2704 = vmatpush1.msra.mxu0 0.0
  %2705 = vmatprep.subr.mxu0 0.0
  %2706 = vmatpush1.msra.mxu0 0.0
  %2707 = vmatprep.subr.mxu0 0.0
  %2708 = vmatpush1.msra.mxu0 0.0
  %2709 = vmatprep.subr.mxu0 0.0
  %2710 = vmatpush1.msra.mxu0 0.0
  %2711 = vmatprep.subr.mxu0 0.0
  %2712 = vmatpush1.msra.mxu0 0.0
  %2713 = vmatprep.subr.mxu0 0.0
  %2714 = vmatpush1.msra.mxu0 0.0
  %2715 = vmatprep.subr.mxu0 0.0
  %2716 = vmatpush1.msra.mxu0 0.0
  %2717 = vmatprep.subr.mxu0 0.0
  %2718 = vmatpush1.msra.mxu0 0.0
  %2719 = vmatprep.subr.mxu0 0.0
  %2720 = vmatpush1.msra.mxu0 0.0
  %2721 = vmatprep.subr.mxu0 0.0
  %2722 = vmatpush1.msra.mxu0 0.0
  %2723 = vmatprep.subr.mxu0 0.0
  %2724 = vmatpush1.msra.mxu0 0.0
  %2725 = vmatprep.subr.mxu0 0.0
  %2726 = vmatpush1.msra.mxu0 0.0
  %2727 = vmatprep.subr.mxu0 0.0
  %2728 = vmatpush1.msra.mxu0 0.0
  %2729 = vmatprep.subr.mxu0 0.0
  %2730 = vmatpush1.msra.mxu0 0.0
  %2731 = vmatprep.subr.mxu0 0.0
  %2732 = vmatpush1.msra.mxu0 0.0
  %2733 = vmatprep.subr.mxu0 0.0
  %2734 = vmatpush1.msra.mxu0 0.0
  %2735 = vmatprep.subr.mxu0 0.0
  %2736 = vmatpush1.msra.mxu0 0.0
  %2737 = vmatprep.subr.mxu0 0.0
  %2738 = vmatpush1.msra.mxu0 0.0
  %2739 = vmatprep.subr.mxu0 0.0
  %2740 = vmatpush1.msra.mxu0 0.0
  %2741 = vmatprep.mubr.f32.mxu0 0.0
  %2742 = vmatmul.mubr.f32.gmra.mrb[0].mxu0 %v2672
  %v2743 = vpop.f32.mrb[0].mxu0
  %v2744 = vadd.f32 0.0, %v2743
  %v2745 = vpop.f32.mrb[0].mxu0
  %2746 = vmatprep.mubr.f32.mxu0 0.0
  %2747 = vmatmul.mubr.f32.gmra.mrb[0].mxu0 %v2675
  %v2748 = vpop.f32.mrb[0].mxu0
  %v2749 = vadd.f32 0.0, %v2748
  %v2750 = vpop.f32.mrb[0].mxu0
  %2751 = vdwg.mxu0
  %v2753 = vsel %vm535, %v2744, 0
  %v2756 = vsel %vm535, %v2749, 0
  %2758 = vmatprep.subr.mxu0 0.0
  %2759 = vmatpush1.msra.mxu0 %v1614
  %2760 = vmatprep.subr.mxu0 0.0
  %2761 = vmatpush1.msra.mxu0 0.0
  %2762 = vmatprep.subr.mxu0 0.0
  %2763 = vmatpush1.msra.mxu0 0.0
  %2764 = vmatprep.subr.mxu0 0.0
  %2765 = vmatpush1.msra.mxu0 0.0
  %2766 = vmatprep.subr.mxu0 0.0
  %2767 = vmatpush1.msra.mxu0 0.0
  %2768 = vmatprep.subr.mxu0 0.0
  %2769 = vmatpush1.msra.mxu0 0.0
  %2770 = vmatprep.subr.mxu0 0.0
  %2771 = vmatpush1.msra.mxu0 0.0
  %2772 = vmatprep.subr.mxu0 0.0
  %2773 = vmatpush1.msra.mxu0 0.0
  %2774 = vmatprep.subr.mxu0 0.0
  %2775 = vmatpush1.msra.mxu0 0.0
  %2776 = vmatprep.subr.mxu0 0.0
  %2777 = vmatpush1.msra.mxu0 0.0
  %2778 = vmatprep.subr.mxu0 0.0
  %2779 = vmatpush1.msra.mxu0 0.0
  %2780 = vmatprep.subr.mxu0 0.0
  %2781 = vmatpush1.msra.mxu0 0.0
  %2782 = vmatprep.subr.mxu0 0.0
  %2783 = vmatpush1.msra.mxu0 0.0
  %2784 = vmatprep.subr.mxu0 0.0
  %2785 = vmatpush1.msra.mxu0 0.0
  %2786 = vmatprep.subr.mxu0 0.0
  %2787 = vmatpush1.msra.mxu0 0.0
  %2788 = vmatprep.subr.mxu0 0.0
  %2789 = vmatpush1.msra.mxu0 0.0
  %2790 = vmatprep.subr.mxu0 0.0
  %2791 = vmatpush1.msra.mxu0 0.0
  %2792 = vmatprep.subr.mxu0 0.0
  %2793 = vmatpush1.msra.mxu0 0.0
  %2794 = vmatprep.subr.mxu0 0.0
  %2795 = vmatpush1.msra.mxu0 0.0
  %2796 = vmatprep.subr.mxu0 0.0
  %2797 = vmatpush1.msra.mxu0 0.0
  %2798 = vmatprep.subr.mxu0 0.0
  %2799 = vmatpush1.msra.mxu0 0.0
  %2800 = vmatprep.subr.mxu0 0.0
  %2801 = vmatpush1.msra.mxu0 0.0
  %2802 = vmatprep.subr.mxu0 0.0
  %2803 = vmatpush1.msra.mxu0 0.0
  %2804 = vmatprep.subr.mxu0 0.0
  %2805 = vmatpush1.msra.mxu0 0.0
  %2806 = vmatprep.subr.mxu0 0.0
  %2807 = vmatpush1.msra.mxu0 0.0
  %2808 = vmatprep.subr.mxu0 0.0
  %2809 = vmatpush1.msra.mxu0 0.0
  %2810 = vmatprep.subr.mxu0 0.0
  %2811 = vmatpush1.msra.mxu0 0.0
  %2812 = vmatprep.subr.mxu0 0.0
  %2813 = vmatpush1.msra.mxu0 0.0
  %2814 = vmatprep.subr.mxu0 0.0
  %2815 = vmatpush1.msra.mxu0 0.0
  %2816 = vmatprep.subr.mxu0 0.0
  %2817 = vmatpush1.msra.mxu0 0.0
  %2818 = vmatprep.subr.mxu0 0.0
  %2819 = vmatpush1.msra.mxu0 0.0
  %2820 = vmatprep.subr.mxu0 0.0
  %2821 = vmatpush1.msra.mxu0 0.0
  %2822 = vmatprep.mubr.f32.mxu0 0.0
  %2823 = vmatmul.mubr.f32.gmra.mrb[0].mxu0 %v2753
  %v2824 = vpop.f32.mrb[0].mxu0
  %v2825 = vadd.f32 0.0, %v2824
  %v2826 = vpop.f32.mrb[0].mxu0
  %2827 = vmatprep.mubr.f32.mxu0 0.0
  %2828 = vmatmul.mubr.f32.gmra.mrb[0].mxu0 %v2756
  %v2829 = vpop.f32.mrb[0].mxu0
  %v2830 = vadd.f32 0.0, %v2829
  %v2831 = vpop.f32.mrb[0].mxu0
  %2832 = vdwg.mxu0
  %v2833 = vadd.f32 %v2546, %v2825
  %v2834 = vadd.f32 %v2547, %v2830
  %v2835 = vadd.f32 %v337, %v1691
  %v2836 = vadd.f32 %v338, %v1692
  %v2837 = vadd.f32 %v339, %v2833
  %v2838 = vadd.f32 %v340, %v2834
  %v2839 = vld [vmem:[%s1 + $0x108] sm:$0xff]
  %v2840 = vld [vmem:[%s1 + $0x110] sm:$0xff]
  %v2841 = vsel %vm20, %v2835, 0.0
  %v2842 = vsel %vm20, %v2836, 0.0
  %v2843 = vadd.f32 %v2841, %v2842
  %v2844 = vrot.slane %v2843, 4
  %v2845 = vadd.f32 %v2843, %v2844
  %v2846 = vrot.slane %v2845, 2
  %v2847 = vadd.f32 %v2845, %v2846
  %v2848 = vrot.slane %v2847, 1
  %v2849 = vadd.f32 %v2847, %v2848
  %v2850 = vmul.f32 %v2849, %v33
  %v2851 = vsub.f32 %v2835, %v2850
  %v2852 = vsub.f32 %v2836, %v2850
  %v2853 = vmul.f32 %v2851, %v2851
  %v2854 = vmul.f32 %v2852, %v2852
  %v2855 = vsel %vm20, %v2853, 0.0
  %v2856 = vsel %vm20, %v2854, 0.0
  %v2857 = vadd.f32 %v2855, %v2856
  %v2858 = vrot.slane %v2857, 4
  %v2859 = vadd.f32 %v2857, %v2858
  %v2860 = vrot.slane %v2859, 2
  %v2861 = vadd.f32 %v2859, %v2860
  %v2862 = vrot.slane %v2861, 1
  %v2863 = vadd.f32 %v2861, %v2862
  %v2864 = vmul.f32 %v2863, %v33
  %v2865 = vadd.f32 %v2864, 1e-05
  %v2866 = vrsqrt.pop %v2865
  %v2867 = vmul.f32 %v2851, %v2866
  %v2868 = vmul.f32 %v2852, %v2866
  %2870 = vset.pattern.permute.xlu0 0
  %2871 = vperm.xlu0 %2870, %v2839
  %v2872 = vpop.permute.xlu0 %2871
  %2875 = vset.pattern.permute.xlu0 0
  %2876 = vperm.xlu0 %2875, %v2840
  %v2877 = vpop.permute.xlu0 %2876
  %v2879 = vmul.f32 %v2867, %v2872
  %v2880 = vmul.f32 %v2868, %v2877
  %2881 = vset.pattern.permute.xlu0 1
  %2882 = vperm.xlu0 %2881, %v2839
  %v2883 = vpop.permute.xlu0 %2882
  %2885 = vset.pattern.permute.xlu0 1
  %2886 = vperm.xlu0 %2885, %v2840
  %v2887 = vpop.permute.xlu0 %2886
  %v2889 = vadd.f32 %v2879, %v2883
  %v2890 = vadd.f32 %v2880, %v2887
  %v2891 = vsel %vm20, %v2837, 0.0
  %v2892 = vsel %vm20, %v2838, 0.0
  %v2893 = vadd.f32 %v2891, %v2892
  %v2894 = vrot.slane %v2893, 4
  %v2895 = vadd.f32 %v2893, %v2894
  %v2896 = vrot.slane %v2895, 2
  %v2897 = vadd.f32 %v2895, %v2896
  %v2898 = vrot.slane %v2897, 1
  %v2899 = vadd.f32 %v2897, %v2898
  %v2900 = vmul.f32 %v2899, %v33
  %v2901 = vsub.f32 %v2837, %v2900
  %v2902 = vsub.f32 %v2838, %v2900
  %v2903 = vmul.f32 %v2901, %v2901
  %v2904 = vmul.f32 %v2902, %v2902
  %v2905 = vsel %vm20, %v2903, 0.0
  %v2906 = vsel %vm20, %v2904, 0.0
  %v2907 = vadd.f32 %v2905, %v2906
  %v2908 = vrot.slane %v2907, 4
  %v2909 = vadd.f32 %v2907, %v2908
  %v2910 = vrot.slane %v2909, 2
  %v2911 = vadd.f32 %v2909, %v2910
  %v2912 = vrot.slane %v2911, 1
  %v2913 = vadd.f32 %v2911, %v2912
  %v2914 = vmul.f32 %v2913, %v33
  %v2915 = vadd.f32 %v2914, 1e-05
  %v2916 = vrsqrt.pop %v2915
  %v2917 = vmul.f32 %v2901, %v2916
  %v2918 = vmul.f32 %v2902, %v2916
  %v2919 = vmul.f32 %v2917, %v2872
  %v2920 = vmul.f32 %v2918, %v2877
  %v2921 = vadd.f32 %v2919, %v2883
  %v2922 = vadd.f32 %v2920, %v2887
  %v2923 = vld [vmem:[%s1 + $0xc0] sm:$0xff]
  %v2924 = vld [vmem:[%s1 + $0xc8] sm:$0xff]
  %v2925 = vld [vmem:[%s2 + $0x6] sm:$0x1]
  %v2926 = vlaneseq
  %v2927 = vshrl.u32 %v2926, 7
  %v2928 = vsub.s32 0, %v2927
  %v2929 = vrot.slane %v2925, %v2928
  %v2931 = vsel %vm20, %v2889, 0
  %v2934 = vsel %vm20, %v2890, 0
  %v2937 = vsel %vm20, %v2921, 0
  %v2940 = vsel %vm20, %v2922, 0
  %2942 = vmatprep.subr.mxu0 0.0
  %2943 = vmatpush1.msra.mxu0 %v2923
  %2944 = vmatprep.subr.mxu0 0.0
  %2945 = vmatpush1.msra.mxu0 %v2924
  %2946 = vmatprep.subr.mxu0 0.0
  %2947 = vmatpush1.msra.mxu0 0.0
  %2948 = vmatprep.subr.mxu0 0.0
  %2949 = vmatpush1.msra.mxu0 0.0
  %2950 = vmatprep.subr.mxu0 0.0
  %2951 = vmatpush1.msra.mxu0 0.0
  %2952 = vmatprep.subr.mxu0 0.0
  %2953 = vmatpush1.msra.mxu0 0.0
  %2954 = vmatprep.subr.mxu0 0.0
  %2955 = vmatpush1.msra.mxu0 0.0
  %2956 = vmatprep.subr.mxu0 0.0
  %2957 = vmatpush1.msra.mxu0 0.0
  %2958 = vmatprep.subr.mxu0 0.0
  %2959 = vmatpush1.msra.mxu0 0.0
  %2960 = vmatprep.subr.mxu0 0.0
  %2961 = vmatpush1.msra.mxu0 0.0
  %2962 = vmatprep.subr.mxu0 0.0
  %2963 = vmatpush1.msra.mxu0 0.0
  %2964 = vmatprep.subr.mxu0 0.0
  %2965 = vmatpush1.msra.mxu0 0.0
  %2966 = vmatprep.subr.mxu0 0.0
  %2967 = vmatpush1.msra.mxu0 0.0
  %2968 = vmatprep.subr.mxu0 0.0
  %2969 = vmatpush1.msra.mxu0 0.0
  %2970 = vmatprep.subr.mxu0 0.0
  %2971 = vmatpush1.msra.mxu0 0.0
  %2972 = vmatprep.subr.mxu0 0.0
  %2973 = vmatpush1.msra.mxu0 0.0
  %2974 = vmatprep.subr.mxu0 0.0
  %2975 = vmatpush1.msra.mxu0 0.0
  %2976 = vmatprep.subr.mxu0 0.0
  %2977 = vmatpush1.msra.mxu0 0.0
  %2978 = vmatprep.subr.mxu0 0.0
  %2979 = vmatpush1.msra.mxu0 0.0
  %2980 = vmatprep.subr.mxu0 0.0
  %2981 = vmatpush1.msra.mxu0 0.0
  %2982 = vmatprep.subr.mxu0 0.0
  %2983 = vmatpush1.msra.mxu0 0.0
  %2984 = vmatprep.subr.mxu0 0.0
  %2985 = vmatpush1.msra.mxu0 0.0
  %2986 = vmatprep.subr.mxu0 0.0
  %2987 = vmatpush1.msra.mxu0 0.0
  %2988 = vmatprep.subr.mxu0 0.0
  %2989 = vmatpush1.msra.mxu0 0.0
  %2990 = vmatprep.subr.mxu0 0.0
  %2991 = vmatpush1.msra.mxu0 0.0
  %2992 = vmatprep.subr.mxu0 0.0
  %2993 = vmatpush1.msra.mxu0 0.0
  %2994 = vmatprep.subr.mxu0 0.0
  %2995 = vmatpush1.msra.mxu0 0.0
  %2996 = vmatprep.subr.mxu0 0.0
  %2997 = vmatpush1.msra.mxu0 0.0
  %2998 = vmatprep.subr.mxu0 0.0
  %2999 = vmatpush1.msra.mxu0 0.0
  %3000 = vmatprep.subr.mxu0 0.0
  %3001 = vmatpush1.msra.mxu0 0.0
  %3002 = vmatprep.subr.mxu0 0.0
  %3003 = vmatpush1.msra.mxu0 0.0
  %3004 = vmatprep.subr.mxu0 0.0
  %3005 = vmatpush1.msra.mxu0 0.0
  %3006 = vmatprep.mubr.f32.mxu0 0.0
  %3007 = vmatmul.mubr.f32.gmra.mrb[0].mxu0 %v2931
  %v3008 = vpop.f32.mrb[0].mxu0
  %v3009 = vadd.f32 %v2929, %v3008
  %v3010 = vpop.f32.mrb[0].mxu0
  %3011 = vmatprep.mubr.f32.mxu0 0.0
  %3012 = vmatmul.mubr.f32.gmra.mrb[0].mxu0 %v2934
  %v3013 = vpop.f32.mrb[0].mxu0
  %v3014 = vadd.f32 %v2929, %v3013
  %v3015 = vpop.f32.mrb[0].mxu0
  %3016 = vmatprep.mubr.f32.mxu0 0.0
  %3017 = vmatmul.mubr.f32.gmra.mrb[0].mxu0 %v2937
  %v3018 = vpop.f32.mrb[0].mxu0
  %v3019 = vadd.f32 %v2929, %v3018
  %v3020 = vpop.f32.mrb[0].mxu0
  %3021 = vmatprep.mubr.f32.mxu0 0.0
  %3022 = vmatmul.mubr.f32.gmra.mrb[0].mxu0 %v2940
  %v3023 = vpop.f32.mrb[0].mxu0
  %v3024 = vadd.f32 %v2929, %v3023
  %v3025 = vpop.f32.mrb[0].mxu0
  %3026 = vdwg.mxu0
  %v3027 = vld [vmem:[%s1 + $0xd0] sm:$0xff]
  %v3028 = vld [vmem:[%s1 + $0xd8] sm:$0xff]
  %v3029 = vld [vmem:[%s2 + $0x7] sm:$0x1]
  %v3030 = vlaneseq
  %v3031 = vshrl.u32 %v3030, 7
  %v3032 = vsub.s32 0, %v3031
  %v3033 = vrot.slane %v3029, %v3032
  %3034 = vmatprep.subr.mxu0 0.0
  %3035 = vmatpush1.msra.mxu0 %v3027
  %3036 = vmatprep.subr.mxu0 0.0
  %3037 = vmatpush1.msra.mxu0 %v3028
  %3038 = vmatprep.subr.mxu0 0.0
  %3039 = vmatpush1.msra.mxu0 0.0
  %3040 = vmatprep.subr.mxu0 0.0
  %3041 = vmatpush1.msra.mxu0 0.0
  %3042 = vmatprep.subr.mxu0 0.0
  %3043 = vmatpush1.msra.mxu0 0.0
  %3044 = vmatprep.subr.mxu0 0.0
  %3045 = vmatpush1.msra.mxu0 0.0
  %3046 = vmatprep.subr.mxu0 0.0
  %3047 = vmatpush1.msra.mxu0 0.0
  %3048 = vmatprep.subr.mxu0 0.0
  %3049 = vmatpush1.msra.mxu0 0.0
  %3050 = vmatprep.subr.mxu0 0.0
  %3051 = vmatpush1.msra.mxu0 0.0
  %3052 = vmatprep.subr.mxu0 0.0
  %3053 = vmatpush1.msra.mxu0 0.0
  %3054 = vmatprep.subr.mxu0 0.0
  %3055 = vmatpush1.msra.mxu0 0.0
  %3056 = vmatprep.subr.mxu0 0.0
  %3057 = vmatpush1.msra.mxu0 0.0
  %3058 = vmatprep.subr.mxu0 0.0
  %3059 = vmatpush1.msra.mxu0 0.0
  %3060 = vmatprep.subr.mxu0 0.0
  %3061 = vmatpush1.msra.mxu0 0.0
  %3062 = vmatprep.subr.mxu0 0.0
  %3063 = vmatpush1.msra.mxu0 0.0
  %3064 = vmatprep.subr.mxu0 0.0
  %3065 = vmatpush1.msra.mxu0 0.0
  %3066 = vmatprep.subr.mxu0 0.0
  %3067 = vmatpush1.msra.mxu0 0.0
  %3068 = vmatprep.subr.mxu0 0.0
  %3069 = vmatpush1.msra.mxu0 0.0
  %3070 = vmatprep.subr.mxu0 0.0
  %3071 = vmatpush1.msra.mxu0 0.0
  %3072 = vmatprep.subr.mxu0 0.0
  %3073 = vmatpush1.msra.mxu0 0.0
  %3074 = vmatprep.subr.mxu0 0.0
  %3075 = vmatpush1.msra.mxu0 0.0
  %3076 = vmatprep.subr.mxu0 0.0
  %3077 = vmatpush1.msra.mxu0 0.0
  %3078 = vmatprep.subr.mxu0 0.0
  %3079 = vmatpush1.msra.mxu0 0.0
  %3080 = vmatprep.subr.mxu0 0.0
  %3081 = vmatpush1.msra.mxu0 0.0
  %3082 = vmatprep.subr.mxu0 0.0
  %3083 = vmatpush1.msra.mxu0 0.0
  %3084 = vmatprep.subr.mxu0 0.0
  %3085 = vmatpush1.msra.mxu0 0.0
  %3086 = vmatprep.subr.mxu0 0.0
  %3087 = vmatpush1.msra.mxu0 0.0
  %3088 = vmatprep.subr.mxu0 0.0
  %3089 = vmatpush1.msra.mxu0 0.0
  %3090 = vmatprep.subr.mxu0 0.0
  %3091 = vmatpush1.msra.mxu0 0.0
  %3092 = vmatprep.subr.mxu0 0.0
  %3093 = vmatpush1.msra.mxu0 0.0
  %3094 = vmatprep.subr.mxu0 0.0
  %3095 = vmatpush1.msra.mxu0 0.0
  %3096 = vmatprep.subr.mxu0 0.0
  %3097 = vmatpush1.msra.mxu0 0.0
  %3098 = vmatprep.mubr.f32.mxu0 0.0
  %3099 = vmatmul.mubr.f32.gmra.mrb[0].mxu0 %v2931
  %v3100 = vpop.f32.mrb[0].mxu0
  %v3101 = vadd.f32 %v3033, %v3100
  %v3102 = vpop.f32.mrb[0].mxu0
  %3103 = vmatprep.mubr.f32.mxu0 0.0
  %3104 = vmatmul.mubr.f32.gmra.mrb[0].mxu0 %v2934
  %v3105 = vpop.f32.mrb[0].mxu0
  %v3106 = vadd.f32 %v3033, %v3105
  %v3107 = vpop.f32.mrb[0].mxu0
  %3108 = vmatprep.mubr.f32.mxu0 0.0
  %3109 = vmatmul.mubr.f32.gmra.mrb[0].mxu0 %v2937
  %v3110 = vpop.f32.mrb[0].mxu0
  %v3111 = vadd.f32 %v3033, %v3110
  %v3112 = vpop.f32.mrb[0].mxu0
  %3113 = vmatprep.mubr.f32.mxu0 0.0
  %3114 = vmatmul.mubr.f32.gmra.mrb[0].mxu0 %v2940
  %v3115 = vpop.f32.mrb[0].mxu0
  %v3116 = vadd.f32 %v3033, %v3115
  %v3117 = vpop.f32.mrb[0].mxu0
  %3118 = vdwg.mxu0
  %v3119 = vsub.f32 0.0, %v3101
  %v3120 = vsub.f32 0.0, %v3106
  %v3121 = vsub.f32 0.0, %v3111
  %v3122 = vsub.f32 0.0, %v3116
  %v3123 = vmul.f32 %v3119, 1.442695
  %v3124 = vpow.pop %v3123
  %v3125 = vmul.f32 %v3120, 1.442695
  %v3126 = vpow.pop %v3125
  %v3127 = vmul.f32 %v3121, 1.442695
  %v3128 = vpow.pop %v3127
  %v3129 = vmul.f32 %v3122, 1.442695
  %v3130 = vpow.pop %v3129
  %v3131 = vadd.f32 %v3124, 1.0
  %v3132 = vadd.f32 %v3126, 1.0
  %v3133 = vadd.f32 %v3128, 1.0
  %v3134 = vadd.f32 %v3130, 1.0
  %v3135 = vrcp.pop %v3131
  %v3136 = vmul.f32 1.0, %v3135
  %v3137 = vrcp.pop %v3132
  %v3138 = vmul.f32 1.0, %v3137
  %v3139 = vrcp.pop %v3133
  %v3140 = vmul.f32 1.0, %v3139
  %v3141 = vrcp.pop %v3134
  %v3142 = vmul.f32 1.0, %v3141
  %v3143 = vmul.f32 %v3009, %v3136
  %v3144 = vmul.f32 %v3014, %v3138
  %v3145 = vmul.f32 %v3019, %v3140
  %v3146 = vmul.f32 %v3024, %v3142
  %v3147 = vld [vmem:[%s1 + $0xf0] sm:$0xff]
  %v3148 = vld [vmem:[%s1 + $0xf8] sm:$0xff]
  %v3149 = vld [vmem:[%s1 + $0x100] sm:$0x1]
  %v3150 = vlaneseq
  %v3151 = vshrl.u32 %v3150, 7
  %v3152 = vsub.s32 0, %v3151
  %v3153 = vrot.slane %v3147, %v3152
  %v3154 = vmul.f32 %v3153, 0.0
  %v3155 = vmul.f32 %v3153, %v3143
  %v3156 = vadd.f32 %v3154, 0.0
  %v3157 = vadd.f32 %v3155, 0.0
  %v3158 = vlaneseq
  %v3159 = vshrl.u32 %v3158, 7
  %v3160 = vsub.s32 1, %v3159
  %v3161 = vrot.slane %v3147, %v3160
  %v3162 = vmul.f32 %v3161, 0.0
  %v3163 = vmul.f32 %v3161, %v3143
  %v3164 = vmul.f32 %v3161, %v3144
  %vm3168 = vcmask 1046528
  %v3169 = vrot.slane %v3162, 1
  %v3170 = vrot.slane %v3163, 1
  %v3171 = vsel %vm3168, %v3169, %v3170
  %v3172 = vrot.slane %v3164, 1
  %v3173 = vsel %vm3168, %v3170, %v3172
  %v3176 = vadd.f32 %v3156, %v3171
  %v3177 = vadd.f32 %v3157, %v3173
  %v3178 = vlaneseq
  %v3179 = vshrl.u32 %v3178, 7
  %v3180 = vsub.s32 2, %v3179
  %v3181 = vrot.slane %v3147, %v3180
  %v3182 = vmul.f32 %v3181, 0.0
  %v3183 = vmul.f32 %v3181, %v3143
  %v3184 = vmul.f32 %v3181, %v3144
  %vm3188 = vcmask 1045504
  %v3189 = vrot.slane %v3182, 2
  %v3190 = vrot.slane %v3183, 2
  %v3191 = vsel %vm3188, %v3189, %v3190
  %v3192 = vrot.slane %v3184, 2
  %v3193 = vsel %vm3188, %v3190, %v3192
  %v3196 = vadd.f32 %v3176, %v3191
  %v3197 = vadd.f32 %v3177, %v3193
  %v3198 = vlaneseq
  %v3199 = vshrl.u32 %v3198, 7
  %v3200 = vsub.s32 3, %v3199
  %v3201 = vrot.slane %v3147, %v3200
  %v3202 = vmul.f32 %v3201, 0.0
  %v3203 = vmul.f32 %v3201, %v3143
  %v3204 = vmul.f32 %v3201, %v3144
  %vm3208 = vcmask 1044480
  %v3209 = vrot.slane %v3202, 3
  %v3210 = vrot.slane %v3203, 3
  %v3211 = vsel %vm3208, %v3209, %v3210
  %v3212 = vrot.slane %v3204, 3
  %v3213 = vsel %vm3208, %v3210, %v3212
  %v3216 = vadd.f32 %v3196, %v3211
  %v3217 = vadd.f32 %v3197, %v3213
  %v3218 = vlaneseq
  %v3219 = vshrl.u32 %v3218, 7
  %v3220 = vsub.s32 4, %v3219
  %v3221 = vrot.slane %v3147, %v3220
  %v3222 = vmul.f32 %v3221, 0.0
  %v3223 = vmul.f32 %v3221, %v3143
  %v3224 = vmul.f32 %v3221, %v3144
  %v3228 = vrot.slane %v3222, 4
  %v3229 = vrot.slane %v3223, 4
  %v3230 = vsel %vm948, %v3228, %v3229
  %v3231 = vrot.slane %v3224, 4
  %v3232 = vsel %vm948, %v3229, %v3231
  %v3235 = vadd.f32 %v3216, %v3230
  %v3236 = vadd.f32 %v3217, %v3232
  %v3237 = vlaneseq
  %v3238 = vshrl.u32 %v3237, 7
  %v3239 = vsub.s32 5, %v3238
  %v3240 = vrot.slane %v3147, %v3239
  %v3241 = vmul.f32 %v3240, 0.0
  %v3242 = vmul.f32 %v3240, %v3143
  %v3243 = vmul.f32 %v3240, %v3144
  %vm3247 = vcmask 1042432
  %v3248 = vrot.slane %v3241, 5
  %v3249 = vrot.slane %v3242, 5
  %v3250 = vsel %vm3247, %v3248, %v3249
  %v3251 = vrot.slane %v3243, 5
  %v3252 = vsel %vm3247, %v3249, %v3251
  %v3255 = vadd.f32 %v3235, %v3250
  %v3256 = vadd.f32 %v3236, %v3252
  %v3257 = vlaneseq
  %v3258 = vshrl.u32 %v3257, 7
  %v3259 = vsub.s32 6, %v3258
  %v3260 = vrot.slane %v3147, %v3259
  %v3261 = vmul.f32 %v3260, 0.0
  %v3262 = vmul.f32 %v3260, %v3143
  %v3263 = vmul.f32 %v3260, %v3144
  %vm3267 = vcmask 1041408
  %v3268 = vrot.slane %v3261, 6
  %v3269 = vrot.slane %v3262, 6
  %v3270 = vsel %vm3267, %v3268, %v3269
  %v3271 = vrot.slane %v3263, 6
  %v3272 = vsel %vm3267, %v3269, %v3271
  %v3275 = vadd.f32 %v3255, %v3270
  %v3276 = vadd.f32 %v3256, %v3272
  %v3277 = vlaneseq
  %v3278 = vshrl.u32 %v3277, 7
  %v3279 = vsub.s32 7, %v3278
  %v3280 = vrot.slane %v3147, %v3279
  %v3281 = vmul.f32 %v3280, 0.0
  %v3282 = vmul.f32 %v3280, %v3143
  %v3283 = vmul.f32 %v3280, %v3144
  %vm3287 = vcmask 1040384
  %v3288 = vrot.slane %v3281, 7
  %v3289 = vrot.slane %v3282, 7
  %v3290 = vsel %vm3287, %v3288, %v3289
  %v3291 = vrot.slane %v3283, 7
  %v3292 = vsel %vm3287, %v3289, %v3291
  %v3295 = vadd.f32 %v3275, %v3290
  %v3296 = vadd.f32 %v3276, %v3292
  %v3297 = vlaneseq
  %v3298 = vshrl.u32 %v3297, 7
  %v3299 = vsub.s32 0, %v3298
  %v3300 = vrot.slane %v3148, %v3299
  %v3301 = vmul.f32 %v3300, %v3143
  %v3302 = vmul.f32 %v3300, %v3144
  %v3303 = vadd.f32 %v3295, %v3301
  %v3304 = vadd.f32 %v3296, %v3302
  %v3305 = vlaneseq
  %v3306 = vshrl.u32 %v3305, 7
  %v3307 = vsub.s32 1, %v3306
  %v3308 = vrot.slane %v3148, %v3307
  %v3309 = vmul.f32 %v3308, %v3143
  %v3310 = vmul.f32 %v3308, %v3144
  %v3311 = vmul.f32 %v3308, 0.0
  %v3315 = vrot.slane %v3309, 1
  %v3316 = vrot.slane %v3310, 1
  %v3317 = vsel %vm3168, %v3315, %v3316
  %v3318 = vrot.slane %v3311, 1
  %v3319 = vsel %vm3168, %v3316, %v3318
  %v3322 = vadd.f32 %v3303, %v3317
  %v3323 = vadd.f32 %v3304, %v3319
  %v3324 = vlaneseq
  %v3325 = vshrl.u32 %v3324, 7
  %v3326 = vsub.s32 2, %v3325
  %v3327 = vrot.slane %v3148, %v3326
  %v3328 = vmul.f32 %v3327, %v3143
  %v3329 = vmul.f32 %v3327, %v3144
  %v3330 = vmul.f32 %v3327, 0.0
  %v3334 = vrot.slane %v3328, 2
  %v3335 = vrot.slane %v3329, 2
  %v3336 = vsel %vm3188, %v3334, %v3335
  %v3337 = vrot.slane %v3330, 2
  %v3338 = vsel %vm3188, %v3335, %v3337
  %v3341 = vadd.f32 %v3322, %v3336
  %v3342 = vadd.f32 %v3323, %v3338
  %v3343 = vlaneseq
  %v3344 = vshrl.u32 %v3343, 7
  %v3345 = vsub.s32 3, %v3344
  %v3346 = vrot.slane %v3148, %v3345
  %v3347 = vmul.f32 %v3346, %v3143
  %v3348 = vmul.f32 %v3346, %v3144
  %v3349 = vmul.f32 %v3346, 0.0
  %v3353 = vrot.slane %v3347, 3
  %v3354 = vrot.slane %v3348, 3
  %v3355 = vsel %vm3208, %v3353, %v3354
  %v3356 = vrot.slane %v3349, 3
  %v3357 = vsel %vm3208, %v3354, %v3356
  %v3360 = vadd.f32 %v3341, %v3355
  %v3361 = vadd.f32 %v3342, %v3357
  %v3362 = vlaneseq
  %v3363 = vshrl.u32 %v3362, 7
  %v3364 = vsub.s32 4, %v3363
  %v3365 = vrot.slane %v3148, %v3364
  %v3366 = vmul.f32 %v3365, %v3143
  %v3367 = vmul.f32 %v3365, %v3144
  %v3368 = vmul.f32 %v3365, 0.0
  %v3372 = vrot.slane %v3366, 4
  %v3373 = vrot.slane %v3367, 4
  %v3374 = vsel %vm948, %v3372, %v3373
  %v3375 = vrot.slane %v3368, 4
  %v3376 = vsel %vm948, %v3373, %v3375
  %v3379 = vadd.f32 %v3360, %v3374
  %v3380 = vadd.f32 %v3361, %v3376
  %v3381 = vlaneseq
  %v3382 = vshrl.u32 %v3381, 7
  %v3383 = vsub.s32 5, %v3382
  %v3384 = vrot.slane %v3148, %v3383
  %v3385 = vmul.f32 %v3384, %v3143
  %v3386 = vmul.f32 %v3384, %v3144
  %v3387 = vmul.f32 %v3384, 0.0
  %v3391 = vrot.slane %v3385, 5
  %v3392 = vrot.slane %v3386, 5
  %v3393 = vsel %vm3247, %v3391, %v3392
  %v3394 = vrot.slane %v3387, 5
  %v3395 = vsel %vm3247, %v3392, %v3394
  %v3398 = vadd.f32 %v3379, %v3393
  %v3399 = vadd.f32 %v3380, %v3395
  %v3400 = vlaneseq
  %v3401 = vshrl.u32 %v3400, 7
  %v3402 = vsub.s32 6, %v3401
  %v3403 = vrot.slane %v3148, %v3402
  %v3404 = vmul.f32 %v3403, %v3143
  %v3405 = vmul.f32 %v3403, %v3144
  %v3406 = vmul.f32 %v3403, 0.0
  %v3410 = vrot.slane %v3404, 6
  %v3411 = vrot.slane %v3405, 6
  %v3412 = vsel %vm3267, %v3410, %v3411
  %v3413 = vrot.slane %v3406, 6
  %v3414 = vsel %vm3267, %v3411, %v3413
  %v3417 = vadd.f32 %v3398, %v3412
  %v3418 = vadd.f32 %v3399, %v3414
  %v3419 = vlaneseq
  %v3420 = vshrl.u32 %v3419, 7
  %v3421 = vsub.s32 7, %v3420
  %v3422 = vrot.slane %v3148, %v3421
  %v3423 = vmul.f32 %v3422, %v3143
  %v3424 = vmul.f32 %v3422, %v3144
  %v3425 = vmul.f32 %v3422, 0.0
  %v3429 = vrot.slane %v3423, 7
  %v3430 = vrot.slane %v3424, 7
  %v3431 = vsel %vm3287, %v3429, %v3430
  %v3432 = vrot.slane %v3425, 7
  %v3433 = vsel %vm3287, %v3430, %v3432
  %v3436 = vadd.f32 %v3417, %v3431
  %v3437 = vadd.f32 %v3418, %v3433
  %v3438 = vlaneseq
  %v3439 = vshrl.u32 %v3438, 7
  %v3440 = vsub.s32 0, %v3439
  %v3441 = vrot.slane %v3149, %v3440
  %v3442 = vmul.f32 %v3441, %v3144
  %v3443 = vmul.f32 %v3441, 0.0
  %v3444 = vadd.f32 %v3436, %v3442
  %v3445 = vadd.f32 %v3437, %v3443
  %v3446 = vmul.f32 %v3153, %v3145
  %v3447 = vadd.f32 %v3446, 0.0
  %v3448 = vmul.f32 %v3161, %v3145
  %v3449 = vmul.f32 %v3161, %v3146
  %v3452 = vrot.slane %v3448, 1
  %v3453 = vsel %vm3168, %v3169, %v3452
  %v3454 = vrot.slane %v3449, 1
  %v3455 = vsel %vm3168, %v3452, %v3454
  %v3458 = vadd.f32 %v3156, %v3453
  %v3459 = vadd.f32 %v3447, %v3455
  %v3460 = vmul.f32 %v3181, %v3145
  %v3461 = vmul.f32 %v3181, %v3146
  %v3464 = vrot.slane %v3460, 2
  %v3465 = vsel %vm3188, %v3189, %v3464
  %v3466 = vrot.slane %v3461, 2
  %v3467 = vsel %vm3188, %v3464, %v3466
  %v3470 = vadd.f32 %v3458, %v3465
  %v3471 = vadd.f32 %v3459, %v3467
  %v3472 = vmul.f32 %v3201, %v3145
  %v3473 = vmul.f32 %v3201, %v3146
  %v3476 = vrot.slane %v3472, 3
  %v3477 = vsel %vm3208, %v3209, %v3476
  %v3478 = vrot.slane %v3473, 3
  %v3479 = vsel %vm3208, %v3476, %v3478
  %v3482 = vadd.f32 %v3470, %v3477
  %v3483 = vadd.f32 %v3471, %v3479
  %v3484 = vmul.f32 %v3221, %v3145
  %v3485 = vmul.f32 %v3221, %v3146
  %v3488 = vrot.slane %v3484, 4
  %v3489 = vsel %vm948, %v3228, %v3488
  %v3490 = vrot.slane %v3485, 4
  %v3491 = vsel %vm948, %v3488, %v3490
  %v3494 = vadd.f32 %v3482, %v3489
  %v3495 = vadd.f32 %v3483, %v3491
  %v3496 = vmul.f32 %v3240, %v3145
  %v3497 = vmul.f32 %v3240, %v3146
  %v3500 = vrot.slane %v3496, 5
  %v3501 = vsel %vm3247, %v3248, %v3500
  %v3502 = vrot.slane %v3497, 5
  %v3503 = vsel %vm3247, %v3500, %v3502
  %v3506 = vadd.f32 %v3494, %v3501
  %v3507 = vadd.f32 %v3495, %v3503
  %v3508 = vmul.f32 %v3260, %v3145
  %v3509 = vmul.f32 %v3260, %v3146
  %v3512 = vrot.slane %v3508, 6
  %v3513 = vsel %vm3267, %v3268, %v3512
  %v3514 = vrot.slane %v3509, 6
  %v3515 = vsel %vm3267, %v3512, %v3514
  %v3518 = vadd.f32 %v3506, %v3513
  %v3519 = vadd.f32 %v3507, %v3515
  %v3520 = vmul.f32 %v3280, %v3145
  %v3521 = vmul.f32 %v3280, %v3146
  %v3524 = vrot.slane %v3520, 7
  %v3525 = vsel %vm3287, %v3288, %v3524
  %v3526 = vrot.slane %v3521, 7
  %v3527 = vsel %vm3287, %v3524, %v3526
  %v3530 = vadd.f32 %v3518, %v3525
  %v3531 = vadd.f32 %v3519, %v3527
  %v3532 = vmul.f32 %v3300, %v3145
  %v3533 = vmul.f32 %v3300, %v3146
  %v3534 = vadd.f32 %v3530, %v3532
  %v3535 = vadd.f32 %v3531, %v3533
  %v3536 = vmul.f32 %v3308, %v3145
  %v3537 = vmul.f32 %v3308, %v3146
  %v3540 = vrot.slane %v3536, 1
  %v3541 = vrot.slane %v3537, 1
  %v3542 = vsel %vm3168, %v3540, %v3541
  %v3543 = vsel %vm3168, %v3541, %v3318
  %v3546 = vadd.f32 %v3534, %v3542
  %v3547 = vadd.f32 %v3535, %v3543
  %v3548 = vmul.f32 %v3327, %v3145
  %v3549 = vmul.f32 %v3327, %v3146
  %v3552 = vrot.slane %v3548, 2
  %v3553 = vrot.slane %v3549, 2
  %v3554 = vsel %vm3188, %v3552, %v3553
  %v3555 = vsel %vm3188, %v3553, %v3337
  %v3558 = vadd.f32 %v3546, %v3554
  %v3559 = vadd.f32 %v3547, %v3555
  %v3560 = vmul.f32 %v3346, %v3145
  %v3561 = vmul.f32 %v3346, %v3146
  %v3564 = vrot.slane %v3560, 3
  %v3565 = vrot.slane %v3561, 3
  %v3566 = vsel %vm3208, %v3564, %v3565
  %v3567 = vsel %vm3208, %v3565, %v3356
  %v3570 = vadd.f32 %v3558, %v3566
  %v3571 = vadd.f32 %v3559, %v3567
  %v3572 = vmul.f32 %v3365, %v3145
  %v3573 = vmul.f32 %v3365, %v3146
  %v3576 = vrot.slane %v3572, 4
  %v3577 = vrot.slane %v3573, 4
  %v3578 = vsel %vm948, %v3576, %v3577
  %v3579 = vsel %vm948, %v3577, %v3375
  %v3582 = vadd.f32 %v3570, %v3578
  %v3583 = vadd.f32 %v3571, %v3579
  %v3584 = vmul.f32 %v3384, %v3145
  %v3585 = vmul.f32 %v3384, %v3146
  %v3588 = vrot.slane %v3584, 5
  %v3589 = vrot.slane %v3585, 5
  %v3590 = vsel %vm3247, %v3588, %v3589
  %v3591 = vsel %vm3247, %v3589, %v3394
  %v3594 = vadd.f32 %v3582, %v3590
  %v3595 = vadd.f32 %v3583, %v3591
  %v3596 = vmul.f32 %v3403, %v3145
  %v3597 = vmul.f32 %v3403, %v3146
  %v3600 = vrot.slane %v3596, 6
  %v3601 = vrot.slane %v3597, 6
  %v3602 = vsel %vm3267, %v3600, %v3601
  %v3603 = vsel %vm3267, %v3601, %v3413
  %v3606 = vadd.f32 %v3594, %v3602
  %v3607 = vadd.f32 %v3595, %v3603
  %v3608 = vmul.f32 %v3422, %v3145
  %v3609 = vmul.f32 %v3422, %v3146
  %v3612 = vrot.slane %v3608, 7
  %v3613 = vrot.slane %v3609, 7
  %v3614 = vsel %vm3287, %v3612, %v3613
  %v3615 = vsel %vm3287, %v3613, %v3432
  %v3618 = vadd.f32 %v3606, %v3614
  %v3619 = vadd.f32 %v3607, %v3615
  %v3620 = vmul.f32 %v3441, %v3146
  %v3621 = vadd.f32 %v3618, %v3620
  %v3622 = vadd.f32 %v3619, %v3443
  %v3623 = vld [vmem:[%s2 + $0x8] sm:$0x1]
  %v3624 = vlaneseq
  %v3625 = vshrl.u32 %v3624, 7
  %v3626 = vsub.s32 0, %v3625
  %v3627 = vrot.slane %v3623, %v3626
  %v3628 = vadd.f32 %v3444, %v3627
  %v3629 = vadd.f32 %v3445, %v3627
  %v3630 = vadd.f32 %v3621, %v3627
  %v3631 = vadd.f32 %v3622, %v3627
  %v3632 = vld [vmem:[%s2 + $0x9] sm:$0x1]
  %v3633 = vlaneseq
  %v3634 = vshrl.u32 %v3633, 7
  %v3635 = vsub.s32 0, %v3634
  %v3636 = vrot.slane %v3632, %v3635
  %v3637 = vmul.f32 %v3628, %v3636
  %v3638 = vmul.f32 %v3629, %v3636
  %v3639 = vmul.f32 %v3630, %v3636
  %v3640 = vmul.f32 %v3631, %v3636
  %v3641 = vld [vmem:[%s2 + $0xa] sm:$0x1]
  %v3642 = vlaneseq
  %v3643 = vshrl.u32 %v3642, 7
  %v3644 = vsub.s32 0, %v3643
  %v3645 = vrot.slane %v3641, %v3644
  %v3646 = vadd.f32 %v3637, %v3645
  %v3647 = vadd.f32 %v3638, %v3645
  %v3648 = vadd.f32 %v3639, %v3645
  %v3649 = vadd.f32 %v3640, %v3645
  %v3650 = vsub.f32 0.0, %v3646
  %v3651 = vsub.f32 0.0, %v3647
  %v3652 = vsub.f32 0.0, %v3648
  %v3653 = vsub.f32 0.0, %v3649
  %v3654 = vmul.f32 %v3650, 1.442695
  %v3655 = vpow.pop %v3654
  %v3656 = vmul.f32 %v3651, 1.442695
  %v3657 = vpow.pop %v3656
  %v3658 = vmul.f32 %v3652, 1.442695
  %v3659 = vpow.pop %v3658
  %v3660 = vmul.f32 %v3653, 1.442695
  %v3661 = vpow.pop %v3660
  %v3662 = vadd.f32 %v3655, 1.0
  %v3663 = vadd.f32 %v3657, 1.0
  %v3664 = vadd.f32 %v3659, 1.0
  %v3665 = vadd.f32 %v3661, 1.0
  %v3666 = vrcp.pop %v3662
  %v3667 = vmul.f32 1.0, %v3666
  %v3668 = vrcp.pop %v3663
  %v3669 = vmul.f32 1.0, %v3668
  %v3670 = vrcp.pop %v3664
  %v3671 = vmul.f32 1.0, %v3670
  %v3672 = vrcp.pop %v3665
  %v3673 = vmul.f32 1.0, %v3672
  %v3674 = vmul.f32 %v3646, %v3667
  %v3675 = vmul.f32 %v3647, %v3669
  %v3676 = vmul.f32 %v3648, %v3671
  %v3677 = vmul.f32 %v3649, %v3673
  %v3678 = vld [vmem:[%s1 + $0xe0] sm:$0xff]
  %v3679 = vld [vmem:[%s1 + $0xe8] sm:$0xff]
  %v3681 = vsel %vm20, %v3674, 0
  %v3684 = vsel %vm20, %v3675, 0
  %v3687 = vsel %vm20, %v3676, 0
  %v3690 = vsel %vm20, %v3677, 0
  %3692 = vmatprep.subr.mxu0 0.0
  %3693 = vmatpush1.msra.mxu0 %v3678
  %3694 = vmatprep.subr.mxu0 0.0
  %3695 = vmatpush1.msra.mxu0 %v3679
  %3696 = vmatprep.subr.mxu0 0.0
  %3697 = vmatpush1.msra.mxu0 0.0
  %3698 = vmatprep.subr.mxu0 0.0
  %3699 = vmatpush1.msra.mxu0 0.0
  %3700 = vmatprep.subr.mxu0 0.0
  %3701 = vmatpush1.msra.mxu0 0.0
  %3702 = vmatprep.subr.mxu0 0.0
  %3703 = vmatpush1.msra.mxu0 0.0
  %3704 = vmatprep.subr.mxu0 0.0
  %3705 = vmatpush1.msra.mxu0 0.0
  %3706 = vmatprep.subr.mxu0 0.0
  %3707 = vmatpush1.msra.mxu0 0.0
  %3708 = vmatprep.subr.mxu0 0.0
  %3709 = vmatpush1.msra.mxu0 0.0
  %3710 = vmatprep.subr.mxu0 0.0
  %3711 = vmatpush1.msra.mxu0 0.0
  %3712 = vmatprep.subr.mxu0 0.0
  %3713 = vmatpush1.msra.mxu0 0.0
  %3714 = vmatprep.subr.mxu0 0.0
  %3715 = vmatpush1.msra.mxu0 0.0
  %3716 = vmatprep.subr.mxu0 0.0
  %3717 = vmatpush1.msra.mxu0 0.0
  %3718 = vmatprep.subr.mxu0 0.0
  %3719 = vmatpush1.msra.mxu0 0.0
  %3720 = vmatprep.subr.mxu0 0.0
  %3721 = vmatpush1.msra.mxu0 0.0
  %3722 = vmatprep.subr.mxu0 0.0
  %3723 = vmatpush1.msra.mxu0 0.0
  %3724 = vmatprep.subr.mxu0 0.0
  %3725 = vmatpush1.msra.mxu0 0.0
  %3726 = vmatprep.subr.mxu0 0.0
  %3727 = vmatpush1.msra.mxu0 0.0
  %3728 = vmatprep.subr.mxu0 0.0
  %3729 = vmatpush1.msra.mxu0 0.0
  %3730 = vmatprep.subr.mxu0 0.0
  %3731 = vmatpush1.msra.mxu0 0.0
  %3732 = vmatprep.subr.mxu0 0.0
  %3733 = vmatpush1.msra.mxu0 0.0
  %3734 = vmatprep.subr.mxu0 0.0
  %3735 = vmatpush1.msra.mxu0 0.0
  %3736 = vmatprep.subr.mxu0 0.0
  %3737 = vmatpush1.msra.mxu0 0.0
  %3738 = vmatprep.subr.mxu0 0.0
  %3739 = vmatpush1.msra.mxu0 0.0
  %3740 = vmatprep.subr.mxu0 0.0
  %3741 = vmatpush1.msra.mxu0 0.0
  %3742 = vmatprep.subr.mxu0 0.0
  %3743 = vmatpush1.msra.mxu0 0.0
  %3744 = vmatprep.subr.mxu0 0.0
  %3745 = vmatpush1.msra.mxu0 0.0
  %3746 = vmatprep.subr.mxu0 0.0
  %3747 = vmatpush1.msra.mxu0 0.0
  %3748 = vmatprep.subr.mxu0 0.0
  %3749 = vmatpush1.msra.mxu0 0.0
  %3750 = vmatprep.subr.mxu0 0.0
  %3751 = vmatpush1.msra.mxu0 0.0
  %3752 = vmatprep.subr.mxu0 0.0
  %3753 = vmatpush1.msra.mxu0 0.0
  %3754 = vmatprep.subr.mxu0 0.0
  %3755 = vmatpush1.msra.mxu0 0.0
  %3756 = vmatprep.mubr.f32.mxu0 0.0
  %3757 = vmatmul.mubr.f32.gmra.mrb[0].mxu0 %v3681
  %v3758 = vpop.f32.mrb[0].mxu0
  %v3759 = vadd.f32 0.0, %v3758
  %v3760 = vpop.f32.mrb[0].mxu0
  %3761 = vmatprep.mubr.f32.mxu0 0.0
  %3762 = vmatmul.mubr.f32.gmra.mrb[0].mxu0 %v3684
  %v3763 = vpop.f32.mrb[0].mxu0
  %v3764 = vadd.f32 0.0, %v3763
  %v3765 = vpop.f32.mrb[0].mxu0
  %3766 = vmatprep.mubr.f32.mxu0 0.0
  %3767 = vmatmul.mubr.f32.gmra.mrb[0].mxu0 %v3687
  %v3768 = vpop.f32.mrb[0].mxu0
  %v3769 = vadd.f32 0.0, %v3768
  %v3770 = vpop.f32.mrb[0].mxu0
  %3771 = vmatprep.mubr.f32.mxu0 0.0
  %3772 = vmatmul.mubr.f32.gmra.mrb[0].mxu0 %v3690
  %v3773 = vpop.f32.mrb[0].mxu0
  %v3774 = vadd.f32 0.0, %v3773
  %v3775 = vpop.f32.mrb[0].mxu0
  %3776 = vdwg.mxu0
  %v3777 = vadd.f32 %v2835, %v3759
  %v3778 = vadd.f32 %v2836, %v3764
  %v3779 = vadd.f32 %v2837, %v3769
  %v3780 = vadd.f32 %v2838, %v3774
  %v3781 = vld [vmem:[%s2 + $0xb] sm:$0x1]
  %v3782 = vlaneseq
  %v3783 = vshrl.u32 %v3782, 7
  %v3784 = vsub.s32 0, %v3783
  %v3785 = vrot.slane %v3781, %v3784
  %v3786 = vadd.f32 %v3777, %v3785
  %v3787 = vadd.f32 %v3778, %v3785
  %v3788 = vadd.f32 %v3779, %v3785
  %v3789 = vadd.f32 %v3780, %v3785
  %v3790 = vld [vmem:[%s2 + $0xc] sm:$0x1]
  %v3791 = vld [vmem:[%s2 + $0xd] sm:$0x1]
  %v3792 = vsel %vm20, %v3786, 0.0
  %3793 = vadd.xlane.f32.xlu0 %v3792
  %v3794 = vpop.xlane.xlu0 %3793
  %v3795 = vsel %vm20, %v3787, 0.0
  %3796 = vadd.xlane.f32.xlu0 %v3795
  %v3797 = vpop.xlane.xlu0 %3796
  %v3798 = vsel %vm20, %v3788, 0.0
  %3799 = vadd.xlane.f32.xlu0 %v3798
  %v3800 = vpop.xlane.xlu0 %3799
  %v3801 = vsel %vm20, %v3789, 0.0
  %3802 = vadd.xlane.f32.xlu0 %v3801
  %v3803 = vpop.xlane.xlu0 %3802
  %v3804 = vmul.f32 %v3794, %v33
  %v3805 = vmul.f32 %v3797, %v33
  %v3806 = vmul.f32 %v3800, %v33
  %v3807 = vmul.f32 %v3803, %v33
  %v3808 = vsub.f32 %v3786, %v3804
  %v3809 = vsub.f32 %v3787, %v3805
  %v3810 = vsub.f32 %v3788, %v3806
  %v3811 = vsub.f32 %v3789, %v3807
  %v3812 = vmul.f32 %v3808, %v3808
  %v3813 = vmul.f32 %v3809, %v3809
  %v3814 = vmul.f32 %v3810, %v3810
  %v3815 = vmul.f32 %v3811, %v3811
  %v3816 = vsel %vm20, %v3812, 0.0
  %3817 = vadd.xlane.f32.xlu0 %v3816
  %v3818 = vpop.xlane.xlu0 %3817
  %v3819 = vsel %vm20, %v3813, 0.0
  %3820 = vadd.xlane.f32.xlu0 %v3819
  %v3821 = vpop.xlane.xlu0 %3820
  %v3822 = vsel %vm20, %v3814, 0.0
  %3823 = vadd.xlane.f32.xlu0 %v3822
  %v3824 = vpop.xlane.xlu0 %3823
  %v3825 = vsel %vm20, %v3815, 0.0
  %3826 = vadd.xlane.f32.xlu0 %v3825
  %v3827 = vpop.xlane.xlu0 %3826
  %v3828 = vmul.f32 %v3818, %v33
  %v3829 = vmul.f32 %v3821, %v33
  %v3830 = vmul.f32 %v3824, %v33
  %v3831 = vmul.f32 %v3827, %v33
  %v3832 = vadd.f32 %v3828, 1e-05
  %v3833 = vadd.f32 %v3829, 1e-05
  %v3834 = vadd.f32 %v3830, 1e-05
  %v3835 = vadd.f32 %v3831, 1e-05
  %v3836 = vrsqrt.pop %v3832
  %v3837 = vrsqrt.pop %v3833
  %v3838 = vrsqrt.pop %v3834
  %v3839 = vrsqrt.pop %v3835
  %v3840 = vmul.f32 %v3808, %v3836
  %v3841 = vmul.f32 %v3809, %v3837
  %v3842 = vmul.f32 %v3810, %v3838
  %v3843 = vmul.f32 %v3811, %v3839
  %v3844 = vlaneseq
  %v3845 = vshrl.u32 %v3844, 7
  %v3846 = vsub.s32 0, %v3845
  %v3847 = vrot.slane %v3790, %v3846
  %v3848 = vmul.f32 %v3840, %v3847
  %v3849 = vmul.f32 %v3841, %v3847
  %v3850 = vmul.f32 %v3842, %v3847
  %v3851 = vmul.f32 %v3843, %v3847
  %v3852 = vlaneseq
  %v3853 = vshrl.u32 %v3852, 7
  %v3854 = vsub.s32 0, %v3853
  %v3855 = vrot.slane %v3791, %v3854
  %v3856 = vadd.f32 %v3848, %v3855
  %v3857 = vadd.f32 %v3849, %v3855
  %v3858 = vadd.f32 %v3850, %v3855
  %v3859 = vadd.f32 %v3851, %v3855
  %v3860 = vld [vmem:[%s1 + $0x50] sm:$0xff]
  %v3861 = vld [vmem:[%s1 + $0x58] sm:$0xff]
  %v3862 = vld [vmem:[%s2 + $0xe] sm:$0x1]
  %v3863 = vlaneseq
  %v3864 = vshrl.u32 %v3863, 7
  %v3865 = vsub.s32 0, %v3864
  %v3866 = vrot.slane %v3862, %v3865
  %v3868 = vsel %vm20, %v3856, 0
  %v3871 = vsel %vm20, %v3857, 0
  %v3874 = vsel %vm20, %v3858, 0
  %v3877 = vsel %vm20, %v3859, 0
  %3879 = vmatprep.subr.mxu0 0.0
  %3880 = vmatpush1.msra.mxu0 %v3860
  %3881 = vmatprep.subr.mxu0 0.0
  %3882 = vmatpush1.msra.mxu0 %v3861
  %3883 = vmatprep.subr.mxu0 0.0
  %3884 = vmatpush1.msra.mxu0 0.0
  %3885 = vmatprep.subr.mxu0 0.0
  %3886 = vmatpush1.msra.mxu0 0.0
  %3887 = vmatprep.subr.mxu0 0.0
  %3888 = vmatpush1.msra.mxu0 0.0
  %3889 = vmatprep.subr.mxu0 0.0
  %3890 = vmatpush1.msra.mxu0 0.0
  %3891 = vmatprep.subr.mxu0 0.0
  %3892 = vmatpush1.msra.mxu0 0.0
  %3893 = vmatprep.subr.mxu0 0.0
  %3894 = vmatpush1.msra.mxu0 0.0
  %3895 = vmatprep.subr.mxu0 0.0
  %3896 = vmatpush1.msra.mxu0 0.0
  %3897 = vmatprep.subr.mxu0 0.0
  %3898 = vmatpush1.msra.mxu0 0.0
  %3899 = vmatprep.subr.mxu0 0.0
  %3900 = vmatpush1.msra.mxu0 0.0
  %3901 = vmatprep.subr.mxu0 0.0
  %3902 = vmatpush1.msra.mxu0 0.0
  %3903 = vmatprep.subr.mxu0 0.0
  %3904 = vmatpush1.msra.mxu0 0.0
  %3905 = vmatprep.subr.mxu0 0.0
  %3906 = vmatpush1.msra.mxu0 0.0
  %3907 = vmatprep.subr.mxu0 0.0
  %3908 = vmatpush1.msra.mxu0 0.0
  %3909 = vmatprep.subr.mxu0 0.0
  %3910 = vmatpush1.msra.mxu0 0.0
  %3911 = vmatprep.subr.mxu0 0.0
  %3912 = vmatpush1.msra.mxu0 0.0
  %3913 = vmatprep.subr.mxu0 0.0
  %3914 = vmatpush1.msra.mxu0 0.0
  %3915 = vmatprep.subr.mxu0 0.0
  %3916 = vmatpush1.msra.mxu0 0.0
  %3917 = vmatprep.subr.mxu0 0.0
  %3918 = vmatpush1.msra.mxu0 0.0
  %3919 = vmatprep.subr.mxu0 0.0
  %3920 = vmatpush1.msra.mxu0 0.0
  %3921 = vmatprep.subr.mxu0 0.0
  %3922 = vmatpush1.msra.mxu0 0.0
  %3923 = vmatprep.subr.mxu0 0.0
  %3924 = vmatpush1.msra.mxu0 0.0
  %3925 = vmatprep.subr.mxu0 0.0
  %3926 = vmatpush1.msra.mxu0 0.0
  %3927 = vmatprep.subr.mxu0 0.0
  %3928 = vmatpush1.msra.mxu0 0.0
  %3929 = vmatprep.subr.mxu0 0.0
  %3930 = vmatpush1.msra.mxu0 0.0
  %3931 = vmatprep.subr.mxu0 0.0
  %3932 = vmatpush1.msra.mxu0 0.0
  %3933 = vmatprep.subr.mxu0 0.0
  %3934 = vmatpush1.msra.mxu0 0.0
  %3935 = vmatprep.subr.mxu0 0.0
  %3936 = vmatpush1.msra.mxu0 0.0
  %3937 = vmatprep.subr.mxu0 0.0
  %3938 = vmatpush1.msra.mxu0 0.0
  %3939 = vmatprep.subr.mxu0 0.0
  %3940 = vmatpush1.msra.mxu0 0.0
  %3941 = vmatprep.subr.mxu0 0.0
  %3942 = vmatpush1.msra.mxu0 0.0
  %3943 = vmatprep.mubr.f32.mxu0 0.0
  %3944 = vmatmul.mubr.f32.gmra.mrb[0].mxu0 %v3868
  %v3945 = vpop.f32.mrb[0].mxu0
  %v3946 = vadd.f32 %v3866, %v3945
  %v3947 = vpop.f32.mrb[0].mxu0
  %3948 = vmatprep.mubr.f32.mxu0 0.0
  %3949 = vmatmul.mubr.f32.gmra.mrb[0].mxu0 %v3871
  %v3950 = vpop.f32.mrb[0].mxu0
  %v3951 = vadd.f32 %v3866, %v3950
  %v3952 = vpop.f32.mrb[0].mxu0
  %3953 = vmatprep.mubr.f32.mxu0 0.0
  %3954 = vmatmul.mubr.f32.gmra.mrb[0].mxu0 %v3874
  %v3955 = vpop.f32.mrb[0].mxu0
  %v3956 = vadd.f32 %v3866, %v3955
  %v3957 = vpop.f32.mrb[0].mxu0
  %3958 = vmatprep.mubr.f32.mxu0 0.0
  %3959 = vmatmul.mubr.f32.gmra.mrb[0].mxu0 %v3877
  %v3960 = vpop.f32.mrb[0].mxu0
  %v3961 = vadd.f32 %v3866, %v3960
  %v3962 = vpop.f32.mrb[0].mxu0
  %3963 = vdwg.mxu0
  %v3964 = vsub.f32 0.0, %v3946
  %v3965 = vsub.f32 0.0, %v3951
  %v3966 = vsub.f32 0.0, %v3956
  %v3967 = vsub.f32 0.0, %v3961
  %v3968 = vmul.f32 %v3964, 1.442695
  %v3969 = vpow.pop %v3968
  %v3970 = vmul.f32 %v3965, 1.442695
  %v3971 = vpow.pop %v3970
  %v3972 = vmul.f32 %v3966, 1.442695
  %v3973 = vpow.pop %v3972
  %v3974 = vmul.f32 %v3967, 1.442695
  %v3975 = vpow.pop %v3974
  %v3976 = vadd.f32 %v3969, 1.0
  %v3977 = vadd.f32 %v3971, 1.0
  %v3978 = vadd.f32 %v3973, 1.0
  %v3979 = vadd.f32 %v3975, 1.0
  %v3980 = vrcp.pop %v3976
  %v3981 = vmul.f32 1.0, %v3980
  %v3982 = vrcp.pop %v3977
  %v3983 = vmul.f32 1.0, %v3982
  %v3984 = vrcp.pop %v3978
  %v3985 = vmul.f32 1.0, %v3984
  %v3986 = vrcp.pop %v3979
  %v3987 = vmul.f32 1.0, %v3986
  %v3988 = vmul.f32 %v3946, %v3981
  %v3989 = vmul.f32 %v3951, %v3983
  %v3990 = vmul.f32 %v3956, %v3985
  %v3991 = vmul.f32 %v3961, %v3987
  %v3992 = vld [vmem:[%s1 + $0x60] sm:$0xff]
  %v3993 = vld [vmem:[%s1 + $0x68] sm:$0xff]
  %v3994 = vld [vmem:[%s1 + $0x70] sm:$0xff]
  %v3995 = vld [vmem:[%s1 + $0x78] sm:$0xff]
  %v3996 = vld [vmem:[%s1 + $0x80] sm:$0xff]
  %v3997 = vld [vmem:[%s1 + $0x88] sm:$0xff]
  %v3998 = vld [vmem:[%s1 + $0x90] sm:$0xff]
  %v3999 = vld [vmem:[%s1 + $0x98] sm:$0xff]
  %v4000 = vld [vmem:[%s2 + $0xf] sm:$0x1]
  %v4001 = vlaneseq
  %v4002 = vshrl.u32 %v4001, 7
  %v4003 = vsub.s32 0, %v4002
  %v4004 = vrot.slane %v4000, %v4003
  %v4006 = vsel %vm235, %v3988, 0
  %v4009 = vsel %vm235, %v3989, 0
  %v4012 = vsel %vm235, %v3990, 0
  %v4015 = vsel %vm235, %v3991, 0
  %4017 = vmatprep.subr.mxu0 0.0
  %4018 = vmatpush1.msra.mxu0 %v3992
  %4019 = vmatprep.subr.mxu0 0.0
  %4020 = vmatpush1.msra.mxu0 %v3993
  %4021 = vmatprep.subr.mxu0 0.0
  %4022 = vmatpush1.msra.mxu0 %v3994
  %4023 = vmatprep.subr.mxu0 0.0
  %4024 = vmatpush1.msra.mxu0 %v3995
  %4025 = vmatprep.subr.mxu0 0.0
  %4026 = vmatpush1.msra.mxu0 %v3996
  %4027 = vmatprep.subr.mxu0 0.0
  %4028 = vmatpush1.msra.mxu0 %v3997
  %4029 = vmatprep.subr.mxu0 0.0
  %4030 = vmatpush1.msra.mxu0 %v3998
  %4031 = vmatprep.subr.mxu0 0.0
  %4032 = vmatpush1.msra.mxu0 %v3999
  %4033 = vmatprep.subr.mxu0 0.0
  %4034 = vmatpush1.msra.mxu0 0.0
  %4035 = vmatprep.subr.mxu0 0.0
  %4036 = vmatpush1.msra.mxu0 0.0
  %4037 = vmatprep.subr.mxu0 0.0
  %4038 = vmatpush1.msra.mxu0 0.0
  %4039 = vmatprep.subr.mxu0 0.0
  %4040 = vmatpush1.msra.mxu0 0.0
  %4041 = vmatprep.subr.mxu0 0.0
  %4042 = vmatpush1.msra.mxu0 0.0
  %4043 = vmatprep.subr.mxu0 0.0
  %4044 = vmatpush1.msra.mxu0 0.0
  %4045 = vmatprep.subr.mxu0 0.0
  %4046 = vmatpush1.msra.mxu0 0.0
  %4047 = vmatprep.subr.mxu0 0.0
  %4048 = vmatpush1.msra.mxu0 0.0
  %4049 = vmatprep.subr.mxu0 0.0
  %4050 = vmatpush1.msra.mxu0 0.0
  %4051 = vmatprep.subr.mxu0 0.0
  %4052 = vmatpush1.msra.mxu0 0.0
  %4053 = vmatprep.subr.mxu0 0.0
  %4054 = vmatpush1.msra.mxu0 0.0
  %4055 = vmatprep.subr.mxu0 0.0
  %4056 = vmatpush1.msra.mxu0 0.0
  %4057 = vmatprep.subr.mxu0 0.0
  %4058 = vmatpush1.msra.mxu0 0.0
  %4059 = vmatprep.subr.mxu0 0.0
  %4060 = vmatpush1.msra.mxu0 0.0
  %4061 = vmatprep.subr.mxu0 0.0
  %4062 = vmatpush1.msra.mxu0 0.0
  %4063 = vmatprep.subr.mxu0 0.0
  %4064 = vmatpush1.msra.mxu0 0.0
  %4065 = vmatprep.subr.mxu0 0.0
  %4066 = vmatpush1.msra.mxu0 0.0
  %4067 = vmatprep.subr.mxu0 0.0
  %4068 = vmatpush1.msra.mxu0 0.0
  %4069 = vmatprep.subr.mxu0 0.0
  %4070 = vmatpush1.msra.mxu0 0.0
  %4071 = vmatprep.subr.mxu0 0.0
  %4072 = vmatpush1.msra.mxu0 0.0
  %4073 = vmatprep.subr.mxu0 0.0
  %4074 = vmatpush1.msra.mxu0 0.0
  %4075 = vmatprep.subr.mxu0 0.0
  %4076 = vmatpush1.msra.mxu0 0.0
  %4077 = vmatprep.subr.mxu0 0.0
  %4078 = vmatpush1.msra.mxu0 0.0
  %4079 = vmatprep.subr.mxu0 0.0
  %4080 = vmatpush1.msra.mxu0 0.0
  %4081 = vmatprep.mubr.f32.mxu0 0.0
  %4082 = vmatmul.mubr.f32.gmra.mrb[0].mxu0 %v4006
  %v4083 = vpop.f32.mrb[0].mxu0
  %v4084 = vadd.f32 %v4004, %v4083
  %v4085 = vpop.f32.mrb[0].mxu0
  %4086 = vmatprep.mubr.f32.mxu0 0.0
  %4087 = vmatmul.mubr.f32.gmra.mrb[0].mxu0 %v4009
  %v4088 = vpop.f32.mrb[0].mxu0
  %v4089 = vadd.f32 %v4004, %v4088
  %v4090 = vpop.f32.mrb[0].mxu0
  %4091 = vmatprep.mubr.f32.mxu0 0.0
  %4092 = vmatmul.mubr.f32.gmra.mrb[0].mxu0 %v4012
  %v4093 = vpop.f32.mrb[0].mxu0
  %v4094 = vadd.f32 %v4004, %v4093
  %v4095 = vpop.f32.mrb[0].mxu0
  %4096 = vmatprep.mubr.f32.mxu0 0.0
  %4097 = vmatmul.mubr.f32.gmra.mrb[0].mxu0 %v4015
  %v4098 = vpop.f32.mrb[0].mxu0
  %v4099 = vadd.f32 %v4004, %v4098
  %v4100 = vpop.f32.mrb[0].mxu0
  %4101 = vdwg.mxu0
  %v4102 = vmul.f32 %v4084, 0.5
  %v4103 = vmul.f32 %v4089, 0.5
  %v4104 = vmul.f32 %v4094, 0.5
  %v4105 = vmul.f32 %v4099, 0.5
  %v4106 = vadd.f32 %v3786, %v4102
  %v4107 = vadd.f32 %v3787, %v4103
  %v4108 = vadd.f32 %v3788, %v4104
  %v4109 = vadd.f32 %v3789, %v4105
  %v4110 = vld [vmem:[%s2 + $0x10] sm:$0x1]
  %v4111 = vld [vmem:[%s2 + $0x11] sm:$0x1]
  %v4112 = vsel %vm20, %v4106, 0.0
  %4113 = vadd.xlane.f32.xlu0 %v4112
  %v4114 = vpop.xlane.xlu0 %4113
  %v4115 = vsel %vm20, %v4107, 0.0
  %4116 = vadd.xlane.f32.xlu0 %v4115
  %v4117 = vpop.xlane.xlu0 %4116
  %v4118 = vsel %vm20, %v4108, 0.0
  %4119 = vadd.xlane.f32.xlu0 %v4118
  %v4120 = vpop.xlane.xlu0 %4119
  %v4121 = vsel %vm20, %v4109, 0.0
  %4122 = vadd.xlane.f32.xlu0 %v4121
  %v4123 = vpop.xlane.xlu0 %4122
  %v4124 = vmul.f32 %v4114, %v33
  %v4125 = vmul.f32 %v4117, %v33
  %v4126 = vmul.f32 %v4120, %v33
  %v4127 = vmul.f32 %v4123, %v33
  %v4128 = vsub.f32 %v4106, %v4124
  %v4129 = vsub.f32 %v4107, %v4125
  %v4130 = vsub.f32 %v4108, %v4126
  %v4131 = vsub.f32 %v4109, %v4127
  %v4132 = vmul.f32 %v4128, %v4128
  %v4133 = vmul.f32 %v4129, %v4129
  %v4134 = vmul.f32 %v4130, %v4130
  %v4135 = vmul.f32 %v4131, %v4131
  %v4136 = vsel %vm20, %v4132, 0.0
  %4137 = vadd.xlane.f32.xlu0 %v4136
  %v4138 = vpop.xlane.xlu0 %4137
  %v4139 = vsel %vm20, %v4133, 0.0
  %4140 = vadd.xlane.f32.xlu0 %v4139
  %v4141 = vpop.xlane.xlu0 %4140
  %v4142 = vsel %vm20, %v4134, 0.0
  %4143 = vadd.xlane.f32.xlu0 %v4142
  %v4144 = vpop.xlane.xlu0 %4143
  %v4145 = vsel %vm20, %v4135, 0.0
  %4146 = vadd.xlane.f32.xlu0 %v4145
  %v4147 = vpop.xlane.xlu0 %4146
  %v4148 = vmul.f32 %v4138, %v33
  %v4149 = vmul.f32 %v4141, %v33
  %v4150 = vmul.f32 %v4144, %v33
  %v4151 = vmul.f32 %v4147, %v33
  %v4152 = vadd.f32 %v4148, 1e-05
  %v4153 = vadd.f32 %v4149, 1e-05
  %v4154 = vadd.f32 %v4150, 1e-05
  %v4155 = vadd.f32 %v4151, 1e-05
  %v4156 = vrsqrt.pop %v4152
  %v4157 = vrsqrt.pop %v4153
  %v4158 = vrsqrt.pop %v4154
  %v4159 = vrsqrt.pop %v4155
  %v4160 = vmul.f32 %v4128, %v4156
  %v4161 = vmul.f32 %v4129, %v4157
  %v4162 = vmul.f32 %v4130, %v4158
  %v4163 = vmul.f32 %v4131, %v4159
  %v4164 = vlaneseq
  %v4165 = vshrl.u32 %v4164, 7
  %v4166 = vsub.s32 0, %v4165
  %v4167 = vrot.slane %v4110, %v4166
  %v4168 = vmul.f32 %v4160, %v4167
  %v4169 = vmul.f32 %v4161, %v4167
  %v4170 = vmul.f32 %v4162, %v4167
  %v4171 = vmul.f32 %v4163, %v4167
  %v4172 = vlaneseq
  %v4173 = vshrl.u32 %v4172, 7
  %v4174 = vsub.s32 0, %v4173
  %v4175 = vrot.slane %v4111, %v4174
  %v4176 = vadd.f32 %v4168, %v4175
  %v4177 = vadd.f32 %v4169, %v4175
  %v4178 = vadd.f32 %v4170, %v4175
  %v4179 = vadd.f32 %v4171, %v4175
  %4180 = vst.msk [vmem:[%s3] sm:$0xff] %vm20, %v4176
  %4181 = vst.msk [vmem:[%s3 + $0x8] sm:$0xff] %vm20, %v4177
  %4182 = vst.msk [vmem:[%s3 + $0x10] sm:$0xff] %vm20, %v4178
  %4183 = vst.msk [vmem:[%s3 + $0x18] sm:$0xff] %vm20, %v4179
  // Predicated region
  $region14: #{tpu_custom_call.1} parent=0 // pred_check
    _
  $region15: #{tpu_custom_call.1} parent=0 // pred_check_branch
    %4185 = sbr.rel (0) target = $region17
  $region16: #{tpu_custom_call.1} parent=0 // pred_region
    _
  $region17: #{tpu_custom_call.1} parent=0 // pred_fallthru
    _
  // Predicated region
  $region18: #{tpu_custom_call.1} parent=0 // pred_check
    _
  $region19: #{tpu_custom_call.1} parent=0 // pred_check_branch
    %4187 = sbr.rel (0) target = $region21
  $region20: #{tpu_custom_call.1} parent=0 // pred_region
    _
  $region21: #{tpu_custom_call.1} parent=0 // pred_fallthru
    _

</llo_original>
